<compile_context>
chip_gen: v7x
topology: tpu7x:2x2x1
jax: 0.10.0
libtpu: 0.0.40
codegen_flags: <defaults>
</compile_context>

<pallas_src>
import functools

import jax
import jax.numpy as jnp
from jax import lax
from jax.experimental import pallas as pl
from jax.experimental.pallas import tpu as pltpu


def _layer_norm(v, gamma, beta, eps=1e-5):
    mean = jnp.mean(v, axis=-1, keepdims=True)
    var = jnp.mean((v - mean) ** 2, axis=-1, keepdims=True)
    return (v - mean) * lax.rsqrt(var + eps) * gamma + beta


def _approx_reciprocal(x):
    recip = getattr(pl, "reciprocal", None)
    if recip is not None:
        return recip(x, approx=True)      # EUP slot; ~2^-12 relative error
    return 1.0 / x


def _encoder_layer_kernel(num_heads,
                          x_ref, wq_ref, bq_ref, wkv_ref, bkv_ref,
                          wo_ref, bo_ref, w1_ref, b1_ref, w2_ref, b2_ref,
                          g1_ref, be1_ref, g2_ref, be2_ref,
                          o_ref,
                          k_scr, v_scr, ocat_scr):
    qi = pl.program_id(1)
    d = x_ref.shape[-1]
    tq = o_ref.shape[0]
    dh = d // num_heads

    # ---- K / V for the whole sequence, once per batch element (qi == 0) ----
    # One fused full-width (N, D) @ (D, 2D) projection; scratch stays
    # lane-dense (N, D) bf16 (no dh-lane padding).
    @pl.when(qi == 0)
    def _():
        xf = x_ref[...].astype(jnp.bfloat16)                      # (N, D)
        kv = (jnp.dot(xf, wkv_ref[...], preferred_element_type=jnp.float32)
              + bkv_ref[...]).astype(jnp.bfloat16)                # (N, 2D)
        k_scr[...] = kv[:, :d]
        v_scr[...] = kv[:, d:]

    # ---- query tile: sliced in-kernel from the single x stream ----
    row0 = pl.multiple_of(qi * tq, tq)
    xq = x_ref[pl.ds(row0, tq), :]                                # (tq, D) f32 residual
    # Full-width Q projection (2x and head scale folded into wq/bq); Q kept as
    # a value -> no scratch store/reload roundtrip.
    q2 = (jnp.dot(xq.astype(jnp.bfloat16), wq_ref[...],
                  preferred_element_type=jnp.float32) + bq_ref[...])
    q2 = q2.astype(jnp.bfloat16)                                  # (tq, D)

    k2 = k_scr[...]                                               # (N, D) bf16
    v2 = v_scr[...]                                               # (N, D) bf16

    # ---- attention, one head at a time ----
    # Only one (tq, N) f32 score tile is live at a time; score matmuls keep the
    # full N-wide MXU output columns.  exp kept in f32 (bf16 exp is a
    # v6e/v7x-only EUP option; v5e has no bf16 EUP).
    for h in range(num_heads):
        lo = h * dh
        s = lax.dot_general(q2[:, lo:lo + dh], k2[:, lo:lo + dh],
                            (((1,), (1,)), ((), ())),
                            preferred_element_type=jnp.float32)   # (tq, N)
        s = s - jnp.max(s, axis=-1, keepdims=True)
        p = jnp.exp(s)
        p = p * _approx_reciprocal(jnp.sum(p, axis=-1, keepdims=True))
        o_h = jnp.dot(p.astype(jnp.bfloat16), v2[:, lo:lo + dh],
                      preferred_element_type=jnp.float32)         # (tq, dh)
        # Merge heads lane-wise so the out projection is ONE full-depth (K=D)
        # contraction instead of H depth-dh matmuls + cross-head sum.
        ocat_scr[:, lo:lo + dh] = o_h.astype(jnp.bfloat16)

    attn = (jnp.dot(ocat_scr[...], wo_ref[...],
                    preferred_element_type=jnp.float32) + bo_ref[...])  # (tq, D)

    # ---- residual + LayerNorm 1 (f32) ----
    x1 = _layer_norm(attn + xq, g1_ref[...], be1_ref[...])

    # ---- FeedForward: fc1 -> relu -> fc2 (bf16 MXU inputs, f32 accumulation) --
    h1 = jnp.dot(x1.astype(jnp.bfloat16), w1_ref[...],
                 preferred_element_type=jnp.float32) + b1_ref[...]
    h1 = jnp.maximum(h1, 0.0)
    f = jnp.dot(h1.astype(jnp.bfloat16), w2_ref[...],
                preferred_element_type=jnp.float32) + b2_ref[...]

    # ---- residual + LayerNorm 2 ----
    o_ref[...] = _layer_norm(f + x1, g2_ref[...], be2_ref[...])


def transformer_encoder_layer(x, params, num_heads, param_dtype=jnp.bfloat16):
    """x: (B, N, D) float32; params: dict of weights in (in, out) layout."""
    B, N, D = x.shape
    F = params["w1"].shape[1]
    assert D % num_heads == 0, "hidden_dim must be divisible by num_heads"
    dh = D // num_heads
    scale = dh ** (-0.5)

    # Query-row tile.  128 keeps the per-head (tq, N) f32 score tile small
    # (v7x 64 MiB budget); can be raised to 256+ on v5e/v6e for large N.
    # TODO(synk): cdiv grid + masked tail (or host padding + key masking) for
    # large N not divisible by 128; such N currently runs as one tile.
    tq = 128 if N % 128 == 0 else N
    nq = N // tq

    # ---- one-time parameter prep (outside the hot path) ----
    # Fold q = k = 2*x (Identity pos-embed) and the head scale into the Q/K
    # projections; fuse K and V projections into one (D, 2D) weight; cast the
    # MXU weights to bf16 (f32 accumulation in-kernel preserves accuracy).
    wq = (params["wq"] * (2.0 * scale)).astype(param_dtype)
    bq = (params["bq"] * scale).astype(jnp.float32)
    wkv = jnp.concatenate([params["wk"] * 2.0, params["wv"]], axis=1).astype(param_dtype)
    bkv = jnp.concatenate([params["bk"], params["bv"]], axis=1).astype(jnp.float32)
    wo = params["wo"].astype(param_dtype)
    w1 = params["w1"].astype(param_dtype)
    w2 = params["w2"].astype(param_dtype)

    args = (x, wq, bq, wkv, bkv, wo, params["bo"], w1, params["b1"],
            w2, params["b2"], params["gamma1"], params["beta1"],
            params["gamma2"], params["beta2"])

    kernel = functools.partial(_encoder_layer_kernel, num_heads)
    out_shape = jax.ShapeDtypeStruct((B, N, D), jnp.float32)
    cp_cls = (getattr(pltpu, "CompilerParams", None)
              or getattr(pltpu, "TPUCompilerParams", None))

    def build(single_buffer_weights, vmem_limit_bytes):
        def const(shape):
            kwargs = {}
            if single_buffer_weights and hasattr(pl, "Buffered"):
                # Constant index_map => double buffering the weights is pure
                # VMEM waste; request a single buffer.
                kwargs["pipeline_mode"] = pl.Buffered(1)
            return pl.BlockSpec(shape, lambda b, q: (0,) * len(shape), **kwargs)

        in_specs = [
            # x, full sequence per batch element (single stream; K/V at qi==0,
            # the query tile is sliced in-kernel).  Batch dim squeezed.
            pl.BlockSpec((None, N, D), lambda b, q: (b, 0, 0)),
            const((D, D)), const((1, D)),            # wq,  bq
            const((D, 2 * D)), const((1, 2 * D)),    # wkv, bkv
            const((D, D)), const((1, D)),            # wo,  bo
            const((D, F)), const((1, F)),            # w1,  b1
            const((F, D)), const((1, D)),            # w2,  b2
            const((1, D)), const((1, D)),            # gamma1, beta1
            const((1, D)), const((1, D)),            # gamma2, beta2
        ]
        out_spec = pl.BlockSpec((None, tq, D), lambda b, q: (b, q, 0))

        compiler_params = None
        if cp_cls is not None:
            compiler_params = cp_cls(
                # batch: parallel (megacore); q-tile: arbitrary (K/V scratch
                # computed at q-tile 0 is reused by later tiles).
                dimension_semantics=("parallel", "arbitrary"),
                vmem_limit_bytes=vmem_limit_bytes,
            )

        return pl.pallas_call(
            kernel,
            out_shape=out_shape,
            grid_spec=pltpu.PrefetchScalarGridSpec(
                num_scalar_prefetch=0,
                grid=(B, nq),
                in_specs=in_specs,
                out_specs=out_spec,
                scratch_shapes=[
                    pltpu.VMEM((N, D), jnp.bfloat16),    # K heads, lane-dense
                    pltpu.VMEM((N, D), jnp.bfloat16),    # V heads, lane-dense
                    pltpu.VMEM((tq, D), jnp.bfloat16),   # merged head outputs
                ],
            ),
            compiler_params=compiler_params,
        )

    try:
        # Primary: single-buffered constant weights + 64 MiB scoped VMEM
        # (a real raise on v5e/v6e; on v7x one would cap nearer 48 MiB).
        return build(True, 64 * 1024 * 1024)(*args)
    except Exception:
        # Fallback for JAX/libtpu versions (or chips) that reject
        # pipeline_mode=pl.Buffered(1) or the raised scoped-VMEM limit.
        return build(False, None)(*args)


def _reference(x, p, num_heads):
    """Pure-JAX f32 reference mirroring the PyTorch forward exactly."""
    B, N, D = x.shape
    dh = D // num_heads
    scale = dh ** (-0.5)
    qk_in = x + x
    q = qk_in @ p["wq"] + p["bq"]
    k = qk_in @ p["wk"] + p["bk"]
    v = x @ p["wv"] + p["bv"]
    split = lambda t: t.reshape(B, N, num_heads, dh).transpose(0, 2, 1, 3)
    q, k, v = split(q) * scale, split(k), split(v)
    attn = jax.nn.softmax(jnp.einsum("bhid,bhjd->bhij", q, k), axis=-1)
    out = jnp.einsum("bhij,bhjd->bhid", attn, v)
    out = out.transpose(0, 2, 1, 3).reshape(B, N, D)
    out = out @ p["wo"] + p["bo"]
    x1 = out + x

    def ln(v_, g, b):
        mu = v_.mean(-1, keepdims=True)
        var = ((v_ - mu) ** 2).mean(-1, keepdims=True)
        return (v_ - mu) * lax.rsqrt(var + 1e-5) * g + b

    x1 = ln(x1, p["gamma1"], p["beta1"])
    f = jnp.maximum(x1 @ p["w1"] + p["b1"], 0.0) @ p["w2"] + p["b2"]
    return ln(f + x1, p["gamma2"], p["beta2"])


def _init_params(key, hidden_dim, dim_feedforward):
    D, F = hidden_dim, dim_feedforward
    keys = jax.random.split(key, 12)
    n = lambda k, s: (0.02 * jax.random.normal(k, s)).astype(jnp.float32)
    return {
        "wq": n(keys[0], (D, D)), "bq": n(keys[1], (1, D)),
        "wk": n(keys[2], (D, D)), "bk": n(keys[3], (1, D)),
        "wv": n(keys[4], (D, D)), "bv": n(keys[5], (1, D)),
        "wo": n(keys[6], (D, D)), "bo": n(keys[7], (1, D)),
        "w1": n(keys[8], (D, F)), "b1": n(keys[9], (1, F)),
        "w2": n(keys[10], (F, D)), "b2": n(keys[11], (1, D)),
        "gamma1": jnp.ones((1, D), jnp.float32), "beta1": jnp.zeros((1, D), jnp.float32),
        "gamma2": jnp.ones((1, D), jnp.float32), "beta2": jnp.zeros((1, D), jnp.float32),
    }


if __name__ == "__main__":
    def _check(B, N, D, H, FF):
        key = jax.random.PRNGKey(0)
        kx, kp = jax.random.split(key)
        x = jax.random.normal(kx, (B, N, D), dtype=jnp.float32)
        params = _init_params(kp, D, FF)
        out = jax.block_until_ready(transformer_encoder_layer(x, params, H))
        ref = _reference(x, params, H)
        assert out.shape == (B, N, D)
        max_err = float(jnp.max(jnp.abs(out - ref)))
        # bf16 MXU inputs (f32 accumulation) vs a pure-f32 reference.
        assert jnp.allclose(out, ref, atol=2e-2, rtol=2e-2), (
            f"mismatch vs JAX reference at (B={B}, N={N}, D={D}): "
            f"max abs err {max_err}")

    # Small single-tile case (shapes the module implies).
    _check(B=2, N=8, D=32, H=4, FF=64)
    # Multi-tile case (tq=128, nq=2): exercises K/V scratch reuse across
    # q tiles (perf-review correctness concern).
    _check(B=2, N=256, D=32, H=4, FF=64)

    print("KERNEL_OK")
</pallas_src>

<mosaic_0001>
module attributes {stable_mosaic.version = 11 : i64} {
  func.func @_encoder_layer_kernel(%arg0: i32, %arg1: i32, %arg2: memref<1x8x32xf32, #tpu.memory_space<vmem>>, %arg3: memref<32x32xbf16, #tpu.memory_space<vmem>>, %arg4: memref<1x32xf32, #tpu.memory_space<vmem>>, %arg5: memref<32x64xbf16, #tpu.memory_space<vmem>>, %arg6: memref<1x64xf32, #tpu.memory_space<vmem>>, %arg7: memref<32x32xbf16, #tpu.memory_space<vmem>>, %arg8: memref<1x32xf32, #tpu.memory_space<vmem>>, %arg9: memref<32x64xbf16, #tpu.memory_space<vmem>>, %arg10: memref<1x64xf32, #tpu.memory_space<vmem>>, %arg11: memref<64x32xbf16, #tpu.memory_space<vmem>>, %arg12: memref<1x32xf32, #tpu.memory_space<vmem>>, %arg13: memref<1x32xf32, #tpu.memory_space<vmem>>, %arg14: memref<1x32xf32, #tpu.memory_space<vmem>>, %arg15: memref<1x32xf32, #tpu.memory_space<vmem>>, %arg16: memref<1x32xf32, #tpu.memory_space<vmem>>, %arg17: memref<1x8x32xf32, #tpu.memory_space<vmem>>, %arg18: memref<8x32xbf16, #tpu.memory_space<vmem>>, %arg19: memref<8x32xbf16, #tpu.memory_space<vmem>>, %arg20: memref<8x32xbf16, #tpu.memory_space<vmem>>) attributes {dimension_semantics = [#tpu.dimension_semantics<parallel>, #tpu.dimension_semantics<arbitrary>], iteration_bounds = array<i64: 2, 1>, scalar_prefetch = 0 : i64, scratch_operands = 3 : i64, tpu.core_type = #tpu.core_type<tc>, window_params = [{transform_indices = @transform_0, window_bounds = array<i64: 1, 8, 32>}, {pipeline_mode = #tpu.pipeline_mode<synchronous>, transform_indices = @transform_1, window_bounds = array<i64: 32, 32>}, {pipeline_mode = #tpu.pipeline_mode<synchronous>, transform_indices = @transform_2, window_bounds = array<i64: 1, 32>}, {pipeline_mode = #tpu.pipeline_mode<synchronous>, transform_indices = @transform_3, window_bounds = array<i64: 32, 64>}, {pipeline_mode = #tpu.pipeline_mode<synchronous>, transform_indices = @transform_4, window_bounds = array<i64: 1, 64>}, {pipeline_mode = #tpu.pipeline_mode<synchronous>, transform_indices = @transform_5, window_bounds = array<i64: 32, 32>}, {pipeline_mode = #tpu.pipeline_mode<synchronous>, transform_indices = @transform_6, window_bounds = array<i64: 1, 32>}, {pipeline_mode = #tpu.pipeline_mode<synchronous>, transform_indices = @transform_7, window_bounds = array<i64: 32, 64>}, {pipeline_mode = #tpu.pipeline_mode<synchronous>, transform_indices = @transform_8, window_bounds = array<i64: 1, 64>}, {pipeline_mode = #tpu.pipeline_mode<synchronous>, transform_indices = @transform_9, window_bounds = array<i64: 64, 32>}, {pipeline_mode = #tpu.pipeline_mode<synchronous>, transform_indices = @transform_10, window_bounds = array<i64: 1, 32>}, {pipeline_mode = #tpu.pipeline_mode<synchronous>, transform_indices = @transform_11, window_bounds = array<i64: 1, 32>}, {pipeline_mode = #tpu.pipeline_mode<synchronous>, transform_indices = @transform_12, window_bounds = array<i64: 1, 32>}, {pipeline_mode = #tpu.pipeline_mode<synchronous>, transform_indices = @transform_13, window_bounds = array<i64: 1, 32>}, {pipeline_mode = #tpu.pipeline_mode<synchronous>, transform_indices = @transform_14, window_bounds = array<i64: 1, 32>}, {transform_indices = @transform_15, window_bounds = array<i64: 1, 8, 32>}]} {
    %c0_i32 = arith.constant 0 : i32
    %0 = arith.cmpi eq, %arg1, %c0_i32 : i32
    %1 = arith.extui %0 : i1 to i32
    %c0_i32_0 = arith.constant 0 : i32
    %2 = arith.cmpi ne, %1, %c0_i32_0 : i32
    scf.if %2 {
      %c0_70 = arith.constant 0 : index
      %c0_71 = arith.constant 0 : index
      %c0_72 = arith.constant 0 : index
      %162 = vector.load %arg2[%c0_70, %c0_71, %c0_72] : memref<1x8x32xf32, #tpu.memory_space<vmem>>, vector<1x8x32xf32>
      %163 = vector.shape_cast %162 : vector<1x8x32xf32> to vector<8x32xf32>
      %164 = arith.truncf %163 : vector<8x32xf32> to vector<8x32xbf16>
      %c0_73 = arith.constant 0 : index
      %c0_74 = arith.constant 0 : index
      %165 = vector.load %arg5[%c0_73, %c0_74] : memref<32x64xbf16, #tpu.memory_space<vmem>>, vector<32x64xbf16>
      %cst_75 = arith.constant dense<0.000000e+00> : vector<8x64xf32>
      %166 = tpu.matmul %164, %165, %cst_75 {dimension_numbers = #tpu.dot_dimension_numbers<[1], [0], [0], [1], [0, 0, 1, 1], [], []>} : vector<8x32xbf16>, vector<32x64xbf16>, vector<8x64xf32> -> vector<8x64xf32>
      %c0_76 = arith.constant 0 : index
      %c0_77 = arith.constant 0 : index
      %167 = vector.load %arg6[%c0_76, %c0_77] : memref<1x64xf32, #tpu.memory_space<vmem>>, vector<1x64xf32>
      %168 = vector.broadcast %167 : vector<1x64xf32> to vector<8x64xf32>
      %169 = arith.addf %166, %168 : vector<8x64xf32>
      %170 = arith.truncf %169 : vector<8x64xf32> to vector<8x64xbf16>
      %171 = vector.extract_strided_slice %170 {offsets = [0, 0], sizes = [8, 32], strides = [1, 1]} : vector<8x64xbf16> to vector<8x32xbf16>
      %c0_78 = arith.constant 0 : index
      %c0_79 = arith.constant 0 : index
      %172 = vector.load %arg18[%c0_78, %c0_79] : memref<8x32xbf16, #tpu.memory_space<vmem>>, vector<8x32xbf16>
      tpu.vector_store %arg18[%c0_78, %c0_79], %171 {strides = array<i32>} : memref<8x32xbf16, #tpu.memory_space<vmem>>, vector<8x32xbf16>,
      %173 = vector.extract_strided_slice %170 {offsets = [0, 32], sizes = [8, 32], strides = [1, 1]} : vector<8x64xbf16> to vector<8x32xbf16>
      %c0_80 = arith.constant 0 : index
      %c0_81 = arith.constant 0 : index
      %174 = vector.load %arg19[%c0_80, %c0_81] : memref<8x32xbf16, #tpu.memory_space<vmem>>, vector<8x32xbf16>
      tpu.vector_store %arg19[%c0_80, %c0_81], %173 {strides = array<i32>} : memref<8x32xbf16, #tpu.memory_space<vmem>>, vector<8x32xbf16>,
    } else {
    }
    %c8_i32 = arith.constant 8 : i32
    %3 = arith.muli %arg1, %c8_i32 : i32
    %4 = tpu.assume_multiple %3, 8 : i32
    %c0 = arith.constant 0 : index
    %5 = arith.index_cast %4 : i32 to index
    %c0_1 = arith.constant 0 : index
    %6 = vector.load %arg2[%c0, %5, %c0_1] : memref<1x8x32xf32, #tpu.memory_space<vmem>>, vector<1x8x32xf32>
    %7 = vector.shape_cast %6 : vector<1x8x32xf32> to vector<8x32xf32>
    %8 = arith.truncf %7 : vector<8x32xf32> to vector<8x32xbf16>
    %c0_2 = arith.constant 0 : index
    %c0_3 = arith.constant 0 : index
    %9 = vector.load %arg3[%c0_2, %c0_3] : memref<32x32xbf16, #tpu.memory_space<vmem>>, vector<32x32xbf16>
    %cst = arith.constant dense<0.000000e+00> : vector<8x32xf32>
    %10 = tpu.matmul %8, %9, %cst {dimension_numbers = #tpu.dot_dimension_numbers<[1], [0], [0], [1], [0, 0, 1, 1], [], []>} : vector<8x32xbf16>, vector<32x32xbf16>, vector<8x32xf32> -> vector<8x32xf32>
    %c0_4 = arith.constant 0 : index
    %c0_5 = arith.constant 0 : index
    %11 = vector.load %arg4[%c0_4, %c0_5] : memref<1x32xf32, #tpu.memory_space<vmem>>, vector<1x32xf32>
    %12 = vector.broadcast %11 : vector<1x32xf32> to vector<8x32xf32>
    %13 = arith.addf %10, %12 : vector<8x32xf32>
    %14 = arith.truncf %13 : vector<8x32xf32> to vector<8x32xbf16>
    %c0_6 = arith.constant 0 : index
    %c0_7 = arith.constant 0 : index
    %15 = vector.load %arg18[%c0_6, %c0_7] : memref<8x32xbf16, #tpu.memory_space<vmem>>, vector<8x32xbf16>
    %c0_8 = arith.constant 0 : index
    %c0_9 = arith.constant 0 : index
    %16 = vector.load %arg19[%c0_8, %c0_9] : memref<8x32xbf16, #tpu.memory_space<vmem>>, vector<8x32xbf16>
    %17 = vector.extract_strided_slice %14 {offsets = [0, 0], sizes = [8, 8], strides = [1, 1]} : vector<8x32xbf16> to vector<8x8xbf16>
    %18 = vector.extract_strided_slice %15 {offsets = [0, 0], sizes = [8, 8], strides = [1, 1]} : vector<8x32xbf16> to vector<8x8xbf16>
    %cst_10 = arith.constant dense<0.000000e+00> : vector<8x8xf32>
    %19 = tpu.matmul %17, %18, %cst_10 {dimension_numbers = #tpu.dot_dimension_numbers<[1], [1], [0], [0], [0, 0, 1, 0], [], []>} : vector<8x8xbf16>, vector<8x8xbf16>, vector<8x8xf32> -> vector<8x8xf32>
    %cst_11 = arith.constant dense<0xFF800000> : vector<8xf32>
    %20 = vector.multi_reduction <maximumf>, %19, %cst_11 [1] : vector<8x8xf32> to vector<8xf32>
    %21 = vector.shape_cast %20 : vector<8xf32> to vector<8x1xf32>
    %22 = vector.broadcast %21 : vector<8x1xf32> to vector<8x8xf32>
    %23 = arith.subf %19, %22 : vector<8x8xf32>
    %24 = math.exp %23 : vector<8x8xf32>
    %cst_12 = arith.constant dense<0.000000e+00> : vector<8xf32>
    %25 = vector.multi_reduction <add>, %24, %cst_12 [1] : vector<8x8xf32> to vector<8xf32>
    %26 = vector.shape_cast %25 : vector<8xf32> to vector<8x1xf32>
    %27 = tpu.reciprocal %26 {approx = true} : vector<8x1xf32> -> vector<8x1xf32>
    %28 = vector.broadcast %27 : vector<8x1xf32> to vector<8x8xf32>
    %29 = arith.mulf %24, %28 : vector<8x8xf32>
    %30 = arith.truncf %29 : vector<8x8xf32> to vector<8x8xbf16>
    %31 = vector.extract_strided_slice %16 {offsets = [0, 0], sizes = [8, 8], strides = [1, 1]} : vector<8x32xbf16> to vector<8x8xbf16>
    %cst_13 = arith.constant dense<0.000000e+00> : vector<8x8xf32>
    %32 = tpu.matmul %30, %31, %cst_13 {dimension_numbers = #tpu.dot_dimension_numbers<[1], [0], [0], [1], [0, 0, 1, 1], [], []>} : vector<8x8xbf16>, vector<8x8xbf16>, vector<8x8xf32> -> vector<8x8xf32>
    %33 = arith.truncf %32 : vector<8x8xf32> to vector<8x8xbf16>
    %c0_14 = arith.constant 0 : index
    %c0_15 = arith.constant 0 : index
    %34 = vector.load %arg20[%c0_14, %c0_15] : memref<8x32xbf16, #tpu.memory_space<vmem>>, vector<8x8xbf16>
    tpu.vector_store %arg20[%c0_14, %c0_15], %33 {strides = array<i32>} : memref<8x32xbf16, #tpu.memory_space<vmem>>, vector<8x8xbf16>,
    %35 = vector.extract_strided_slice %14 {offsets = [0, 8], sizes = [8, 8], strides = [1, 1]} : vector<8x32xbf16> to vector<8x8xbf16>
    %36 = vector.extract_strided_slice %15 {offsets = [0, 8], sizes = [8, 8], strides = [1, 1]} : vector<8x32xbf16> to vector<8x8xbf16>
    %cst_16 = arith.constant dense<0.000000e+00> : vector<8x8xf32>
    %37 = tpu.matmul %35, %36, %cst_16 {dimension_numbers = #tpu.dot_dimension_numbers<[1], [1], [0], [0], [0, 0, 1, 0], [], []>} : vector<8x8xbf16>, vector<8x8xbf16>, vector<8x8xf32> -> vector<8x8xf32>
    %cst_17 = arith.constant dense<0xFF800000> : vector<8xf32>
    %38 = vector.multi_reduction <maximumf>, %37, %cst_17 [1] : vector<8x8xf32> to vector<8xf32>
    %39 = vector.shape_cast %38 : vector<8xf32> to vector<8x1xf32>
    %40 = vector.broadcast %39 : vector<8x1xf32> to vector<8x8xf32>
    %41 = arith.subf %37, %40 : vector<8x8xf32>
    %42 = math.exp %41 : vector<8x8xf32>
    %cst_18 = arith.constant dense<0.000000e+00> : vector<8xf32>
    %43 = vector.multi_reduction <add>, %42, %cst_18 [1] : vector<8x8xf32> to vector<8xf32>
    %44 = vector.shape_cast %43 : vector<8xf32> to vector<8x1xf32>
    %45 = tpu.reciprocal %44 {approx = true} : vector<8x1xf32> -> vector<8x1xf32>
    %46 = vector.broadcast %45 : vector<8x1xf32> to vector<8x8xf32>
    %47 = arith.mulf %42, %46 : vector<8x8xf32>
    %48 = arith.truncf %47 : vector<8x8xf32> to vector<8x8xbf16>
    %49 = vector.extract_strided_slice %16 {offsets = [0, 8], sizes = [8, 8], strides = [1, 1]} : vector<8x32xbf16> to vector<8x8xbf16>
    %cst_19 = arith.constant dense<0.000000e+00> : vector<8x8xf32>
    %50 = tpu.matmul %48, %49, %cst_19 {dimension_numbers = #tpu.dot_dimension_numbers<[1], [0], [0], [1], [0, 0, 1, 1], [], []>} : vector<8x8xbf16>, vector<8x8xbf16>, vector<8x8xf32> -> vector<8x8xf32>
    %51 = arith.truncf %50 : vector<8x8xf32> to vector<8x8xbf16>
    %c0_20 = arith.constant 0 : index
    %c8 = arith.constant 8 : index
    %52 = vector.load %arg20[%c0_20, %c8] : memref<8x32xbf16, #tpu.memory_space<vmem>>, vector<8x8xbf16>
    tpu.vector_store %arg20[%c0_20, %c8], %51 {strides = array<i32>} : memref<8x32xbf16, #tpu.memory_space<vmem>>, vector<8x8xbf16>,
    %53 = vector.extract_strided_slice %14 {offsets = [0, 16], sizes = [8, 8], strides = [1, 1]} : vector<8x32xbf16> to vector<8x8xbf16>
    %54 = vector.extract_strided_slice %15 {offsets = [0, 16], sizes = [8, 8], strides = [1, 1]} : vector<8x32xbf16> to vector<8x8xbf16>
    %cst_21 = arith.constant dense<0.000000e+00> : vector<8x8xf32>
    %55 = tpu.matmul %53, %54, %cst_21 {dimension_numbers = #tpu.dot_dimension_numbers<[1], [1], [0], [0], [0, 0, 1, 0], [], []>} : vector<8x8xbf16>, vector<8x8xbf16>, vector<8x8xf32> -> vector<8x8xf32>
    %cst_22 = arith.constant dense<0xFF800000> : vector<8xf32>
    %56 = vector.multi_reduction <maximumf>, %55, %cst_22 [1] : vector<8x8xf32> to vector<8xf32>
    %57 = vector.shape_cast %56 : vector<8xf32> to vector<8x1xf32>
    %58 = vector.broadcast %57 : vector<8x1xf32> to vector<8x8xf32>
    %59 = arith.subf %55, %58 : vector<8x8xf32>
    %60 = math.exp %59 : vector<8x8xf32>
    %cst_23 = arith.constant dense<0.000000e+00> : vector<8xf32>
    %61 = vector.multi_reduction <add>, %60, %cst_23 [1] : vector<8x8xf32> to vector<8xf32>
    %62 = vector.shape_cast %61 : vector<8xf32> to vector<8x1xf32>
    %63 = tpu.reciprocal %62 {approx = true} : vector<8x1xf32> -> vector<8x1xf32>
    %64 = vector.broadcast %63 : vector<8x1xf32> to vector<8x8xf32>
    %65 = arith.mulf %60, %64 : vector<8x8xf32>
    %66 = arith.truncf %65 : vector<8x8xf32> to vector<8x8xbf16>
    %67 = vector.extract_strided_slice %16 {offsets = [0, 16], sizes = [8, 8], strides = [1, 1]} : vector<8x32xbf16> to vector<8x8xbf16>
    %cst_24 = arith.constant dense<0.000000e+00> : vector<8x8xf32>
    %68 = tpu.matmul %66, %67, %cst_24 {dimension_numbers = #tpu.dot_dimension_numbers<[1], [0], [0], [1], [0, 0, 1, 1], [], []>} : vector<8x8xbf16>, vector<8x8xbf16>, vector<8x8xf32> -> vector<8x8xf32>
    %69 = arith.truncf %68 : vector<8x8xf32> to vector<8x8xbf16>
    %c0_25 = arith.constant 0 : index
    %c16 = arith.constant 16 : index
    %70 = vector.load %arg20[%c0_25, %c16] : memref<8x32xbf16, #tpu.memory_space<vmem>>, vector<8x8xbf16>
    tpu.vector_store %arg20[%c0_25, %c16], %69 {strides = array<i32>} : memref<8x32xbf16, #tpu.memory_space<vmem>>, vector<8x8xbf16>,
    %71 = vector.extract_strided_slice %14 {offsets = [0, 24], sizes = [8, 8], strides = [1, 1]} : vector<8x32xbf16> to vector<8x8xbf16>
    %72 = vector.extract_strided_slice %15 {offsets = [0, 24], sizes = [8, 8], strides = [1, 1]} : vector<8x32xbf16> to vector<8x8xbf16>
    %cst_26 = arith.constant dense<0.000000e+00> : vector<8x8xf32>
    %73 = tpu.matmul %71, %72, %cst_26 {dimension_numbers = #tpu.dot_dimension_numbers<[1], [1], [0], [0], [0, 0, 1, 0], [], []>} : vector<8x8xbf16>, vector<8x8xbf16>, vector<8x8xf32> -> vector<8x8xf32>
    %cst_27 = arith.constant dense<0xFF800000> : vector<8xf32>
    %74 = vector.multi_reduction <maximumf>, %73, %cst_27 [1] : vector<8x8xf32> to vector<8xf32>
    %75 = vector.shape_cast %74 : vector<8xf32> to vector<8x1xf32>
    %76 = vector.broadcast %75 : vector<8x1xf32> to vector<8x8xf32>
    %77 = arith.subf %73, %76 : vector<8x8xf32>
    %78 = math.exp %77 : vector<8x8xf32>
    %cst_28 = arith.constant dense<0.000000e+00> : vector<8xf32>
    %79 = vector.multi_reduction <add>, %78, %cst_28 [1] : vector<8x8xf32> to vector<8xf32>
    %80 = vector.shape_cast %79 : vector<8xf32> to vector<8x1xf32>
    %81 = tpu.reciprocal %80 {approx = true} : vector<8x1xf32> -> vector<8x1xf32>
    %82 = vector.broadcast %81 : vector<8x1xf32> to vector<8x8xf32>
    %83 = arith.mulf %78, %82 : vector<8x8xf32>
    %84 = arith.truncf %83 : vector<8x8xf32> to vector<8x8xbf16>
    %85 = vector.extract_strided_slice %16 {offsets = [0, 24], sizes = [8, 8], strides = [1, 1]} : vector<8x32xbf16> to vector<8x8xbf16>
    %cst_29 = arith.constant dense<0.000000e+00> : vector<8x8xf32>
    %86 = tpu.matmul %84, %85, %cst_29 {dimension_numbers = #tpu.dot_dimension_numbers<[1], [0], [0], [1], [0, 0, 1, 1], [], []>} : vector<8x8xbf16>, vector<8x8xbf16>, vector<8x8xf32> -> vector<8x8xf32>
    %87 = arith.truncf %86 : vector<8x8xf32> to vector<8x8xbf16>
    %c0_30 = arith.constant 0 : index
    %c24 = arith.constant 24 : index
    %88 = vector.load %arg20[%c0_30, %c24] : memref<8x32xbf16, #tpu.memory_space<vmem>>, vector<8x8xbf16>
    tpu.vector_store %arg20[%c0_30, %c24], %87 {strides = array<i32>} : memref<8x32xbf16, #tpu.memory_space<vmem>>, vector<8x8xbf16>,
    %c0_31 = arith.constant 0 : index
    %c0_32 = arith.constant 0 : index
    %89 = vector.load %arg20[%c0_31, %c0_32] : memref<8x32xbf16, #tpu.memory_space<vmem>>, vector<8x32xbf16>
    %c0_33 = arith.constant 0 : index
    %c0_34 = arith.constant 0 : index
    %90 = vector.load %arg7[%c0_33, %c0_34] : memref<32x32xbf16, #tpu.memory_space<vmem>>, vector<32x32xbf16>
    %cst_35 = arith.constant dense<0.000000e+00> : vector<8x32xf32>
    %91 = tpu.matmul %89, %90, %cst_35 {dimension_numbers = #tpu.dot_dimension_numbers<[1], [0], [0], [1], [0, 0, 1, 1], [], []>} : vector<8x32xbf16>, vector<32x32xbf16>, vector<8x32xf32> -> vector<8x32xf32>
    %c0_36 = arith.constant 0 : index
    %c0_37 = arith.constant 0 : index
    %92 = vector.load %arg8[%c0_36, %c0_37] : memref<1x32xf32, #tpu.memory_space<vmem>>, vector<1x32xf32>
    %93 = vector.broadcast %92 : vector<1x32xf32> to vector<8x32xf32>
    %94 = arith.addf %91, %93 : vector<8x32xf32>
    %95 = arith.addf %94, %7 : vector<8x32xf32>
    %c0_38 = arith.constant 0 : index
    %c0_39 = arith.constant 0 : index
    %96 = vector.load %arg13[%c0_38, %c0_39] : memref<1x32xf32, #tpu.memory_space<vmem>>, vector<1x32xf32>
    %c0_40 = arith.constant 0 : index
    %c0_41 = arith.constant 0 : index
    %97 = vector.load %arg14[%c0_40, %c0_41] : memref<1x32xf32, #tpu.memory_space<vmem>>, vector<1x32xf32>
    %cst_42 = arith.constant dense<0.000000e+00> : vector<8xf32>
    %98 = vector.multi_reduction <add>, %95, %cst_42 [1] : vector<8x32xf32> to vector<8xf32>
    %99 = vector.shape_cast %98 : vector<8xf32> to vector<8x1xf32>
    %cst_43 = arith.constant 3.200000e+01 : f32
    %100 = vector.broadcast %cst_43 : f32 to vector<8x1xf32>
    %101 = arith.divf %99, %100 : vector<8x1xf32>
    %102 = vector.broadcast %101 : vector<8x1xf32> to vector<8x32xf32>
    %103 = arith.subf %95, %102 : vector<8x32xf32>
    %104 = arith.mulf %103, %103 : vector<8x32xf32>
    %cst_44 = arith.constant dense<0.000000e+00> : vector<8xf32>
    %105 = vector.multi_reduction <add>, %104, %cst_44 [1] : vector<8x32xf32> to vector<8xf32>
    %106 = vector.shape_cast %105 : vector<8xf32> to vector<8x1xf32>
    %cst_45 = arith.constant 3.200000e+01 : f32
    %107 = vector.broadcast %cst_45 : f32 to vector<8x1xf32>
    %108 = arith.divf %106, %107 : vector<8x1xf32>
    %109 = vector.broadcast %101 : vector<8x1xf32> to vector<8x32xf32>
    %110 = arith.subf %95, %109 : vector<8x32xf32>
    %cst_46 = arith.constant 9.99999974E-6 : f32
    %111 = vector.broadcast %cst_46 : f32 to vector<8x1xf32>
    %112 = arith.addf %108, %111 : vector<8x1xf32>
    %113 = math.rsqrt %112 : vector<8x1xf32>
    %114 = vector.broadcast %113 : vector<8x1xf32> to vector<8x32xf32>
    %115 = arith.mulf %110, %114 : vector<8x32xf32>
    %116 = vector.broadcast %96 : vector<1x32xf32> to vector<8x32xf32>
    %117 = arith.mulf %115, %116 : vector<8x32xf32>
    %118 = vector.broadcast %97 : vector<1x32xf32> to vector<8x32xf32>
    %119 = arith.addf %117, %118 : vector<8x32xf32>
    %120 = arith.truncf %119 : vector<8x32xf32> to vector<8x32xbf16>
    %c0_47 = arith.constant 0 : index
    %c0_48 = arith.constant 0 : index
    %121 = vector.load %arg9[%c0_47, %c0_48] : memref<32x64xbf16, #tpu.memory_space<vmem>>, vector<32x64xbf16>
    %cst_49 = arith.constant dense<0.000000e+00> : vector<8x64xf32>
    %122 = tpu.matmul %120, %121, %cst_49 {dimension_numbers = #tpu.dot_dimension_numbers<[1], [0], [0], [1], [0, 0, 1, 1], [], []>} : vector<8x32xbf16>, vector<32x64xbf16>, vector<8x64xf32> -> vector<8x64xf32>
    %c0_50 = arith.constant 0 : index
    %c0_51 = arith.constant 0 : index
    %123 = vector.load %arg10[%c0_50, %c0_51] : memref<1x64xf32, #tpu.memory_space<vmem>>, vector<1x64xf32>
    %124 = vector.broadcast %123 : vector<1x64xf32> to vector<8x64xf32>
    %125 = arith.addf %122, %124 : vector<8x64xf32>
    %cst_52 = arith.constant 0.000000e+00 : f32
    %126 = vector.broadcast %cst_52 : f32 to vector<8x64xf32>
    %127 = arith.maximumf %125, %126 : vector<8x64xf32>
    %128 = arith.truncf %127 : vector<8x64xf32> to vector<8x64xbf16>
    %c0_53 = arith.constant 0 : index
    %c0_54 = arith.constant 0 : index
    %129 = vector.load %arg11[%c0_53, %c0_54] : memref<64x32xbf16, #tpu.memory_space<vmem>>, vector<64x32xbf16>
    %cst_55 = arith.constant dense<0.000000e+00> : vector<8x32xf32>
    %130 = tpu.matmul %128, %129, %cst_55 {dimension_numbers = #tpu.dot_dimension_numbers<[1], [0], [0], [1], [0, 0, 1, 1], [], []>} : vector<8x64xbf16>, vector<64x32xbf16>, vector<8x32xf32> -> vector<8x32xf32>
    %c0_56 = arith.constant 0 : index
    %c0_57 = arith.constant 0 : index
    %131 = vector.load %arg12[%c0_56, %c0_57] : memref<1x32xf32, #tpu.memory_space<vmem>>, vector<1x32xf32>
    %132 = vector.broadcast %131 : vector<1x32xf32> to vector<8x32xf32>
    %133 = arith.addf %130, %132 : vector<8x32xf32>
    %134 = arith.addf %133, %119 : vector<8x32xf32>
    %c0_58 = arith.constant 0 : index
    %c0_59 = arith.constant 0 : index
    %135 = vector.load %arg15[%c0_58, %c0_59] : memref<1x32xf32, #tpu.memory_space<vmem>>, vector<1x32xf32>
    %c0_60 = arith.constant 0 : index
    %c0_61 = arith.constant 0 : index
    %136 = vector.load %arg16[%c0_60, %c0_61] : memref<1x32xf32, #tpu.memory_space<vmem>>, vector<1x32xf32>
    %cst_62 = arith.constant dense<0.000000e+00> : vector<8xf32>
    %137 = vector.multi_reduction <add>, %134, %cst_62 [1] : vector<8x32xf32> to vector<8xf32>
    %138 = vector.shape_cast %137 : vector<8xf32> to vector<8x1xf32>
    %cst_63 = arith.constant 3.200000e+01 : f32
    %139 = vector.broadcast %cst_63 : f32 to vector<8x1xf32>
    %140 = arith.divf %138, %139 : vector<8x1xf32>
    %141 = vector.broadcast %140 : vector<8x1xf32> to vector<8x32xf32>
    %142 = arith.subf %134, %141 : vector<8x32xf32>
    %143 = arith.mulf %142, %142 : vector<8x32xf32>
    %cst_64 = arith.constant dense<0.000000e+00> : vector<8xf32>
    %144 = vector.multi_reduction <add>, %143, %cst_64 [1] : vector<8x32xf32> to vector<8xf32>
    %145 = vector.shape_cast %144 : vector<8xf32> to vector<8x1xf32>
    %cst_65 = arith.constant 3.200000e+01 : f32
    %146 = vector.broadcast %cst_65 : f32 to vector<8x1xf32>
    %147 = arith.divf %145, %146 : vector<8x1xf32>
    %148 = vector.broadcast %140 : vector<8x1xf32> to vector<8x32xf32>
    %149 = arith.subf %134, %148 : vector<8x32xf32>
    %cst_66 = arith.constant 9.99999974E-6 : f32
    %150 = vector.broadcast %cst_66 : f32 to vector<8x1xf32>
    %151 = arith.addf %147, %150 : vector<8x1xf32>
    %152 = math.rsqrt %151 : vector<8x1xf32>
    %153 = vector.broadcast %152 : vector<8x1xf32> to vector<8x32xf32>
    %154 = arith.mulf %149, %153 : vector<8x32xf32>
    %155 = vector.broadcast %135 : vector<1x32xf32> to vector<8x32xf32>
    %156 = arith.mulf %154, %155 : vector<8x32xf32>
    %157 = vector.broadcast %136 : vector<1x32xf32> to vector<8x32xf32>
    %158 = arith.addf %156, %157 : vector<8x32xf32>
    %c0_67 = arith.constant 0 : index
    %c0_68 = arith.constant 0 : index
    %c0_69 = arith.constant 0 : index
    %159 = vector.load %arg17[%c0_67, %c0_68, %c0_69] : memref<1x8x32xf32, #tpu.memory_space<vmem>>, vector<1x8x32xf32>
    %160 = vector.shape_cast %159 : vector<1x8x32xf32> to vector<8x32xf32>
    %161 = vector.shape_cast %158 : vector<8x32xf32> to vector<1x8x32xf32>
    tpu.vector_store %arg17[%c0_67, %c0_68, %c0_69], %161 {strides = array<i32>} : memref<1x8x32xf32, #tpu.memory_space<vmem>>, vector<1x8x32xf32>,
    return
  }
  func.func @transform_0(%arg0: i32, %arg1: i32) -> (i32, i32, i32) {
    %c0_i32 = arith.constant 0 : i32
    %c0_i32_0 = arith.constant 0 : i32
    %c0_i32_1 = arith.constant 0 : i32
    return %arg0, %c0_i32, %c0_i32_0 : i32, i32, i32
  }
  func.func @transform_1(%arg0: i32, %arg1: i32) -> (i32, i32) {
    %c0_i32 = arith.constant 0 : i32
    %c0_i32_0 = arith.constant 0 : i32
    %c0_i32_1 = arith.constant 0 : i32
    return %c0_i32, %c0_i32_0 : i32, i32
  }
  func.func @transform_2(%arg0: i32, %arg1: i32) -> (i32, i32) {
    %c0_i32 = arith.constant 0 : i32
    %c0_i32_0 = arith.constant 0 : i32
    %c0_i32_1 = arith.constant 0 : i32
    return %c0_i32, %c0_i32_0 : i32, i32
  }
  func.func @transform_3(%arg0: i32, %arg1: i32) -> (i32, i32) {
    %c0_i32 = arith.constant 0 : i32
    %c0_i32_0 = arith.constant 0 : i32
    %c0_i32_1 = arith.constant 0 : i32
    return %c0_i32, %c0_i32_0 : i32, i32
  }
  func.func @transform_4(%arg0: i32, %arg1: i32) -> (i32, i32) {
    %c0_i32 = arith.constant 0 : i32
    %c0_i32_0 = arith.constant 0 : i32
    %c0_i32_1 = arith.constant 0 : i32
    return %c0_i32, %c0_i32_0 : i32, i32
  }
  func.func @transform_5(%arg0: i32, %arg1: i32) -> (i32, i32) {
    %c0_i32 = arith.constant 0 : i32
    %c0_i32_0 = arith.constant 0 : i32
    %c0_i32_1 = arith.constant 0 : i32
    return %c0_i32, %c0_i32_0 : i32, i32
  }
  func.func @transform_6(%arg0: i32, %arg1: i32) -> (i32, i32) {
    %c0_i32 = arith.constant 0 : i32
    %c0_i32_0 = arith.constant 0 : i32
    %c0_i32_1 = arith.constant 0 : i32
    return %c0_i32, %c0_i32_0 : i32, i32
  }
  func.func @transform_7(%arg0: i32, %arg1: i32) -> (i32, i32) {
    %c0_i32 = arith.constant 0 : i32
    %c0_i32_0 = arith.constant 0 : i32
    %c0_i32_1 = arith.constant 0 : i32
    return %c0_i32, %c0_i32_0 : i32, i32
  }
  func.func @transform_8(%arg0: i32, %arg1: i32) -> (i32, i32) {
    %c0_i32 = arith.constant 0 : i32
    %c0_i32_0 = arith.constant 0 : i32
    %c0_i32_1 = arith.constant 0 : i32
    return %c0_i32, %c0_i32_0 : i32, i32
  }
  func.func @transform_9(%arg0: i32, %arg1: i32) -> (i32, i32) {
    %c0_i32 = arith.constant 0 : i32
    %c0_i32_0 = arith.constant 0 : i32
    %c0_i32_1 = arith.constant 0 : i32
    return %c0_i32, %c0_i32_0 : i32, i32
  }
  func.func @transform_10(%arg0: i32, %arg1: i32) -> (i32, i32) {
    %c0_i32 = arith.constant 0 : i32
    %c0_i32_0 = arith.constant 0 : i32
    %c0_i32_1 = arith.constant 0 : i32
    return %c0_i32, %c0_i32_0 : i32, i32
  }
  func.func @transform_11(%arg0: i32, %arg1: i32) -> (i32, i32) {
    %c0_i32 = arith.constant 0 : i32
    %c0_i32_0 = arith.constant 0 : i32
    %c0_i32_1 = arith.constant 0 : i32
    return %c0_i32, %c0_i32_0 : i32, i32
  }
  func.func @transform_12(%arg0: i32, %arg1: i32) -> (i32, i32) {
    %c0_i32 = arith.constant 0 : i32
    %c0_i32_0 = arith.constant 0 : i32
    %c0_i32_1 = arith.constant 0 : i32
    return %c0_i32, %c0_i32_0 : i32, i32
  }
  func.func @transform_13(%arg0: i32, %arg1: i32) -> (i32, i32) {
    %c0_i32 = arith.constant 0 : i32
    %c0_i32_0 = arith.constant 0 : i32
    %c0_i32_1 = arith.constant 0 : i32
    return %c0_i32, %c0_i32_0 : i32, i32
  }
  func.func @transform_14(%arg0: i32, %arg1: i32) -> (i32, i32) {
    %c0_i32 = arith.constant 0 : i32
    %c0_i32_0 = arith.constant 0 : i32
    %c0_i32_1 = arith.constant 0 : i32
    return %c0_i32, %c0_i32_0 : i32, i32
  }
  func.func @transform_15(%arg0: i32, %arg1: i32) -> (i32, i32, i32) {
    %c0_i32 = arith.constant 0 : i32
    %c0_i32_0 = arith.constant 0 : i32
    return %arg0, %arg1, %c0_i32 : i32, i32, i32
  }
}

module attributes {stable_mosaic.version = 11 : i64} {
  func.func @_encoder_layer_kernel(%arg0: i32, %arg1: i32, %arg2: memref<1x8x32xf32, #tpu.memory_space<vmem>>, %arg3: memref<32x32xbf16, #tpu.memory_space<vmem>>, %arg4: memref<1x32xf32, #tpu.memory_space<vmem>>, %arg5: memref<32x64xbf16, #tpu.memory_space<vmem>>, %arg6: memref<1x64xf32, #tpu.memory_space<vmem>>, %arg7: memref<32x32xbf16, #tpu.memory_space<vmem>>, %arg8: memref<1x32xf32, #tpu.memory_space<vmem>>, %arg9: memref<32x64xbf16, #tpu.memory_space<vmem>>, %arg10: memref<1x64xf32, #tpu.memory_space<vmem>>, %arg11: memref<64x32xbf16, #tpu.memory_space<vmem>>, %arg12: memref<1x32xf32, #tpu.memory_space<vmem>>, %arg13: memref<1x32xf32, #tpu.memory_space<vmem>>, %arg14: memref<1x32xf32, #tpu.memory_space<vmem>>, %arg15: memref<1x32xf32, #tpu.memory_space<vmem>>, %arg16: memref<1x32xf32, #tpu.memory_space<vmem>>, %arg17: memref<1x8x32xf32, #tpu.memory_space<vmem>>, %arg18: memref<8x32xbf16, #tpu.memory_space<vmem>>, %arg19: memref<8x32xbf16, #tpu.memory_space<vmem>>, %arg20: memref<8x32xbf16, #tpu.memory_space<vmem>>) attributes {dimension_semantics = [#tpu.dimension_semantics<parallel>, #tpu.dimension_semantics<arbitrary>], iteration_bounds = array<i64: 2, 1>, scalar_prefetch = 0 : i64, scratch_operands = 3 : i64, tpu.core_type = #tpu.core_type<tc>, window_params = [{transform_indices = @transform_0, window_bounds = array<i64: 1, 8, 32>}, {pipeline_mode = #tpu.pipeline_mode<synchronous>, transform_indices = @transform_1, window_bounds = array<i64: 32, 32>}, {pipeline_mode = #tpu.pipeline_mode<synchronous>, transform_indices = @transform_2, window_bounds = array<i64: 1, 32>}, {pipeline_mode = #tpu.pipeline_mode<synchronous>, transform_indices = @transform_3, window_bounds = array<i64: 32, 64>}, {pipeline_mode = #tpu.pipeline_mode<synchronous>, transform_indices = @transform_4, window_bounds = array<i64: 1, 64>}, {pipeline_mode = #tpu.pipeline_mode<synchronous>, transform_indices = @transform_5, window_bounds = array<i64: 32, 32>}, {pipeline_mode = #tpu.pipeline_mode<synchronous>, transform_indices = @transform_6, window_bounds = array<i64: 1, 32>}, {pipeline_mode = #tpu.pipeline_mode<synchronous>, transform_indices = @transform_7, window_bounds = array<i64: 32, 64>}, {pipeline_mode = #tpu.pipeline_mode<synchronous>, transform_indices = @transform_8, window_bounds = array<i64: 1, 64>}, {pipeline_mode = #tpu.pipeline_mode<synchronous>, transform_indices = @transform_9, window_bounds = array<i64: 64, 32>}, {pipeline_mode = #tpu.pipeline_mode<synchronous>, transform_indices = @transform_10, window_bounds = array<i64: 1, 32>}, {pipeline_mode = #tpu.pipeline_mode<synchronous>, transform_indices = @transform_11, window_bounds = array<i64: 1, 32>}, {pipeline_mode = #tpu.pipeline_mode<synchronous>, transform_indices = @transform_12, window_bounds = array<i64: 1, 32>}, {pipeline_mode = #tpu.pipeline_mode<synchronous>, transform_indices = @transform_13, window_bounds = array<i64: 1, 32>}, {pipeline_mode = #tpu.pipeline_mode<synchronous>, transform_indices = @transform_14, window_bounds = array<i64: 1, 32>}, {transform_indices = @transform_15, window_bounds = array<i64: 1, 8, 32>}]} {
    %c0_i32 = arith.constant 0 : i32
    %0 = arith.cmpi eq, %arg1, %c0_i32 : i32
    %1 = arith.extui %0 : i1 to i32
    %c0_i32_0 = arith.constant 0 : i32
    %2 = arith.cmpi ne, %1, %c0_i32_0 : i32
    scf.if %2 {
      %c0_70 = arith.constant 0 : index
      %c0_71 = arith.constant 0 : index
      %c0_72 = arith.constant 0 : index
      %162 = vector.load %arg2[%c0_70, %c0_71, %c0_72] : memref<1x8x32xf32, #tpu.memory_space<vmem>>, vector<1x8x32xf32>
      %163 = vector.shape_cast %162 : vector<1x8x32xf32> to vector<8x32xf32>
      %164 = arith.truncf %163 : vector<8x32xf32> to vector<8x32xbf16>
      %c0_73 = arith.constant 0 : index
      %c0_74 = arith.constant 0 : index
      %165 = vector.load %arg5[%c0_73, %c0_74] : memref<32x64xbf16, #tpu.memory_space<vmem>>, vector<32x64xbf16>
      %cst_75 = arith.constant dense<0.000000e+00> : vector<8x64xf32>
      %166 = tpu.matmul %164, %165, %cst_75 {dimension_numbers = #tpu.dot_dimension_numbers<[1], [0], [0], [1], [0, 0, 1, 1], [], []>} : vector<8x32xbf16>, vector<32x64xbf16>, vector<8x64xf32> -> vector<8x64xf32>
      %c0_76 = arith.constant 0 : index
      %c0_77 = arith.constant 0 : index
      %167 = vector.load %arg6[%c0_76, %c0_77] : memref<1x64xf32, #tpu.memory_space<vmem>>, vector<1x64xf32>
      %168 = vector.broadcast %167 : vector<1x64xf32> to vector<8x64xf32>
      %169 = arith.addf %166, %168 : vector<8x64xf32>
      %170 = arith.truncf %169 : vector<8x64xf32> to vector<8x64xbf16>
      %171 = vector.extract_strided_slice %170 {offsets = [0, 0], sizes = [8, 32], strides = [1, 1]} : vector<8x64xbf16> to vector<8x32xbf16>
      %c0_78 = arith.constant 0 : index
      %c0_79 = arith.constant 0 : index
      %172 = vector.load %arg18[%c0_78, %c0_79] : memref<8x32xbf16, #tpu.memory_space<vmem>>, vector<8x32xbf16>
      tpu.vector_store %arg18[%c0_78, %c0_79], %171 {strides = array<i32>} : memref<8x32xbf16, #tpu.memory_space<vmem>>, vector<8x32xbf16>,
      %173 = vector.extract_strided_slice %170 {offsets = [0, 32], sizes = [8, 32], strides = [1, 1]} : vector<8x64xbf16> to vector<8x32xbf16>
      %c0_80 = arith.constant 0 : index
      %c0_81 = arith.constant 0 : index
      %174 = vector.load %arg19[%c0_80, %c0_81] : memref<8x32xbf16, #tpu.memory_space<vmem>>, vector<8x32xbf16>
      tpu.vector_store %arg19[%c0_80, %c0_81], %173 {strides = array<i32>} : memref<8x32xbf16, #tpu.memory_space<vmem>>, vector<8x32xbf16>,
    } else {
    }
    %c8_i32 = arith.constant 8 : i32
    %3 = arith.muli %arg1, %c8_i32 : i32
    %4 = tpu.assume_multiple %3, 8 : i32
    %c0 = arith.constant 0 : index
    %5 = arith.index_cast %4 : i32 to index
    %c0_1 = arith.constant 0 : index
    %6 = vector.load %arg2[%c0, %5, %c0_1] : memref<1x8x32xf32, #tpu.memory_space<vmem>>, vector<1x8x32xf32>
    %7 = vector.shape_cast %6 : vector<1x8x32xf32> to vector<8x32xf32>
    %8 = arith.truncf %7 : vector<8x32xf32> to vector<8x32xbf16>
    %c0_2 = arith.constant 0 : index
    %c0_3 = arith.constant 0 : index
    %9 = vector.load %arg3[%c0_2, %c0_3] : memref<32x32xbf16, #tpu.memory_space<vmem>>, vector<32x32xbf16>
    %cst = arith.constant dense<0.000000e+00> : vector<8x32xf32>
    %10 = tpu.matmul %8, %9, %cst {dimension_numbers = #tpu.dot_dimension_numbers<[1], [0], [0], [1], [0, 0, 1, 1], [], []>} : vector<8x32xbf16>, vector<32x32xbf16>, vector<8x32xf32> -> vector<8x32xf32>
    %c0_4 = arith.constant 0 : index
    %c0_5 = arith.constant 0 : index
    %11 = vector.load %arg4[%c0_4, %c0_5] : memref<1x32xf32, #tpu.memory_space<vmem>>, vector<1x32xf32>
    %12 = vector.broadcast %11 : vector<1x32xf32> to vector<8x32xf32>
    %13 = arith.addf %10, %12 : vector<8x32xf32>
    %14 = arith.truncf %13 : vector<8x32xf32> to vector<8x32xbf16>
    %c0_6 = arith.constant 0 : index
    %c0_7 = arith.constant 0 : index
    %15 = vector.load %arg18[%c0_6, %c0_7] : memref<8x32xbf16, #tpu.memory_space<vmem>>, vector<8x32xbf16>
    %c0_8 = arith.constant 0 : index
    %c0_9 = arith.constant 0 : index
    %16 = vector.load %arg19[%c0_8, %c0_9] : memref<8x32xbf16, #tpu.memory_space<vmem>>, vector<8x32xbf16>
    %17 = vector.extract_strided_slice %14 {offsets = [0, 0], sizes = [8, 8], strides = [1, 1]} : vector<8x32xbf16> to vector<8x8xbf16>
    %18 = vector.extract_strided_slice %15 {offsets = [0, 0], sizes = [8, 8], strides = [1, 1]} : vector<8x32xbf16> to vector<8x8xbf16>
    %cst_10 = arith.constant dense<0.000000e+00> : vector<8x8xf32>
    %19 = tpu.matmul %17, %18, %cst_10 {dimension_numbers = #tpu.dot_dimension_numbers<[1], [1], [0], [0], [0, 0, 1, 0], [], []>} : vector<8x8xbf16>, vector<8x8xbf16>, vector<8x8xf32> -> vector<8x8xf32>
    %cst_11 = arith.constant dense<0xFF800000> : vector<8xf32>
    %20 = vector.multi_reduction <maximumf>, %19, %cst_11 [1] : vector<8x8xf32> to vector<8xf32>
    %21 = vector.shape_cast %20 : vector<8xf32> to vector<8x1xf32>
    %22 = vector.broadcast %21 : vector<8x1xf32> to vector<8x8xf32>
    %23 = arith.subf %19, %22 : vector<8x8xf32>
    %24 = math.exp %23 : vector<8x8xf32>
    %cst_12 = arith.constant dense<0.000000e+00> : vector<8xf32>
    %25 = vector.multi_reduction <add>, %24, %cst_12 [1] : vector<8x8xf32> to vector<8xf32>
    %26 = vector.shape_cast %25 : vector<8xf32> to vector<8x1xf32>
    %27 = tpu.reciprocal %26 {approx = true} : vector<8x1xf32> -> vector<8x1xf32>
    %28 = vector.broadcast %27 : vector<8x1xf32> to vector<8x8xf32>
    %29 = arith.mulf %24, %28 : vector<8x8xf32>
    %30 = arith.truncf %29 : vector<8x8xf32> to vector<8x8xbf16>
    %31 = vector.extract_strided_slice %16 {offsets = [0, 0], sizes = [8, 8], strides = [1, 1]} : vector<8x32xbf16> to vector<8x8xbf16>
    %cst_13 = arith.constant dense<0.000000e+00> : vector<8x8xf32>
    %32 = tpu.matmul %30, %31, %cst_13 {dimension_numbers = #tpu.dot_dimension_numbers<[1], [0], [0], [1], [0, 0, 1, 1], [], []>} : vector<8x8xbf16>, vector<8x8xbf16>, vector<8x8xf32> -> vector<8x8xf32>
    %33 = arith.truncf %32 : vector<8x8xf32> to vector<8x8xbf16>
    %c0_14 = arith.constant 0 : index
    %c0_15 = arith.constant 0 : index
    %34 = vector.load %arg20[%c0_14, %c0_15] : memref<8x32xbf16, #tpu.memory_space<vmem>>, vector<8x8xbf16>
    tpu.vector_store %arg20[%c0_14, %c0_15], %33 {strides = array<i32>} : memref<8x32xbf16, #tpu.memory_space<vmem>>, vector<8x8xbf16>,
    %35 = vector.extract_strided_slice %14 {offsets = [0, 8], sizes = [8, 8], strides = [1, 1]} : vector<8x32xbf16> to vector<8x8xbf16>
    %36 = vector.extract_strided_slice %15 {offsets = [0, 8], sizes = [8, 8], strides = [1, 1]} : vector<8x32xbf16> to vector<8x8xbf16>
    %cst_16 = arith.constant dense<0.000000e+00> : vector<8x8xf32>
    %37 = tpu.matmul %35, %36, %cst_16 {dimension_numbers = #tpu.dot_dimension_numbers<[1], [1], [0], [0], [0, 0, 1, 0], [], []>} : vector<8x8xbf16>, vector<8x8xbf16>, vector<8x8xf32> -> vector<8x8xf32>
    %cst_17 = arith.constant dense<0xFF800000> : vector<8xf32>
    %38 = vector.multi_reduction <maximumf>, %37, %cst_17 [1] : vector<8x8xf32> to vector<8xf32>
    %39 = vector.shape_cast %38 : vector<8xf32> to vector<8x1xf32>
    %40 = vector.broadcast %39 : vector<8x1xf32> to vector<8x8xf32>
    %41 = arith.subf %37, %40 : vector<8x8xf32>
    %42 = math.exp %41 : vector<8x8xf32>
    %cst_18 = arith.constant dense<0.000000e+00> : vector<8xf32>
    %43 = vector.multi_reduction <add>, %42, %cst_18 [1] : vector<8x8xf32> to vector<8xf32>
    %44 = vector.shape_cast %43 : vector<8xf32> to vector<8x1xf32>
    %45 = tpu.reciprocal %44 {approx = true} : vector<8x1xf32> -> vector<8x1xf32>
    %46 = vector.broadcast %45 : vector<8x1xf32> to vector<8x8xf32>
    %47 = arith.mulf %42, %46 : vector<8x8xf32>
    %48 = arith.truncf %47 : vector<8x8xf32> to vector<8x8xbf16>
    %49 = vector.extract_strided_slice %16 {offsets = [0, 8], sizes = [8, 8], strides = [1, 1]} : vector<8x32xbf16> to vector<8x8xbf16>
    %cst_19 = arith.constant dense<0.000000e+00> : vector<8x8xf32>
    %50 = tpu.matmul %48, %49, %cst_19 {dimension_numbers = #tpu.dot_dimension_numbers<[1], [0], [0], [1], [0, 0, 1, 1], [], []>} : vector<8x8xbf16>, vector<8x8xbf16>, vector<8x8xf32> -> vector<8x8xf32>
    %51 = arith.truncf %50 : vector<8x8xf32> to vector<8x8xbf16>
    %c0_20 = arith.constant 0 : index
    %c8 = arith.constant 8 : index
    %52 = vector.load %arg20[%c0_20, %c8] : memref<8x32xbf16, #tpu.memory_space<vmem>>, vector<8x8xbf16>
    tpu.vector_store %arg20[%c0_20, %c8], %51 {strides = array<i32>} : memref<8x32xbf16, #tpu.memory_space<vmem>>, vector<8x8xbf16>,
    %53 = vector.extract_strided_slice %14 {offsets = [0, 16], sizes = [8, 8], strides = [1, 1]} : vector<8x32xbf16> to vector<8x8xbf16>
    %54 = vector.extract_strided_slice %15 {offsets = [0, 16], sizes = [8, 8], strides = [1, 1]} : vector<8x32xbf16> to vector<8x8xbf16>
    %cst_21 = arith.constant dense<0.000000e+00> : vector<8x8xf32>
    %55 = tpu.matmul %53, %54, %cst_21 {dimension_numbers = #tpu.dot_dimension_numbers<[1], [1], [0], [0], [0, 0, 1, 0], [], []>} : vector<8x8xbf16>, vector<8x8xbf16>, vector<8x8xf32> -> vector<8x8xf32>
    %cst_22 = arith.constant dense<0xFF800000> : vector<8xf32>
    %56 = vector.multi_reduction <maximumf>, %55, %cst_22 [1] : vector<8x8xf32> to vector<8xf32>
    %57 = vector.shape_cast %56 : vector<8xf32> to vector<8x1xf32>
    %58 = vector.broadcast %57 : vector<8x1xf32> to vector<8x8xf32>
    %59 = arith.subf %55, %58 : vector<8x8xf32>
    %60 = math.exp %59 : vector<8x8xf32>
    %cst_23 = arith.constant dense<0.000000e+00> : vector<8xf32>
    %61 = vector.multi_reduction <add>, %60, %cst_23 [1] : vector<8x8xf32> to vector<8xf32>
    %62 = vector.shape_cast %61 : vector<8xf32> to vector<8x1xf32>
    %63 = tpu.reciprocal %62 {approx = true} : vector<8x1xf32> -> vector<8x1xf32>
    %64 = vector.broadcast %63 : vector<8x1xf32> to vector<8x8xf32>
    %65 = arith.mulf %60, %64 : vector<8x8xf32>
    %66 = arith.truncf %65 : vector<8x8xf32> to vector<8x8xbf16>
    %67 = vector.extract_strided_slice %16 {offsets = [0, 16], sizes = [8, 8], strides = [1, 1]} : vector<8x32xbf16> to vector<8x8xbf16>
    %cst_24 = arith.constant dense<0.000000e+00> : vector<8x8xf32>
    %68 = tpu.matmul %66, %67, %cst_24 {dimension_numbers = #tpu.dot_dimension_numbers<[1], [0], [0], [1], [0, 0, 1, 1], [], []>} : vector<8x8xbf16>, vector<8x8xbf16>, vector<8x8xf32> -> vector<8x8xf32>
    %69 = arith.truncf %68 : vector<8x8xf32> to vector<8x8xbf16>
    %c0_25 = arith.constant 0 : index
    %c16 = arith.constant 16 : index
    %70 = vector.load %arg20[%c0_25, %c16] : memref<8x32xbf16, #tpu.memory_space<vmem>>, vector<8x8xbf16>
    tpu.vector_store %arg20[%c0_25, %c16], %69 {strides = array<i32>} : memref<8x32xbf16, #tpu.memory_space<vmem>>, vector<8x8xbf16>,
    %71 = vector.extract_strided_slice %14 {offsets = [0, 24], sizes = [8, 8], strides = [1, 1]} : vector<8x32xbf16> to vector<8x8xbf16>
    %72 = vector.extract_strided_slice %15 {offsets = [0, 24], sizes = [8, 8], strides = [1, 1]} : vector<8x32xbf16> to vector<8x8xbf16>
    %cst_26 = arith.constant dense<0.000000e+00> : vector<8x8xf32>
    %73 = tpu.matmul %71, %72, %cst_26 {dimension_numbers = #tpu.dot_dimension_numbers<[1], [1], [0], [0], [0, 0, 1, 0], [], []>} : vector<8x8xbf16>, vector<8x8xbf16>, vector<8x8xf32> -> vector<8x8xf32>
    %cst_27 = arith.constant dense<0xFF800000> : vector<8xf32>
    %74 = vector.multi_reduction <maximumf>, %73, %cst_27 [1] : vector<8x8xf32> to vector<8xf32>
    %75 = vector.shape_cast %74 : vector<8xf32> to vector<8x1xf32>
    %76 = vector.broadcast %75 : vector<8x1xf32> to vector<8x8xf32>
    %77 = arith.subf %73, %76 : vector<8x8xf32>
    %78 = math.exp %77 : vector<8x8xf32>
    %cst_28 = arith.constant dense<0.000000e+00> : vector<8xf32>
    %79 = vector.multi_reduction <add>, %78, %cst_28 [1] : vector<8x8xf32> to vector<8xf32>
    %80 = vector.shape_cast %79 : vector<8xf32> to vector<8x1xf32>
    %81 = tpu.reciprocal %80 {approx = true} : vector<8x1xf32> -> vector<8x1xf32>
    %82 = vector.broadcast %81 : vector<8x1xf32> to vector<8x8xf32>
    %83 = arith.mulf %78, %82 : vector<8x8xf32>
    %84 = arith.truncf %83 : vector<8x8xf32> to vector<8x8xbf16>
    %85 = vector.extract_strided_slice %16 {offsets = [0, 24], sizes = [8, 8], strides = [1, 1]} : vector<8x32xbf16> to vector<8x8xbf16>
    %cst_29 = arith.constant dense<0.000000e+00> : vector<8x8xf32>
    %86 = tpu.matmul %84, %85, %cst_29 {dimension_numbers = #tpu.dot_dimension_numbers<[1], [0], [0], [1], [0, 0, 1, 1], [], []>} : vector<8x8xbf16>, vector<8x8xbf16>, vector<8x8xf32> -> vector<8x8xf32>
    %87 = arith.truncf %86 : vector<8x8xf32> to vector<8x8xbf16>
    %c0_30 = arith.constant 0 : index
    %c24 = arith.constant 24 : index
    %88 = vector.load %arg20[%c0_30, %c24] : memref<8x32xbf16, #tpu.memory_space<vmem>>, vector<8x8xbf16>
    tpu.vector_store %arg20[%c0_30, %c24], %87 {strides = array<i32>} : memref<8x32xbf16, #tpu.memory_space<vmem>>, vector<8x8xbf16>,
    %c0_31 = arith.constant 0 : index
    %c0_32 = arith.constant 0 : index
    %89 = vector.load %arg20[%c0_31, %c0_32] : memref<8x32xbf16, #tpu.memory_space<vmem>>, vector<8x32xbf16>
    %c0_33 = arith.constant 0 : index
    %c0_34 = arith.constant 0 : index
    %90 = vector.load %arg7[%c0_33, %c0_34] : memref<32x32xbf16, #tpu.memory_space<vmem>>, vector<32x32xbf16>
    %cst_35 = arith.constant dense<0.000000e+00> : vector<8x32xf32>
    %91 = tpu.matmul %89, %90, %cst_35 {dimension_numbers = #tpu.dot_dimension_numbers<[1], [0], [0], [1], [0, 0, 1, 1], [], []>} : vector<8x32xbf16>, vector<32x32xbf16>, vector<8x32xf32> -> vector<8x32xf32>
    %c0_36 = arith.constant 0 : index
    %c0_37 = arith.constant 0 : index
    %92 = vector.load %arg8[%c0_36, %c0_37] : memref<1x32xf32, #tpu.memory_space<vmem>>, vector<1x32xf32>
    %93 = vector.broadcast %92 : vector<1x32xf32> to vector<8x32xf32>
    %94 = arith.addf %91, %93 : vector<8x32xf32>
    %95 = arith.addf %94, %7 : vector<8x32xf32>
    %c0_38 = arith.constant 0 : index
    %c0_39 = arith.constant 0 : index
    %96 = vector.load %arg13[%c0_38, %c0_39] : memref<1x32xf32, #tpu.memory_space<vmem>>, vector<1x32xf32>
    %c0_40 = arith.constant 0 : index
    %c0_41 = arith.constant 0 : index
    %97 = vector.load %arg14[%c0_40, %c0_41] : memref<1x32xf32, #tpu.memory_space<vmem>>, vector<1x32xf32>
    %cst_42 = arith.constant dense<0.000000e+00> : vector<8xf32>
    %98 = vector.multi_reduction <add>, %95, %cst_42 [1] : vector<8x32xf32> to vector<8xf32>
    %99 = vector.shape_cast %98 : vector<8xf32> to vector<8x1xf32>
    %cst_43 = arith.constant 3.200000e+01 : f32
    %100 = vector.broadcast %cst_43 : f32 to vector<8x1xf32>
    %101 = arith.divf %99, %100 : vector<8x1xf32>
    %102 = vector.broadcast %101 : vector<8x1xf32> to vector<8x32xf32>
    %103 = arith.subf %95, %102 : vector<8x32xf32>
    %104 = arith.mulf %103, %103 : vector<8x32xf32>
    %cst_44 = arith.constant dense<0.000000e+00> : vector<8xf32>
    %105 = vector.multi_reduction <add>, %104, %cst_44 [1] : vector<8x32xf32> to vector<8xf32>
    %106 = vector.shape_cast %105 : vector<8xf32> to vector<8x1xf32>
    %cst_45 = arith.constant 3.200000e+01 : f32
    %107 = vector.broadcast %cst_45 : f32 to vector<8x1xf32>
    %108 = arith.divf %106, %107 : vector<8x1xf32>
    %109 = vector.broadcast %101 : vector<8x1xf32> to vector<8x32xf32>
    %110 = arith.subf %95, %109 : vector<8x32xf32>
    %cst_46 = arith.constant 9.99999974E-6 : f32
    %111 = vector.broadcast %cst_46 : f32 to vector<8x1xf32>
    %112 = arith.addf %108, %111 : vector<8x1xf32>
    %113 = math.rsqrt %112 : vector<8x1xf32>
    %114 = vector.broadcast %113 : vector<8x1xf32> to vector<8x32xf32>
    %115 = arith.mulf %110, %114 : vector<8x32xf32>
    %116 = vector.broadcast %96 : vector<1x32xf32> to vector<8x32xf32>
    %117 = arith.mulf %115, %116 : vector<8x32xf32>
    %118 = vector.broadcast %97 : vector<1x32xf32> to vector<8x32xf32>
    %119 = arith.addf %117, %118 : vector<8x32xf32>
    %120 = arith.truncf %119 : vector<8x32xf32> to vector<8x32xbf16>
    %c0_47 = arith.constant 0 : index
    %c0_48 = arith.constant 0 : index
    %121 = vector.load %arg9[%c0_47, %c0_48] : memref<32x64xbf16, #tpu.memory_space<vmem>>, vector<32x64xbf16>
    %cst_49 = arith.constant dense<0.000000e+00> : vector<8x64xf32>
    %122 = tpu.matmul %120, %121, %cst_49 {dimension_numbers = #tpu.dot_dimension_numbers<[1], [0], [0], [1], [0, 0, 1, 1], [], []>} : vector<8x32xbf16>, vector<32x64xbf16>, vector<8x64xf32> -> vector<8x64xf32>
    %c0_50 = arith.constant 0 : index
    %c0_51 = arith.constant 0 : index
    %123 = vector.load %arg10[%c0_50, %c0_51] : memref<1x64xf32, #tpu.memory_space<vmem>>, vector<1x64xf32>
    %124 = vector.broadcast %123 : vector<1x64xf32> to vector<8x64xf32>
    %125 = arith.addf %122, %124 : vector<8x64xf32>
    %cst_52 = arith.constant 0.000000e+00 : f32
    %126 = vector.broadcast %cst_52 : f32 to vector<8x64xf32>
    %127 = arith.maximumf %125, %126 : vector<8x64xf32>
    %128 = arith.truncf %127 : vector<8x64xf32> to vector<8x64xbf16>
    %c0_53 = arith.constant 0 : index
    %c0_54 = arith.constant 0 : index
    %129 = vector.load %arg11[%c0_53, %c0_54] : memref<64x32xbf16, #tpu.memory_space<vmem>>, vector<64x32xbf16>
    %cst_55 = arith.constant dense<0.000000e+00> : vector<8x32xf32>
    %130 = tpu.matmul %128, %129, %cst_55 {dimension_numbers = #tpu.dot_dimension_numbers<[1], [0], [0], [1], [0, 0, 1, 1], [], []>} : vector<8x64xbf16>, vector<64x32xbf16>, vector<8x32xf32> -> vector<8x32xf32>
    %c0_56 = arith.constant 0 : index
    %c0_57 = arith.constant 0 : index
    %131 = vector.load %arg12[%c0_56, %c0_57] : memref<1x32xf32, #tpu.memory_space<vmem>>, vector<1x32xf32>
    %132 = vector.broadcast %131 : vector<1x32xf32> to vector<8x32xf32>
    %133 = arith.addf %130, %132 : vector<8x32xf32>
    %134 = arith.addf %133, %119 : vector<8x32xf32>
    %c0_58 = arith.constant 0 : index
    %c0_59 = arith.constant 0 : index
    %135 = vector.load %arg15[%c0_58, %c0_59] : memref<1x32xf32, #tpu.memory_space<vmem>>, vector<1x32xf32>
    %c0_60 = arith.constant 0 : index
    %c0_61 = arith.constant 0 : index
    %136 = vector.load %arg16[%c0_60, %c0_61] : memref<1x32xf32, #tpu.memory_space<vmem>>, vector<1x32xf32>
    %cst_62 = arith.constant dense<0.000000e+00> : vector<8xf32>
    %137 = vector.multi_reduction <add>, %134, %cst_62 [1] : vector<8x32xf32> to vector<8xf32>
    %138 = vector.shape_cast %137 : vector<8xf32> to vector<8x1xf32>
    %cst_63 = arith.constant 3.200000e+01 : f32
    %139 = vector.broadcast %cst_63 : f32 to vector<8x1xf32>
    %140 = arith.divf %138, %139 : vector<8x1xf32>
    %141 = vector.broadcast %140 : vector<8x1xf32> to vector<8x32xf32>
    %142 = arith.subf %134, %141 : vector<8x32xf32>
    %143 = arith.mulf %142, %142 : vector<8x32xf32>
    %cst_64 = arith.constant dense<0.000000e+00> : vector<8xf32>
    %144 = vector.multi_reduction <add>, %143, %cst_64 [1] : vector<8x32xf32> to vector<8xf32>
    %145 = vector.shape_cast %144 : vector<8xf32> to vector<8x1xf32>
    %cst_65 = arith.constant 3.200000e+01 : f32
    %146 = vector.broadcast %cst_65 : f32 to vector<8x1xf32>
    %147 = arith.divf %145, %146 : vector<8x1xf32>
    %148 = vector.broadcast %140 : vector<8x1xf32> to vector<8x32xf32>
    %149 = arith.subf %134, %148 : vector<8x32xf32>
    %cst_66 = arith.constant 9.99999974E-6 : f32
    %150 = vector.broadcast %cst_66 : f32 to vector<8x1xf32>
    %151 = arith.addf %147, %150 : vector<8x1xf32>
    %152 = math.rsqrt %151 : vector<8x1xf32>
    %153 = vector.broadcast %152 : vector<8x1xf32> to vector<8x32xf32>
    %154 = arith.mulf %149, %153 : vector<8x32xf32>
    %155 = vector.broadcast %135 : vector<1x32xf32> to vector<8x32xf32>
    %156 = arith.mulf %154, %155 : vector<8x32xf32>
    %157 = vector.broadcast %136 : vector<1x32xf32> to vector<8x32xf32>
    %158 = arith.addf %156, %157 : vector<8x32xf32>
    %c0_67 = arith.constant 0 : index
    %c0_68 = arith.constant 0 : index
    %c0_69 = arith.constant 0 : index
    %159 = vector.load %arg17[%c0_67, %c0_68, %c0_69] : memref<1x8x32xf32, #tpu.memory_space<vmem>>, vector<1x8x32xf32>
    %160 = vector.shape_cast %159 : vector<1x8x32xf32> to vector<8x32xf32>
    %161 = vector.shape_cast %158 : vector<8x32xf32> to vector<1x8x32xf32>
    tpu.vector_store %arg17[%c0_67, %c0_68, %c0_69], %161 {strides = array<i32>} : memref<1x8x32xf32, #tpu.memory_space<vmem>>, vector<1x8x32xf32>,
    return
  }
  func.func @transform_0(%arg0: i32, %arg1: i32) -> (i32, i32, i32) {
    %c0_i32 = arith.constant 0 : i32
    %c0_i32_0 = arith.constant 0 : i32
    %c0_i32_1 = arith.constant 0 : i32
    return %arg0, %c0_i32, %c0_i32_0 : i32, i32, i32
  }
  func.func @transform_1(%arg0: i32, %arg1: i32) -> (i32, i32) {
    %c0_i32 = arith.constant 0 : i32
    %c0_i32_0 = arith.constant 0 : i32
    %c0_i32_1 = arith.constant 0 : i32
    return %c0_i32, %c0_i32_0 : i32, i32
  }
  func.func @transform_2(%arg0: i32, %arg1: i32) -> (i32, i32) {
    %c0_i32 = arith.constant 0 : i32
    %c0_i32_0 = arith.constant 0 : i32
    %c0_i32_1 = arith.constant 0 : i32
    return %c0_i32, %c0_i32_0 : i32, i32
  }
  func.func @transform_3(%arg0: i32, %arg1: i32) -> (i32, i32) {
    %c0_i32 = arith.constant 0 : i32
    %c0_i32_0 = arith.constant 0 : i32
    %c0_i32_1 = arith.constant 0 : i32
    return %c0_i32, %c0_i32_0 : i32, i32
  }
  func.func @transform_4(%arg0: i32, %arg1: i32) -> (i32, i32) {
    %c0_i32 = arith.constant 0 : i32
    %c0_i32_0 = arith.constant 0 : i32
    %c0_i32_1 = arith.constant 0 : i32
    return %c0_i32, %c0_i32_0 : i32, i32
  }
  func.func @transform_5(%arg0: i32, %arg1: i32) -> (i32, i32) {
    %c0_i32 = arith.constant 0 : i32
    %c0_i32_0 = arith.constant 0 : i32
    %c0_i32_1 = arith.constant 0 : i32
    return %c0_i32, %c0_i32_0 : i32, i32
  }
  func.func @transform_6(%arg0: i32, %arg1: i32) -> (i32, i32) {
    %c0_i32 = arith.constant 0 : i32
    %c0_i32_0 = arith.constant 0 : i32
    %c0_i32_1 = arith.constant 0 : i32
    return %c0_i32, %c0_i32_0 : i32, i32
  }
  func.func @transform_7(%arg0: i32, %arg1: i32) -> (i32, i32) {
    %c0_i32 = arith.constant 0 : i32
    %c0_i32_0 = arith.constant 0 : i32
    %c0_i32_1 = arith.constant 0 : i32
    return %c0_i32, %c0_i32_0 : i32, i32
  }
  func.func @transform_8(%arg0: i32, %arg1: i32) -> (i32, i32) {
    %c0_i32 = arith.constant 0 : i32
    %c0_i32_0 = arith.constant 0 : i32
    %c0_i32_1 = arith.constant 0 : i32
    return %c0_i32, %c0_i32_0 : i32, i32
  }
  func.func @transform_9(%arg0: i32, %arg1: i32) -> (i32, i32) {
    %c0_i32 = arith.constant 0 : i32
    %c0_i32_0 = arith.constant 0 : i32
    %c0_i32_1 = arith.constant 0 : i32
    return %c0_i32, %c0_i32_0 : i32, i32
  }
  func.func @transform_10(%arg0: i32, %arg1: i32) -> (i32, i32) {
    %c0_i32 = arith.constant 0 : i32
    %c0_i32_0 = arith.constant 0 : i32
    %c0_i32_1 = arith.constant 0 : i32
    return %c0_i32, %c0_i32_0 : i32, i32
  }
  func.func @transform_11(%arg0: i32, %arg1: i32) -> (i32, i32) {
    %c0_i32 = arith.constant 0 : i32
    %c0_i32_0 = arith.constant 0 : i32
    %c0_i32_1 = arith.constant 0 : i32
    return %c0_i32, %c0_i32_0 : i32, i32
  }
  func.func @transform_12(%arg0: i32, %arg1: i32) -> (i32, i32) {
    %c0_i32 = arith.constant 0 : i32
    %c0_i32_0 = arith.constant 0 : i32
    %c0_i32_1 = arith.constant 0 : i32
    return %c0_i32, %c0_i32_0 : i32, i32
  }
  func.func @transform_13(%arg0: i32, %arg1: i32) -> (i32, i32) {
    %c0_i32 = arith.constant 0 : i32
    %c0_i32_0 = arith.constant 0 : i32
    %c0_i32_1 = arith.constant 0 : i32
    return %c0_i32, %c0_i32_0 : i32, i32
  }
  func.func @transform_14(%arg0: i32, %arg1: i32) -> (i32, i32) {
    %c0_i32 = arith.constant 0 : i32
    %c0_i32_0 = arith.constant 0 : i32
    %c0_i32_1 = arith.constant 0 : i32
    return %c0_i32, %c0_i32_0 : i32, i32
  }
  func.func @transform_15(%arg0: i32, %arg1: i32) -> (i32, i32, i32) {
    %c0_i32 = arith.constant 0 : i32
    %c0_i32_0 = arith.constant 0 : i32
    return %arg0, %arg1, %c0_i32 : i32, i32, i32
  }
}

</mosaic_0001>

<llo_original>
// kernel: tpu_custom_call.1
$region0: #{tpu_custom_call.1}
  #allocation0 [shape = 'u32[]', space=smem, size = 0x4, offset = 0x4, fixed_abs, tag = 'smem constant byte address 0x4 - core index']
  #allocation1 [shape = 'u32[144,128]{1,0:T(1,128)}', space=vmem, size = 0x12000, scoped, tag = 'internal scratch']
  #allocation2 [shape = 'bf16[8,32]{1,0:T(8,128)(2,1)}', space=vmem, size = 0x800, scoped, tag = 'scratch operand']
  #allocation3 [shape = 'bf16[8,32]{1,0:T(8,128)(2,1)}', space=vmem, size = 0x800, scoped, tag = 'scratch operand']
  #allocation4 [shape = 'bf16[8,32]{1,0:T(8,128)(2,1)}', space=vmem, size = 0x800, scoped, tag = 'scratch operand']
  %s0 = inlined_call_operand.hbm [shape: f32[2,8,32], index: 0, kind: input, shape index: {}]
  %s1 = inlined_call_operand.hbm [shape: bf16[32,32], index: 1, kind: input, shape index: {}]
  %s2 = inlined_call_operand.hbm [shape: f32[1,32], index: 2, kind: input, shape index: {}]
  %s3 = inlined_call_operand.hbm [shape: bf16[32,64], index: 3, kind: input, shape index: {}]
  %s4 = inlined_call_operand.hbm [shape: f32[1,64], index: 4, kind: input, shape index: {}]
  %s5 = inlined_call_operand.hbm [shape: bf16[32,32], index: 5, kind: input, shape index: {}]
  %s6 = inlined_call_operand.hbm [shape: f32[1,32], index: 6, kind: input, shape index: {}]
  %s7 = inlined_call_operand.hbm [shape: bf16[32,64], index: 7, kind: input, shape index: {}]
  %s8 = inlined_call_operand.hbm [shape: f32[1,64], index: 8, kind: input, shape index: {}]
  %s9 = inlined_call_operand.hbm [shape: bf16[64,32], index: 9, kind: input, shape index: {}]
  %s10 = inlined_call_operand.hbm [shape: f32[1,32], index: 10, kind: input, shape index: {}]
  %s11 = inlined_call_operand.hbm [shape: f32[1,32], index: 11, kind: input, shape index: {}]
  %s12 = inlined_call_operand.hbm [shape: f32[1,32], index: 12, kind: input, shape index: {}]
  %s13 = inlined_call_operand.hbm [shape: f32[1,32], index: 13, kind: input, shape index: {}]
  %s14 = inlined_call_operand.hbm [shape: f32[1,32], index: 14, kind: input, shape index: {}]
  %s15 = inlined_call_operand.hbm [shape: f32[2,8,32], index: 15, kind: output, shape index: {}]
  %s16 = sld [smem:[#allocation0]]
  $region157: #{tpu_custom_call.1} parent=0
    _
  %s18 = ssub.s32 1, %s16
  %s19 = scalar_select 0, %s18, %s16
  $region1: #{tpu_custom_call.1} parent=0
    #allocation5 [shape = 'u8[8192]{0}', space=vmem, size = 0x2000, scoped, tag = 'input window, operand 0']
    #allocation6 [shape = 's32[2]{0}', space=sflag, size = 0x8, scoped, tag = 'scoped memory for tpu_custom_call.1']
    #allocation7 [shape = 's32[2]{0}', space=sflag, size = 0x8, scoped, tag = 'scoped memory for tpu_custom_call.1']
    #allocation8 [shape = 'u8[8192]{0}', space=vmem, size = 0x2000, scoped, tag = 'input window, operand 1, single buffered']
    #allocation9 [shape = 's32[1]{0}', space=sflag, size = 0x4, scoped, tag = 'scoped memory for tpu_custom_call.1']
    #allocation10 [shape = 'u8[512]{0}', space=vmem, size = 0x400, scoped, tag = 'input window, operand 2, single buffered']
    #allocation11 [shape = 'u8[8192]{0}', space=vmem, size = 0x2000, scoped, tag = 'input window, operand 3, single buffered']
    #allocation12 [shape = 's32[1]{0}', space=sflag, size = 0x4, scoped, tag = 'scoped memory for tpu_custom_call.1']
    #allocation13 [shape = 'u8[512]{0}', space=vmem, size = 0x400, scoped, tag = 'input window, operand 4, single buffered']
    #allocation14 [shape = 'u8[8192]{0}', space=vmem, size = 0x2000, scoped, tag = 'input window, operand 5, single buffered']
    #allocation15 [shape = 's32[1]{0}', space=sflag, size = 0x4, scoped, tag = 'scoped memory for tpu_custom_call.1']
    #allocation16 [shape = 'u8[512]{0}', space=vmem, size = 0x400, scoped, tag = 'input window, operand 6, single buffered']
    #allocation17 [shape = 'u8[8192]{0}', space=vmem, size = 0x2000, scoped, tag = 'input window, operand 7, single buffered']
    #allocation18 [shape = 's32[1]{0}', space=sflag, size = 0x4, scoped, tag = 'scoped memory for tpu_custom_call.1']
    #allocation19 [shape = 'u8[512]{0}', space=vmem, size = 0x400, scoped, tag = 'input window, operand 8, single buffered']
    #allocation20 [shape = 'u8[16384]{0}', space=vmem, size = 0x4000, scoped, tag = 'input window, operand 9, single buffered']
    #allocation21 [shape = 's32[1]{0}', space=sflag, size = 0x4, scoped, tag = 'scoped memory for tpu_custom_call.1']
    #allocation22 [shape = 'u8[512]{0}', space=vmem, size = 0x400, scoped, tag = 'input window, operand 10, single buffered']
    #allocation23 [shape = 'u8[512]{0}', space=vmem, size = 0x400, scoped, tag = 'input window, operand 11, single buffered']
    #allocation24 [shape = 's32[1]{0}', space=sflag, size = 0x4, scoped, tag = 'scoped memory for tpu_custom_call.1']
    #allocation25 [shape = 'u8[512]{0}', space=vmem, size = 0x400, scoped, tag = 'input window, operand 12, single buffered']
    #allocation26 [shape = 'u8[512]{0}', space=vmem, size = 0x400, scoped, tag = 'input window, operand 13, single buffered']
    #allocation27 [shape = 's32[1]{0}', space=sflag, size = 0x4, scoped, tag = 'scoped memory for tpu_custom_call.1']
    #allocation28 [shape = 'u8[512]{0}', space=vmem, size = 0x400, scoped, tag = 'input window, operand 14, single buffered']
    #allocation29 [shape = 'u8[8192]{0}', space=vmem, size = 0x2000, scoped, tag = 'output window, operand 0']
    %20 = vsyncpa [#allocation6], 0
    %s21 = scalar_lea.sflag [#allocation6], 1
    %22 = vsyncpa %s21, 0
    %23 = vsyncpa [#allocation9], 0
    %24 = vsyncpa [#allocation12], 0
    %25 = vsyncpa [#allocation15], 0
    %26 = vsyncpa [#allocation18], 0
    %27 = vsyncpa [#allocation21], 0
    %28 = vsyncpa [#allocation24], 0
    %29 = vsyncpa [#allocation27], 0
    %30 = vsyncpa [#allocation7], 0
    %s31 = scalar_lea.sflag [#allocation7], 1
    %32 = vsyncpa %s31, 0
    loop: start=0, step=1, limit=4
    $region2: #{tpu_custom_call.1} parent=1 // loop_pre_header
      _
    $region3: #{tpu_custom_call.1} parent=1 // loop_header
      %s34 = sphi 0, %s38
      %p35 = scmp.ge.s32.totalorder %s34, 4
      %s41 = sphi 0, %s53
      %s42 = sphi 0, %s49
      %s43 = sphi 0, %s41
      %s44 = sphi 0, %s42
      %s45 = sphi 0, %s43
      %s46 = sphi 0, %s44
      %s56 = sphi 0, %s58
      %s59 = sphi 0, %s56
      %s60 = sphi 0, %s59
      %s76 = sphi 0, %s60
      %s80 = sphi 0, %s80
      %s82 = sphi 0, %s80
      %s83 = sphi 0, %s82
      %s97 = sphi 0, %s83
      %s101 = sphi 0, %s101
      %s103 = sphi 0, %s101
      %s104 = sphi 0, %s103
      %s118 = sphi 0, %s104
      %s122 = sphi 0, %s122
      %s124 = sphi 0, %s122
      %s125 = sphi 0, %s124
      %s139 = sphi 0, %s125
      %s143 = sphi 0, %s143
      %s145 = sphi 0, %s143
      %s146 = sphi 0, %s145
      %s160 = sphi 0, %s146
      %s164 = sphi 0, %s164
      %s166 = sphi 0, %s164
      %s167 = sphi 0, %s166
      %s181 = sphi 0, %s167
      %s185 = sphi 0, %s185
      %s187 = sphi 0, %s185
      %s188 = sphi 0, %s187
      %s202 = sphi 0, %s188
      %s206 = sphi 0, %s206
      %s208 = sphi 0, %s206
      %s209 = sphi 0, %s208
      %s223 = sphi 0, %s209
      %s227 = sphi 0, %s227
      %s229 = sphi 0, %s227
      %s230 = sphi 0, %s229
      %s244 = sphi 0, %s230
      %s248 = sphi 0, %s248
      %s250 = sphi 0, %s248
      %s251 = sphi 0, %s250
      %s265 = sphi 0, %s251
      %s269 = sphi 0, %s269
      %s271 = sphi 0, %s269
      %s272 = sphi 0, %s271
      %s286 = sphi 0, %s272
      %s290 = sphi 0, %s290
      %s292 = sphi 0, %s290
      %s293 = sphi 0, %s292
      %s307 = sphi 0, %s293
      %s311 = sphi 0, %s311
      %s313 = sphi 0, %s311
      %s314 = sphi 0, %s313
      %s328 = sphi 0, %s314
      %s332 = sphi 0, %s332
      %s334 = sphi 0, %s332
      %s335 = sphi 0, %s334
      %s349 = sphi 0, %s335
      %s353 = sphi 0, %s353
      %s355 = sphi 0, %s353
      %s356 = sphi 0, %s355
      %s370 = sphi 0, %s356
      %s378 = sphi 0, %s380
      %s381 = sphi 0, %s378
      %s382 = sphi 0, %s381
      %s398 = sphi 0, %s382
    $region4: #{tpu_custom_call.1} parent=1 // loop_header_branch
      %37 = sbr.rel (%p35) target = $region8
    $region5: #{tpu_custom_call.1} parent=1 // loop_body
      %s39 = ssub.s32 %s34, 1
      %s40 = ssub.s32 %s34, 2
      %s47 = sadd.s32 1, %s42
      %p48 = scmp.ge.s32.totalorder %s47, 1
      %s49 = scalar_select %p48, 0, %s47
      %s50 = sadd.s32 1, %s41
      %s51 = scalar_select %p48, %s50, %s41
      %p52 = scmp.ge.s32.totalorder %s51, 2
      %s53 = scalar_select %p52, 0, %s51
      %s54 = ssub.s32 %s41, %s53
      %p55 = scmp.eq.s32.totalorder %s54, 0
      %s57 = sadd.s32 %s56, 1
      %s58 = scalar_select %p55, %s56, %s57
      %p61 = pneg %p55
      %p62 = scmp.eq.s32.totalorder %s34, 1
      %p63 = por %p61, %p62
      %p64 = scmp.ne.s32.totalorder %s56, %s59
      %p65 = scmp.eq.s32.totalorder %s34, 0
      %p66 = por %p64, %p65
      %p67 = scmp.ne.s32.totalorder %s56, %s59
      %p68 = scmp.eq.s32.totalorder %s39, 1
      %p69 = por %p67, %p68
      %p70 = scmp.ne.s32.totalorder %s59, %s60
      %p71 = scmp.eq.s32.totalorder %s39, 0
      %p72 = por %p70, %p71
      %p73 = scmp.ne.s32.totalorder %s59, %s60
      %p74 = scmp.eq.s32.totalorder %s40, 1
      %p75 = por %p73, %p74
      %p77 = scmp.ne.s32.totalorder %s60, %s76
      %p78 = scmp.eq.s32.totalorder %s40, 0
      %p79 = por %p77, %p78
      %s81 = sadd.s32 %s80, 1
      %p84 = scmp.eq.s32.totalorder %s34, 1
      %p85 = scmp.ne.s32.totalorder %s80, %s82
      %p86 = scmp.eq.s32.totalorder %s34, 0
      %p87 = por %p85, %p86
      %p88 = scmp.ne.s32.totalorder %s80, %s82
      %p89 = scmp.eq.s32.totalorder %s39, 1
      %p90 = por %p88, %p89
      %p91 = scmp.ne.s32.totalorder %s82, %s83
      %p92 = scmp.eq.s32.totalorder %s39, 0
      %p93 = por %p91, %p92
      %p94 = scmp.ne.s32.totalorder %s82, %s83
      %p95 = scmp.eq.s32.totalorder %s40, 1
      %p96 = por %p94, %p95
      %p98 = scmp.ne.s32.totalorder %s83, %s97
      %p99 = scmp.eq.s32.totalorder %s40, 0
      %p100 = por %p98, %p99
      %s102 = sadd.s32 %s101, 1
      %p105 = scmp.eq.s32.totalorder %s34, 1
      %p106 = scmp.ne.s32.totalorder %s101, %s103
      %p107 = scmp.eq.s32.totalorder %s34, 0
      %p108 = por %p106, %p107
      %p109 = scmp.ne.s32.totalorder %s101, %s103
      %p110 = scmp.eq.s32.totalorder %s39, 1
      %p111 = por %p109, %p110
      %p112 = scmp.ne.s32.totalorder %s103, %s104
      %p113 = scmp.eq.s32.totalorder %s39, 0
      %p114 = por %p112, %p113
      %p115 = scmp.ne.s32.totalorder %s103, %s104
      %p116 = scmp.eq.s32.totalorder %s40, 1
      %p117 = por %p115, %p116
      %p119 = scmp.ne.s32.totalorder %s104, %s118
      %p120 = scmp.eq.s32.totalorder %s40, 0
      %p121 = por %p119, %p120
      %s123 = sadd.s32 %s122, 1
      %p126 = scmp.eq.s32.totalorder %s34, 1
      %p127 = scmp.ne.s32.totalorder %s122, %s124
      %p128 = scmp.eq.s32.totalorder %s34, 0
      %p129 = por %p127, %p128
      %p130 = scmp.ne.s32.totalorder %s122, %s124
      %p131 = scmp.eq.s32.totalorder %s39, 1
      %p132 = por %p130, %p131
      %p133 = scmp.ne.s32.totalorder %s124, %s125
      %p134 = scmp.eq.s32.totalorder %s39, 0
      %p135 = por %p133, %p134
      %p136 = scmp.ne.s32.totalorder %s124, %s125
      %p137 = scmp.eq.s32.totalorder %s40, 1
      %p138 = por %p136, %p137
      %p140 = scmp.ne.s32.totalorder %s125, %s139
      %p141 = scmp.eq.s32.totalorder %s40, 0
      %p142 = por %p140, %p141
      %s144 = sadd.s32 %s143, 1
      %p147 = scmp.eq.s32.totalorder %s34, 1
      %p148 = scmp.ne.s32.totalorder %s143, %s145
      %p149 = scmp.eq.s32.totalorder %s34, 0
      %p150 = por %p148, %p149
      %p151 = scmp.ne.s32.totalorder %s143, %s145
      %p152 = scmp.eq.s32.totalorder %s39, 1
      %p153 = por %p151, %p152
      %p154 = scmp.ne.s32.totalorder %s145, %s146
      %p155 = scmp.eq.s32.totalorder %s39, 0
      %p156 = por %p154, %p155
      %p157 = scmp.ne.s32.totalorder %s145, %s146
      %p158 = scmp.eq.s32.totalorder %s40, 1
      %p159 = por %p157, %p158
      %p161 = scmp.ne.s32.totalorder %s146, %s160
      %p162 = scmp.eq.s32.totalorder %s40, 0
      %p163 = por %p161, %p162
      %s165 = sadd.s32 %s164, 1
      %p168 = scmp.eq.s32.totalorder %s34, 1
      %p169 = scmp.ne.s32.totalorder %s164, %s166
      %p170 = scmp.eq.s32.totalorder %s34, 0
      %p171 = por %p169, %p170
      %p172 = scmp.ne.s32.totalorder %s164, %s166
      %p173 = scmp.eq.s32.totalorder %s39, 1
      %p174 = por %p172, %p173
      %p175 = scmp.ne.s32.totalorder %s166, %s167
      %p176 = scmp.eq.s32.totalorder %s39, 0
      %p177 = por %p175, %p176
      %p178 = scmp.ne.s32.totalorder %s166, %s167
      %p179 = scmp.eq.s32.totalorder %s40, 1
      %p180 = por %p178, %p179
      %p182 = scmp.ne.s32.totalorder %s167, %s181
      %p183 = scmp.eq.s32.totalorder %s40, 0
      %p184 = por %p182, %p183
      %s186 = sadd.s32 %s185, 1
      %p189 = scmp.eq.s32.totalorder %s34, 1
      %p190 = scmp.ne.s32.totalorder %s185, %s187
      %p191 = scmp.eq.s32.totalorder %s34, 0
      %p192 = por %p190, %p191
      %p193 = scmp.ne.s32.totalorder %s185, %s187
      %p194 = scmp.eq.s32.totalorder %s39, 1
      %p195 = por %p193, %p194
      %p196 = scmp.ne.s32.totalorder %s187, %s188
      %p197 = scmp.eq.s32.totalorder %s39, 0
      %p198 = por %p196, %p197
      %p199 = scmp.ne.s32.totalorder %s187, %s188
      %p200 = scmp.eq.s32.totalorder %s40, 1
      %p201 = por %p199, %p200
      %p203 = scmp.ne.s32.totalorder %s188, %s202
      %p204 = scmp.eq.s32.totalorder %s40, 0
      %p205 = por %p203, %p204
      %s207 = sadd.s32 %s206, 1
      %p210 = scmp.eq.s32.totalorder %s34, 1
      %p211 = scmp.ne.s32.totalorder %s206, %s208
      %p212 = scmp.eq.s32.totalorder %s34, 0
      %p213 = por %p211, %p212
      %p214 = scmp.ne.s32.totalorder %s206, %s208
      %p215 = scmp.eq.s32.totalorder %s39, 1
      %p216 = por %p214, %p215
      %p217 = scmp.ne.s32.totalorder %s208, %s209
      %p218 = scmp.eq.s32.totalorder %s39, 0
      %p219 = por %p217, %p218
      %p220 = scmp.ne.s32.totalorder %s208, %s209
      %p221 = scmp.eq.s32.totalorder %s40, 1
      %p222 = por %p220, %p221
      %p224 = scmp.ne.s32.totalorder %s209, %s223
      %p225 = scmp.eq.s32.totalorder %s40, 0
      %p226 = por %p224, %p225
      %s228 = sadd.s32 %s227, 1
      %p231 = scmp.eq.s32.totalorder %s34, 1
      %p232 = scmp.ne.s32.totalorder %s227, %s229
      %p233 = scmp.eq.s32.totalorder %s34, 0
      %p234 = por %p232, %p233
      %p235 = scmp.ne.s32.totalorder %s227, %s229
      %p236 = scmp.eq.s32.totalorder %s39, 1
      %p237 = por %p235, %p236
      %p238 = scmp.ne.s32.totalorder %s229, %s230
      %p239 = scmp.eq.s32.totalorder %s39, 0
      %p240 = por %p238, %p239
      %p241 = scmp.ne.s32.totalorder %s229, %s230
      %p242 = scmp.eq.s32.totalorder %s40, 1
      %p243 = por %p241, %p242
      %p245 = scmp.ne.s32.totalorder %s230, %s244
      %p246 = scmp.eq.s32.totalorder %s40, 0
      %p247 = por %p245, %p246
      %s249 = sadd.s32 %s248, 1
      %p252 = scmp.eq.s32.totalorder %s34, 1
      %p253 = scmp.ne.s32.totalorder %s248, %s250
      %p254 = scmp.eq.s32.totalorder %s34, 0
      %p255 = por %p253, %p254
      %p256 = scmp.ne.s32.totalorder %s248, %s250
      %p257 = scmp.eq.s32.totalorder %s39, 1
      %p258 = por %p256, %p257
      %p259 = scmp.ne.s32.totalorder %s250, %s251
      %p260 = scmp.eq.s32.totalorder %s39, 0
      %p261 = por %p259, %p260
      %p262 = scmp.ne.s32.totalorder %s250, %s251
      %p263 = scmp.eq.s32.totalorder %s40, 1
      %p264 = por %p262, %p263
      %p266 = scmp.ne.s32.totalorder %s251, %s265
      %p267 = scmp.eq.s32.totalorder %s40, 0
      %p268 = por %p266, %p267
      %s270 = sadd.s32 %s269, 1
      %p273 = scmp.eq.s32.totalorder %s34, 1
      %p274 = scmp.ne.s32.totalorder %s269, %s271
      %p275 = scmp.eq.s32.totalorder %s34, 0
      %p276 = por %p274, %p275
      %p277 = scmp.ne.s32.totalorder %s269, %s271
      %p278 = scmp.eq.s32.totalorder %s39, 1
      %p279 = por %p277, %p278
      %p280 = scmp.ne.s32.totalorder %s271, %s272
      %p281 = scmp.eq.s32.totalorder %s39, 0
      %p282 = por %p280, %p281
      %p283 = scmp.ne.s32.totalorder %s271, %s272
      %p284 = scmp.eq.s32.totalorder %s40, 1
      %p285 = por %p283, %p284
      %p287 = scmp.ne.s32.totalorder %s272, %s286
      %p288 = scmp.eq.s32.totalorder %s40, 0
      %p289 = por %p287, %p288
      %s291 = sadd.s32 %s290, 1
      %p294 = scmp.eq.s32.totalorder %s34, 1
      %p295 = scmp.ne.s32.totalorder %s290, %s292
      %p296 = scmp.eq.s32.totalorder %s34, 0
      %p297 = por %p295, %p296
      %p298 = scmp.ne.s32.totalorder %s290, %s292
      %p299 = scmp.eq.s32.totalorder %s39, 1
      %p300 = por %p298, %p299
      %p301 = scmp.ne.s32.totalorder %s292, %s293
      %p302 = scmp.eq.s32.totalorder %s39, 0
      %p303 = por %p301, %p302
      %p304 = scmp.ne.s32.totalorder %s292, %s293
      %p305 = scmp.eq.s32.totalorder %s40, 1
      %p306 = por %p304, %p305
      %p308 = scmp.ne.s32.totalorder %s293, %s307
      %p309 = scmp.eq.s32.totalorder %s40, 0
      %p310 = por %p308, %p309
      %s312 = sadd.s32 %s311, 1
      %p315 = scmp.eq.s32.totalorder %s34, 1
      %p316 = scmp.ne.s32.totalorder %s311, %s313
      %p317 = scmp.eq.s32.totalorder %s34, 0
      %p318 = por %p316, %p317
      %p319 = scmp.ne.s32.totalorder %s311, %s313
      %p320 = scmp.eq.s32.totalorder %s39, 1
      %p321 = por %p319, %p320
      %p322 = scmp.ne.s32.totalorder %s313, %s314
      %p323 = scmp.eq.s32.totalorder %s39, 0
      %p324 = por %p322, %p323
      %p325 = scmp.ne.s32.totalorder %s313, %s314
      %p326 = scmp.eq.s32.totalorder %s40, 1
      %p327 = por %p325, %p326
      %p329 = scmp.ne.s32.totalorder %s314, %s328
      %p330 = scmp.eq.s32.totalorder %s40, 0
      %p331 = por %p329, %p330
      %s333 = sadd.s32 %s332, 1
      %p336 = scmp.eq.s32.totalorder %s34, 1
      %p337 = scmp.ne.s32.totalorder %s332, %s334
      %p338 = scmp.eq.s32.totalorder %s34, 0
      %p339 = por %p337, %p338
      %p340 = scmp.ne.s32.totalorder %s332, %s334
      %p341 = scmp.eq.s32.totalorder %s39, 1
      %p342 = por %p340, %p341
      %p343 = scmp.ne.s32.totalorder %s334, %s335
      %p344 = scmp.eq.s32.totalorder %s39, 0
      %p345 = por %p343, %p344
      %p346 = scmp.ne.s32.totalorder %s334, %s335
      %p347 = scmp.eq.s32.totalorder %s40, 1
      %p348 = por %p346, %p347
      %p350 = scmp.ne.s32.totalorder %s335, %s349
      %p351 = scmp.eq.s32.totalorder %s40, 0
      %p352 = por %p350, %p351
      %s354 = sadd.s32 %s353, 1
      %p357 = scmp.eq.s32.totalorder %s34, 1
      %p358 = scmp.ne.s32.totalorder %s353, %s355
      %p359 = scmp.eq.s32.totalorder %s34, 0
      %p360 = por %p358, %p359
      %p361 = scmp.ne.s32.totalorder %s353, %s355
      %p362 = scmp.eq.s32.totalorder %s39, 1
      %p363 = por %p361, %p362
      %p364 = scmp.ne.s32.totalorder %s355, %s356
      %p365 = scmp.eq.s32.totalorder %s39, 0
      %p366 = por %p364, %p365
      %p367 = scmp.ne.s32.totalorder %s355, %s356
      %p368 = scmp.eq.s32.totalorder %s40, 1
      %p369 = por %p367, %p368
      %p371 = scmp.ne.s32.totalorder %s356, %s370
      %p372 = scmp.eq.s32.totalorder %s40, 0
      %p373 = por %p371, %p372
      %s374 = ssub.s32 %s41, %s53
      %s375 = ssub.s32 %s42, %s49
      %s376 = sor.u32 %s374, %s375
      %p377 = scmp.eq.s32.totalorder %s376, 0
      %s379 = sadd.s32 %s378, 1
      %s380 = scalar_select %p377, %s378, %s379
      %p383 = pneg %p377
      %p384 = scmp.eq.s32.totalorder %s34, 1
      %p385 = por %p383, %p384
      %p386 = scmp.ne.s32.totalorder %s378, %s381
      %p387 = scmp.eq.s32.totalorder %s34, 0
      %p388 = por %p386, %p387
      %p389 = scmp.ne.s32.totalorder %s378, %s381
      %p390 = scmp.eq.s32.totalorder %s39, 1
      %p391 = por %p389, %p390
      %p392 = scmp.ne.s32.totalorder %s381, %s382
      %p393 = scmp.eq.s32.totalorder %s39, 0
      %p394 = por %p392, %p393
      %p395 = scmp.ne.s32.totalorder %s381, %s382
      %p396 = scmp.eq.s32.totalorder %s40, 1
      %p397 = por %p395, %p396
      %p399 = scmp.ne.s32.totalorder %s382, %s398
      %p400 = scmp.eq.s32.totalorder %s40, 0
      %p401 = por %p399, %p400
      %p402 = scmp.le.s32.totalorder 1, %s34
      %p403 = scmp.lt.s32.totalorder %s34, 3
      %p404 = pnand %p402, %p403
      %p405 = pneg %p404
      // Predicated region
      $region9: #{tpu_custom_call.1} parent=5 // pred_check
        _
      $region10: #{tpu_custom_call.1} parent=5 // pred_check_branch
        %407 = sbr.rel (%p404) target = $region12
      $region11: #{tpu_custom_call.1} parent=5 // pred_region
        %s408 = ssub.s32 %s34, 1
        // Predicated region
        $region13: #{tpu_custom_call.1} parent=11 // pred_check
          %p409 = pneg %p93
        $region14: #{tpu_custom_call.1} parent=11 // pred_check_branch
          %411 = sbr.rel (%p409) target = $region16
        $region15: #{tpu_custom_call.1} parent=11 // pred_region
          %s413 = ssub.s32 256, 256
          %414 = vsyncadd [#allocation9], %s413
          %s415 = sshll.u32 [#allocation8], 4
          %s416 = int_to_ptr.vmem [resolvable:$true] %s415
          %421 = dma.hbm_to_vmem [thread:$0]  %s1, 256, %s416, [#allocation9], 64, 64, 4
        $region16: #{tpu_custom_call.1} parent=11 // pred_fallthru
          _
        // Predicated region
        $region17: #{tpu_custom_call.1} parent=11 // pred_check
          %p422 = pneg %p114
        $region18: #{tpu_custom_call.1} parent=11 // pred_check_branch
          %424 = sbr.rel (%p422) target = $region20
        $region19: #{tpu_custom_call.1} parent=11 // pred_region
          %s426 = ssub.s32 16, 16
          %427 = vsyncadd [#allocation9], %s426
          %s429 = sshll.u32 [#allocation10], 4
          %s430 = int_to_ptr.vmem [resolvable:$true] %s429
          %432 = dma.hbm_to_vmem [thread:$0]  %s2, 16, %s430, [#allocation9]
        $region20: #{tpu_custom_call.1} parent=11 // pred_fallthru
          _
        // Predicated region
        $region21: #{tpu_custom_call.1} parent=11 // pred_check
          %p433 = pneg %p135
        $region22: #{tpu_custom_call.1} parent=11 // pred_check_branch
          %435 = sbr.rel (%p433) target = $region24
        $region23: #{tpu_custom_call.1} parent=11 // pred_region
          %s437 = ssub.s32 256, 256
          %438 = vsyncadd [#allocation12], %s437
          %s439 = sshll.u32 [#allocation11], 4
          %s440 = int_to_ptr.vmem [resolvable:$true] %s439
          %445 = dma.hbm_to_vmem [thread:$0]  %s3, 256, %s440, [#allocation12], 64, 64, 4
        $region24: #{tpu_custom_call.1} parent=11 // pred_fallthru
          _
        // Predicated region
        $region25: #{tpu_custom_call.1} parent=11 // pred_check
          %p446 = pneg %p156
        $region26: #{tpu_custom_call.1} parent=11 // pred_check_branch
          %448 = sbr.rel (%p446) target = $region28
        $region27: #{tpu_custom_call.1} parent=11 // pred_region
          %s450 = ssub.s32 16, 16
          %451 = vsyncadd [#allocation12], %s450
          %s453 = sshll.u32 [#allocation13], 4
          %s454 = int_to_ptr.vmem [resolvable:$true] %s453
          %456 = dma.hbm_to_vmem [thread:$0]  %s4, 16, %s454, [#allocation12]
        $region28: #{tpu_custom_call.1} parent=11 // pred_fallthru
          _
        // Predicated region
        $region29: #{tpu_custom_call.1} parent=11 // pred_check
          %p457 = pneg %p177
        $region30: #{tpu_custom_call.1} parent=11 // pred_check_branch
          %459 = sbr.rel (%p457) target = $region32
        $region31: #{tpu_custom_call.1} parent=11 // pred_region
          %s461 = ssub.s32 256, 256
          %462 = vsyncadd [#allocation15], %s461
          %s463 = sshll.u32 [#allocation14], 4
          %s464 = int_to_ptr.vmem [resolvable:$true] %s463
          %469 = dma.hbm_to_vmem [thread:$0]  %s5, 256, %s464, [#allocation15], 64, 64, 4
        $region32: #{tpu_custom_call.1} parent=11 // pred_fallthru
          _
        // Predicated region
        $region33: #{tpu_custom_call.1} parent=11 // pred_check
          %p470 = pneg %p198
        $region34: #{tpu_custom_call.1} parent=11 // pred_check_branch
          %472 = sbr.rel (%p470) target = $region36
        $region35: #{tpu_custom_call.1} parent=11 // pred_region
          %s474 = ssub.s32 16, 16
          %475 = vsyncadd [#allocation15], %s474
          %s477 = sshll.u32 [#allocation16], 4
          %s478 = int_to_ptr.vmem [resolvable:$true] %s477
          %480 = dma.hbm_to_vmem [thread:$0]  %s6, 16, %s478, [#allocation15]
        $region36: #{tpu_custom_call.1} parent=11 // pred_fallthru
          _
        // Predicated region
        $region37: #{tpu_custom_call.1} parent=11 // pred_check
          %p481 = pneg %p219
        $region38: #{tpu_custom_call.1} parent=11 // pred_check_branch
          %483 = sbr.rel (%p481) target = $region40
        $region39: #{tpu_custom_call.1} parent=11 // pred_region
          %s485 = ssub.s32 256, 256
          %486 = vsyncadd [#allocation18], %s485
          %s487 = sshll.u32 [#allocation17], 4
          %s488 = int_to_ptr.vmem [resolvable:$true] %s487
          %493 = dma.hbm_to_vmem [thread:$0]  %s7, 256, %s488, [#allocation18], 64, 64, 4
        $region40: #{tpu_custom_call.1} parent=11 // pred_fallthru
          _
        // Predicated region
        $region41: #{tpu_custom_call.1} parent=11 // pred_check
          %p494 = pneg %p240
        $region42: #{tpu_custom_call.1} parent=11 // pred_check_branch
          %496 = sbr.rel (%p494) target = $region44
        $region43: #{tpu_custom_call.1} parent=11 // pred_region
          %s498 = ssub.s32 16, 16
          %499 = vsyncadd [#allocation18], %s498
          %s501 = sshll.u32 [#allocation19], 4
          %s502 = int_to_ptr.vmem [resolvable:$true] %s501
          %504 = dma.hbm_to_vmem [thread:$0]  %s8, 16, %s502, [#allocation18]
        $region44: #{tpu_custom_call.1} parent=11 // pred_fallthru
          _
        // Predicated region
        $region45: #{tpu_custom_call.1} parent=11 // pred_check
          %p505 = pneg %p261
        $region46: #{tpu_custom_call.1} parent=11 // pred_check_branch
          %507 = sbr.rel (%p505) target = $region48
        $region47: #{tpu_custom_call.1} parent=11 // pred_region
          %s509 = ssub.s32 512, 512
          %510 = vsyncadd [#allocation21], %s509
          %s511 = sshll.u32 [#allocation20], 4
          %s512 = int_to_ptr.vmem [resolvable:$true] %s511
          %517 = dma.hbm_to_vmem [thread:$0]  %s9, 512, %s512, [#allocation21], 64, 64, 4
        $region48: #{tpu_custom_call.1} parent=11 // pred_fallthru
          _
        // Predicated region
        $region49: #{tpu_custom_call.1} parent=11 // pred_check
          %p518 = pneg %p282
        $region50: #{tpu_custom_call.1} parent=11 // pred_check_branch
          %520 = sbr.rel (%p518) target = $region52
        $region51: #{tpu_custom_call.1} parent=11 // pred_region
          %s522 = ssub.s32 16, 16
          %523 = vsyncadd [#allocation21], %s522
          %s525 = sshll.u32 [#allocation22], 4
          %s526 = int_to_ptr.vmem [resolvable:$true] %s525
          %528 = dma.hbm_to_vmem [thread:$0]  %s10, 16, %s526, [#allocation21]
        $region52: #{tpu_custom_call.1} parent=11 // pred_fallthru
          _
        // Predicated region
        $region53: #{tpu_custom_call.1} parent=11 // pred_check
          %p529 = pneg %p303
        $region54: #{tpu_custom_call.1} parent=11 // pred_check_branch
          %531 = sbr.rel (%p529) target = $region56
        $region55: #{tpu_custom_call.1} parent=11 // pred_region
          %s533 = ssub.s32 16, 16
          %534 = vsyncadd [#allocation24], %s533
          %s536 = sshll.u32 [#allocation23], 4
          %s537 = int_to_ptr.vmem [resolvable:$true] %s536
          %539 = dma.hbm_to_vmem [thread:$0]  %s11, 16, %s537, [#allocation24]
        $region56: #{tpu_custom_call.1} parent=11 // pred_fallthru
          _
        // Predicated region
        $region57: #{tpu_custom_call.1} parent=11 // pred_check
          %p540 = pneg %p324
        $region58: #{tpu_custom_call.1} parent=11 // pred_check_branch
          %542 = sbr.rel (%p540) target = $region60
        $region59: #{tpu_custom_call.1} parent=11 // pred_region
          %s544 = ssub.s32 16, 16
          %545 = vsyncadd [#allocation24], %s544
          %s547 = sshll.u32 [#allocation25], 4
          %s548 = int_to_ptr.vmem [resolvable:$true] %s547
          %550 = dma.hbm_to_vmem [thread:$0]  %s12, 16, %s548, [#allocation24]
        $region60: #{tpu_custom_call.1} parent=11 // pred_fallthru
          _
        // Predicated region
        $region61: #{tpu_custom_call.1} parent=11 // pred_check
          %p551 = pneg %p345
        $region62: #{tpu_custom_call.1} parent=11 // pred_check_branch
          %553 = sbr.rel (%p551) target = $region64
        $region63: #{tpu_custom_call.1} parent=11 // pred_region
          %s555 = ssub.s32 16, 16
          %556 = vsyncadd [#allocation27], %s555
          %s558 = sshll.u32 [#allocation26], 4
          %s559 = int_to_ptr.vmem [resolvable:$true] %s558
          %561 = dma.hbm_to_vmem [thread:$0]  %s13, 16, %s559, [#allocation27]
        $region64: #{tpu_custom_call.1} parent=11 // pred_fallthru
          _
        // Predicated region
        $region65: #{tpu_custom_call.1} parent=11 // pred_check
          %p562 = pneg %p366
        $region66: #{tpu_custom_call.1} parent=11 // pred_check_branch
          %564 = sbr.rel (%p562) target = $region68
        $region67: #{tpu_custom_call.1} parent=11 // pred_region
          %s566 = ssub.s32 16, 16
          %567 = vsyncadd [#allocation27], %s566
          %s569 = sshll.u32 [#allocation28], 4
          %s570 = int_to_ptr.vmem [resolvable:$true] %s569
          %572 = dma.hbm_to_vmem [thread:$0]  %s14, 16, %s570, [#allocation27]
        $region68: #{tpu_custom_call.1} parent=11 // pred_fallthru
          _
      $region12: #{tpu_custom_call.1} parent=5 // pred_fallthru
        _
      %p573 = scmp.lt.s32.totalorder %s34, 2
      // Predicated region
      $region69: #{tpu_custom_call.1} parent=5 // pred_check
        %p574 = pneg %p573
      $region70: #{tpu_custom_call.1} parent=5 // pred_check_branch
        %576 = sbr.rel (%p574) target = $region72
      $region71: #{tpu_custom_call.1} parent=5 // pred_region
        // Predicated region
        $region73: #{tpu_custom_call.1} parent=71 // pred_check
          %p577 = pneg %p66
        $region74: #{tpu_custom_call.1} parent=71 // pred_check_branch
          %579 = sbr.rel (%p577) target = $region76
        $region75: #{tpu_custom_call.1} parent=71 // pred_region
          %s580 = sand.u32 %s56, 1
          %s581 = scalar_lea.sflag [#allocation6], %s580
          %s582 = sand.u32 %s56, 1
          %s583 = smul.addr %s582, 8
          %s584 = scalar_lea.vmem [#allocation5], %s583
          %s586 = ssub.s32 128, 128
          %587 = vsyncadd %s581, %s586
          %s588 = smul.addr %s41, 128
          %s589 = scalar_lea.hbm %s0, %s588
          %s591 = sshll.u32 %s584, 4
          %s592 = int_to_ptr.vmem [resolvable:$true] %s591
          %594 = dma.hbm_to_vmem [thread:$0]  %s589, 128, %s592, %s581
        $region76: #{tpu_custom_call.1} parent=71 // pred_fallthru
          _
      $region72: #{tpu_custom_call.1} parent=5 // pred_fallthru
        _
      %p595 = scmp.le.s32.totalorder 1, %s34
      %p596 = scmp.lt.s32.totalorder %s34, 3
      %p597 = pnand %p595, %p596
      %p598 = pneg %p597
      // Predicated region
      $region77: #{tpu_custom_call.1} parent=5 // pred_check
        _
      $region78: #{tpu_custom_call.1} parent=5 // pred_check_branch
        %600 = sbr.rel (%p597) target = $region80
      $region79: #{tpu_custom_call.1} parent=5 // pred_region
        %s601 = ssub.s32 %s34, 1
        %s602 = sand.u32 %s59, 1
        %s603 = scalar_lea.sflag [#allocation6], %s602
        %s604 = sand.u32 %s59, 1
        %s605 = smul.addr %s604, 8
        %s606 = scalar_lea.vmem [#allocation5], %s605
        // Predicated region
        $region81: #{tpu_custom_call.1} parent=79 // pred_check
          %p607 = pneg %p72
        $region82: #{tpu_custom_call.1} parent=79 // pred_check_branch
          %609 = sbr.rel (%p607) target = $region84
        $region83: #{tpu_custom_call.1} parent=79 // pred_region
          %610 = dma.done %s603, 128
        $region84: #{tpu_custom_call.1} parent=79 // pred_fallthru
          _
        // Predicated region
        $region85: #{tpu_custom_call.1} parent=79 // pred_check
          %p611 = pneg %p93
        $region86: #{tpu_custom_call.1} parent=79 // pred_check_branch
          %613 = sbr.rel (%p611) target = $region88
        $region87: #{tpu_custom_call.1} parent=79 // pred_region
          %614 = dma.done [#allocation9], 256
        $region88: #{tpu_custom_call.1} parent=79 // pred_fallthru
          _
        // Predicated region
        $region89: #{tpu_custom_call.1} parent=79 // pred_check
          %p615 = pneg %p114
        $region90: #{tpu_custom_call.1} parent=79 // pred_check_branch
          %617 = sbr.rel (%p615) target = $region92
        $region91: #{tpu_custom_call.1} parent=79 // pred_region
          %618 = dma.done [#allocation9], 16
        $region92: #{tpu_custom_call.1} parent=79 // pred_fallthru
          _
        // Predicated region
        $region93: #{tpu_custom_call.1} parent=79 // pred_check
          %p619 = pneg %p135
        $region94: #{tpu_custom_call.1} parent=79 // pred_check_branch
          %621 = sbr.rel (%p619) target = $region96
        $region95: #{tpu_custom_call.1} parent=79 // pred_region
          %622 = dma.done [#allocation12], 256
        $region96: #{tpu_custom_call.1} parent=79 // pred_fallthru
          _
        // Predicated region
        $region97: #{tpu_custom_call.1} parent=79 // pred_check
          %p623 = pneg %p156
        $region98: #{tpu_custom_call.1} parent=79 // pred_check_branch
          %625 = sbr.rel (%p623) target = $region100
        $region99: #{tpu_custom_call.1} parent=79 // pred_region
          %626 = dma.done [#allocation12], 16
        $region100: #{tpu_custom_call.1} parent=79 // pred_fallthru
          _
        // Predicated region
        $region101: #{tpu_custom_call.1} parent=79 // pred_check
          %p627 = pneg %p177
        $region102: #{tpu_custom_call.1} parent=79 // pred_check_branch
          %629 = sbr.rel (%p627) target = $region104
        $region103: #{tpu_custom_call.1} parent=79 // pred_region
          %630 = dma.done [#allocation15], 256
        $region104: #{tpu_custom_call.1} parent=79 // pred_fallthru
          _
        // Predicated region
        $region105: #{tpu_custom_call.1} parent=79 // pred_check
          %p631 = pneg %p198
        $region106: #{tpu_custom_call.1} parent=79 // pred_check_branch
          %633 = sbr.rel (%p631) target = $region108
        $region107: #{tpu_custom_call.1} parent=79 // pred_region
          %634 = dma.done [#allocation15], 16
        $region108: #{tpu_custom_call.1} parent=79 // pred_fallthru
          _
        // Predicated region
        $region109: #{tpu_custom_call.1} parent=79 // pred_check
          %p635 = pneg %p219
        $region110: #{tpu_custom_call.1} parent=79 // pred_check_branch
          %637 = sbr.rel (%p635) target = $region112
        $region111: #{tpu_custom_call.1} parent=79 // pred_region
          %638 = dma.done [#allocation18], 256
        $region112: #{tpu_custom_call.1} parent=79 // pred_fallthru
          _
        // Predicated region
        $region113: #{tpu_custom_call.1} parent=79 // pred_check
          %p639 = pneg %p240
        $region114: #{tpu_custom_call.1} parent=79 // pred_check_branch
          %641 = sbr.rel (%p639) target = $region116
        $region115: #{tpu_custom_call.1} parent=79 // pred_region
          %642 = dma.done [#allocation18], 16
        $region116: #{tpu_custom_call.1} parent=79 // pred_fallthru
          _
        // Predicated region
        $region117: #{tpu_custom_call.1} parent=79 // pred_check
          %p643 = pneg %p261
        $region118: #{tpu_custom_call.1} parent=79 // pred_check_branch
          %645 = sbr.rel (%p643) target = $region120
        $region119: #{tpu_custom_call.1} parent=79 // pred_region
          %646 = dma.done [#allocation21], 512
        $region120: #{tpu_custom_call.1} parent=79 // pred_fallthru
          _
        // Predicated region
        $region121: #{tpu_custom_call.1} parent=79 // pred_check
          %p647 = pneg %p282
        $region122: #{tpu_custom_call.1} parent=79 // pred_check_branch
          %649 = sbr.rel (%p647) target = $region124
        $region123: #{tpu_custom_call.1} parent=79 // pred_region
          %650 = dma.done [#allocation21], 16
        $region124: #{tpu_custom_call.1} parent=79 // pred_fallthru
          _
        // Predicated region
        $region125: #{tpu_custom_call.1} parent=79 // pred_check
          %p651 = pneg %p303
        $region126: #{tpu_custom_call.1} parent=79 // pred_check_branch
          %653 = sbr.rel (%p651) target = $region128
        $region127: #{tpu_custom_call.1} parent=79 // pred_region
          %654 = dma.done [#allocation24], 16
        $region128: #{tpu_custom_call.1} parent=79 // pred_fallthru
          _
        // Predicated region
        $region129: #{tpu_custom_call.1} parent=79 // pred_check
          %p655 = pneg %p324
        $region130: #{tpu_custom_call.1} parent=79 // pred_check_branch
          %657 = sbr.rel (%p655) target = $region132
        $region131: #{tpu_custom_call.1} parent=79 // pred_region
          %658 = dma.done [#allocation24], 16
        $region132: #{tpu_custom_call.1} parent=79 // pred_fallthru
          _
        // Predicated region
        $region133: #{tpu_custom_call.1} parent=79 // pred_check
          %p659 = pneg %p345
        $region134: #{tpu_custom_call.1} parent=79 // pred_check_branch
          %661 = sbr.rel (%p659) target = $region136
        $region135: #{tpu_custom_call.1} parent=79 // pred_region
          %662 = dma.done [#allocation27], 16
        $region136: #{tpu_custom_call.1} parent=79 // pred_fallthru
          _
        // Predicated region
        $region137: #{tpu_custom_call.1} parent=79 // pred_check
          %p663 = pneg %p366
        $region138: #{tpu_custom_call.1} parent=79 // pred_check_branch
          %665 = sbr.rel (%p663) target = $region140
        $region139: #{tpu_custom_call.1} parent=79 // pred_region
          %666 = dma.done [#allocation27], 16
        $region140: #{tpu_custom_call.1} parent=79 // pred_fallthru
          _
        %s667 = sand.u32 %s59, 1
        %s668 = scalar_lea.sflag [#allocation6], %s667
        %s669 = sand.u32 %s59, 1
        %s670 = smul.addr %s669, 8
        %s671 = scalar_lea.vmem [#allocation5], %s670
        %p672 = pneg %p72
        %p673 = pneg %p69
        %p674 = pneg %p93
        %p675 = pneg %p90
        %p676 = pneg %p114
        %p677 = pneg %p111
        %p678 = pneg %p135
        %p679 = pneg %p132
        %p680 = pneg %p156
        %p681 = pneg %p153
        %p682 = pneg %p177
        %p683 = pneg %p174
        %p684 = pneg %p198
        %p685 = pneg %p195
        %p686 = pneg %p219
        %p687 = pneg %p216
        %p688 = pneg %p240
        %p689 = pneg %p237
        %p690 = pneg %p261
        %p691 = pneg %p258
        %p692 = pneg %p282
        %p693 = pneg %p279
        %p694 = pneg %p303
        %p695 = pneg %p300
        %p696 = pneg %p324
        %p697 = pneg %p321
        %p698 = pneg %p345
        %p699 = pneg %p342
        %p700 = pneg %p366
        %p701 = pneg %p363
        %p702 = pneg %p394
        %p703 = pneg %p391
        %s704 = sand.u32 %s381, 1
        %s705 = scalar_lea.sflag [#allocation7], %s704
        %s706 = sand.u32 %s381, 1
        %s707 = smul.addr %s706, 8
        %s708 = scalar_lea.vmem [#allocation29], %s707
        %p710 = scmp.eq.s32.totalorder %s44, 0
        // Predicated region
        $region141: #{tpu_custom_call.1} parent=79 // pred_check
          %p711 = pneg %p710
        $region142: #{tpu_custom_call.1} parent=79 // pred_check_branch
          %713 = sbr.rel (%p711) target = $region144
        $region143: #{tpu_custom_call.1} parent=79 // pred_region
          %v714 = vld [vmem:[%s606] sm:$0xff]
          %v715 = vpack.c.bf16 %v714, %v714
          %v716 = vld [vmem:[#allocation11] sm:$0xf]
          %v717 = vld [vmem:[#allocation11 + $0x4] sm:$0xf]
          %v718 = vld [vmem:[#allocation11 + $0x8] sm:$0xf]
          %v719 = vld [vmem:[#allocation11 + $0xc] sm:$0xf]
          %v720 = vld [vmem:[#allocation13] sm:$0x1]
          %v722 = vlaneseq
          %v723 = vshrl.u32 %v722, 7
          %v724 = vsub.s32 0, %v723
          %v725 = vrot.slane %v720, %v724
          %v731 = vunpack.c.l.b16 %v716
          %v732 = vunpack.c.l.b16 %v717
          %v733 = vunpack.c.l.b16 %v718
          %v734 = vunpack.c.l.b16 %v719
          %v735 = vpack.c.b16 %v732, %v731
          %v736 = vpack.c.b16 %v734, %v733
          %vm739 = vcmask 261120
          %v741 = vsel %vm739, %v715, 0
          %743 = vmatprep.subr.bf16.mxu0 0
          %744 = vmatpush1.bf16.msra.mxu0 %v735
          %745 = vmatprep.subr.bf16.mxu0 0
          %746 = vmatpush1.bf16.msra.mxu0 %v736
          %747 = vmatprep.subr.bf16.mxu0 0
          %748 = vmatpush1.bf16.msra.mxu0 0
          %749 = vmatprep.subr.bf16.mxu0 0
          %750 = vmatpush1.bf16.msra.mxu0 0
          %751 = vmatprep.subr.bf16.mxu0 0
          %752 = vmatpush1.bf16.msra.mxu0 0
          %753 = vmatprep.subr.bf16.mxu0 0
          %754 = vmatpush1.bf16.msra.mxu0 0
          %755 = vmatprep.subr.bf16.mxu0 0
          %756 = vmatpush1.bf16.msra.mxu0 0
          %757 = vmatprep.subr.bf16.mxu0 0
          %758 = vmatpush1.bf16.msra.mxu0 0
          %759 = vmatprep.subr.bf16.mxu0 0
          %760 = vmatpush1.bf16.msra.mxu0 0
          %761 = vmatprep.subr.bf16.mxu0 0
          %762 = vmatpush1.bf16.msra.mxu0 0
          %763 = vmatprep.subr.bf16.mxu0 0
          %764 = vmatpush1.bf16.msra.mxu0 0
          %765 = vmatprep.subr.bf16.mxu0 0
          %766 = vmatpush1.bf16.msra.mxu0 0
          %767 = vmatprep.subr.bf16.mxu0 0
          %768 = vmatpush1.bf16.msra.mxu0 0
          %769 = vmatprep.subr.bf16.mxu0 0
          %770 = vmatpush1.bf16.msra.mxu0 0
          %771 = vmatprep.subr.bf16.mxu0 0
          %772 = vmatpush1.bf16.msra.mxu0 0
          %773 = vmatprep.subr.bf16.mxu0 0
          %774 = vmatpush1.bf16.msra.mxu0 0
          %775 = vmatprep.mubr.bf16.mxu0 0
          %776 = vmatmul.mubr.bf16.gmra.mrb[0].mxu0 %v741
          %v777 = vpop.f32.mrb[0].mxu0
          %v778 = vadd.f32 %v725, %v777
          %v779 = vpop.f32.mrb[0].mxu0
          %v780 = vpop.f32.mrb[0].mxu0
          %v781 = vpop.f32.mrb[0].mxu0
          %782 = vdwg.mxu0
          %v783 = vpack.c.bf16 %v778, %v778
          %vm784 = vcmask 257024
          %785 = vst.msk [vmem:[#allocation2] sm:$0xf] %vm784, %v783
          %v787 = vunpack.c.l.b16 %v783
          %v788 = vpack.c.b16 %v787, %v787
          %789 = vrot.lane.b32.xlu0 %v788, 96
          %v790 = vpop.permute.xlu0 %789
          %792 = vst.msk [vmem:[#allocation3] sm:$0xf] %vm784, %v790
        $region144: #{tpu_custom_call.1} parent=79 // pred_fallthru
          _
        %s793 = smul.u32 %s44, 8
        %s794 = scalar_lea.vmem %s606, %s793 [#allocation5]
        %v795 = vld [vmem:[%s794] sm:$0xff]
        %v796 = vpack.c.bf16 %v795, %v795
        %v797 = vld [vmem:[#allocation8] sm:$0xf]
        %v798 = vld [vmem:[#allocation8 + $0x4] sm:$0xf]
        %v799 = vld [vmem:[#allocation8 + $0x8] sm:$0xf]
        %v800 = vld [vmem:[#allocation8 + $0xc] sm:$0xf]
        %v801 = vld [vmem:[#allocation10] sm:$0x1]
        %v803 = vlaneseq
        %v804 = vshrl.u32 %v803, 7
        %v805 = vsub.s32 0, %v804
        %v806 = vrot.slane %v801, %v805
        %v812 = vunpack.c.l.b16 %v797
        %v813 = vunpack.c.l.b16 %v798
        %v814 = vunpack.c.l.b16 %v799
        %v815 = vunpack.c.l.b16 %v800
        %v816 = vpack.c.b16 %v813, %v812
        %v817 = vpack.c.b16 %v815, %v814
        %vm820 = vcmask 261120
        %v822 = vsel %vm820, %v796, 0
        %824 = vmatprep.subr.bf16.mxu0 0
        %825 = vmatpush1.bf16.msra.mxu0 %v816
        %826 = vmatprep.subr.bf16.mxu0 0
        %827 = vmatpush1.bf16.msra.mxu0 %v817
        %828 = vmatprep.subr.bf16.mxu0 0
        %829 = vmatpush1.bf16.msra.mxu0 0
        %830 = vmatprep.subr.bf16.mxu0 0
        %831 = vmatpush1.bf16.msra.mxu0 0
        %832 = vmatprep.subr.bf16.mxu0 0
        %833 = vmatpush1.bf16.msra.mxu0 0
        %834 = vmatprep.subr.bf16.mxu0 0
        %835 = vmatpush1.bf16.msra.mxu0 0
        %836 = vmatprep.subr.bf16.mxu0 0
        %837 = vmatpush1.bf16.msra.mxu0 0
        %838 = vmatprep.subr.bf16.mxu0 0
        %839 = vmatpush1.bf16.msra.mxu0 0
        %840 = vmatprep.subr.bf16.mxu0 0
        %841 = vmatpush1.bf16.msra.mxu0 0
        %842 = vmatprep.subr.bf16.mxu0 0
        %843 = vmatpush1.bf16.msra.mxu0 0
        %844 = vmatprep.subr.bf16.mxu0 0
        %845 = vmatpush1.bf16.msra.mxu0 0
        %846 = vmatprep.subr.bf16.mxu0 0
        %847 = vmatpush1.bf16.msra.mxu0 0
        %848 = vmatprep.subr.bf16.mxu0 0
        %849 = vmatpush1.bf16.msra.mxu0 0
        %850 = vmatprep.subr.bf16.mxu0 0
        %851 = vmatpush1.bf16.msra.mxu0 0
        %852 = vmatprep.subr.bf16.mxu0 0
        %853 = vmatpush1.bf16.msra.mxu0 0
        %854 = vmatprep.subr.bf16.mxu0 0
        %855 = vmatpush1.bf16.msra.mxu0 0
        %856 = vmatprep.mubr.bf16.mxu0 0
        %857 = vmatmul.mubr.bf16.gmra.mrb[0].mxu0 %v822
        %v858 = vpop.f32.mrb[0].mxu0
        %v859 = vadd.f32 %v806, %v858
        %v860 = vpop.f32.mrb[0].mxu0
        %v861 = vpop.f32.mrb[0].mxu0
        %v862 = vpop.f32.mrb[0].mxu0
        %863 = vdwg.mxu0
        %v864 = vpack.c.bf16 %v859, %v859
        %v865 = vld [vmem:[#allocation2] sm:$0xf]
        %v866 = vld [vmem:[#allocation3] sm:$0xf]
        %vm867 = vcmask 64512
        %v869 = vsel %vm867, %v864, 0
        %v872 = vsel %vm867, %v865, 0
        %874 = vmatprep.subr.bf16.mxu0 0
        %875 = vmatpush1.bf16.xpose.msra.mxu0 %v872
        %876 = vmatprep.subr.bf16.mxu0 0
        %877 = vmatpush1.bf16.xpose.msra.mxu0 0
        %878 = vmatprep.subr.bf16.mxu0 0
        %879 = vmatpush1.bf16.xpose.msra.mxu0 0
        %880 = vmatprep.subr.bf16.mxu0 0
        %881 = vmatpush1.bf16.xpose.msra.mxu0 0
        %882 = vmatprep.subr.bf16.mxu0 0
        %883 = vmatpush1.bf16.xpose.msra.mxu0 0
        %884 = vmatprep.subr.bf16.mxu0 0
        %885 = vmatpush1.bf16.xpose.msra.mxu0 0
        %886 = vmatprep.subr.bf16.mxu0 0
        %887 = vmatpush1.bf16.xpose.msra.mxu0 0
        %888 = vmatprep.subr.bf16.mxu0 0
        %889 = vmatpush1.bf16.xpose.msra.mxu0 0
        %890 = vmatprep.subr.bf16.mxu0 0
        %891 = vmatpush1.bf16.xpose.msra.mxu0 0
        %892 = vmatprep.subr.bf16.mxu0 0
        %893 = vmatpush1.bf16.xpose.msra.mxu0 0
        %894 = vmatprep.subr.bf16.mxu0 0
        %895 = vmatpush1.bf16.xpose.msra.mxu0 0
        %896 = vmatprep.subr.bf16.mxu0 0
        %897 = vmatpush1.bf16.xpose.msra.mxu0 0
        %898 = vmatprep.subr.bf16.mxu0 0
        %899 = vmatpush1.bf16.xpose.msra.mxu0 0
        %900 = vmatprep.subr.bf16.mxu0 0
        %901 = vmatpush1.bf16.xpose.msra.mxu0 0
        %902 = vmatprep.subr.bf16.mxu0 0
        %903 = vmatpush1.bf16.xpose.msra.mxu0 0
        %904 = vmatprep.subr.bf16.mxu0 0
        %905 = vmatpush1.bf16.xpose.msra.mxu0 0
        %906 = vmatprep.mubr.bf16.mxu0 0
        %907 = vmatmul.mubr.bf16.gmra.mrb[0].mxu0 %v869
        %v908 = vpop.f32.mrb[0].mxu0
        %v909 = vadd.f32 0.0, %v908
        %v910 = vpop.f32.mrb[0].mxu0
        %v911 = vpop.f32.mrb[0].mxu0
        %v912 = vpop.f32.mrb[0].mxu0
        %913 = vdwg.mxu0
        %v914 = vsel %vm867, %v909, -inf
        %915 = vmax.xlane.f32.xlu0 %v914
        %v916 = vpop.xlane.xlu0 %915
        %v917 = vsub.f32 %v909, %v916
        %v918 = vmul.f32 %v917, 1.442695
        %v919 = vpow.pop %v918
        %v920 = vsel %vm867, %v919, 0.0
        %921 = vadd.xlane.f32.xlu0 %v920
        %v922 = vpop.xlane.xlu0 %921
        %v923 = vrcp.pop %v922
        %v924 = vmul.f32 %v919, %v923
        %v925 = vpack.c.bf16 %v924, %v924
        %v927 = vsel %vm867, %v925, 0
        %vm929 = vcmask 1043456
        %v931 = vsel %vm929, %v866, 0
        %933 = vmatprep.subr.bf16.mxu0 0
        %934 = vmatpush1.bf16.msra.mxu0 %v931
        %935 = vmatprep.subr.bf16.mxu0 0
        %936 = vmatpush1.bf16.msra.mxu0 0
        %937 = vmatprep.subr.bf16.mxu0 0
        %938 = vmatpush1.bf16.msra.mxu0 0
        %939 = vmatprep.subr.bf16.mxu0 0
        %940 = vmatpush1.bf16.msra.mxu0 0
        %941 = vmatprep.subr.bf16.mxu0 0
        %942 = vmatpush1.bf16.msra.mxu0 0
        %943 = vmatprep.subr.bf16.mxu0 0
        %944 = vmatpush1.bf16.msra.mxu0 0
        %945 = vmatprep.subr.bf16.mxu0 0
        %946 = vmatpush1.bf16.msra.mxu0 0
        %947 = vmatprep.subr.bf16.mxu0 0
        %948 = vmatpush1.bf16.msra.mxu0 0
        %949 = vmatprep.subr.bf16.mxu0 0
        %950 = vmatpush1.bf16.msra.mxu0 0
        %951 = vmatprep.subr.bf16.mxu0 0
        %952 = vmatpush1.bf16.msra.mxu0 0
        %953 = vmatprep.subr.bf16.mxu0 0
        %954 = vmatpush1.bf16.msra.mxu0 0
        %955 = vmatprep.subr.bf16.mxu0 0
        %956 = vmatpush1.bf16.msra.mxu0 0
        %957 = vmatprep.subr.bf16.mxu0 0
        %958 = vmatpush1.bf16.msra.mxu0 0
        %959 = vmatprep.subr.bf16.mxu0 0
        %960 = vmatpush1.bf16.msra.mxu0 0
        %961 = vmatprep.subr.bf16.mxu0 0
        %962 = vmatpush1.bf16.msra.mxu0 0
        %963 = vmatprep.subr.bf16.mxu0 0
        %964 = vmatpush1.bf16.msra.mxu0 0
        %965 = vmatprep.mubr.bf16.mxu0 0
        %966 = vmatmul.mubr.bf16.gmra.mrb[0].mxu0 %v927
        %v967 = vpop.f32.mrb[0].mxu0
        %v968 = vadd.f32 0.0, %v967
        %v969 = vpop.f32.mrb[0].mxu0
        %v970 = vpop.f32.mrb[0].mxu0
        %v971 = vpop.f32.mrb[0].mxu0
        %972 = vdwg.mxu0
        %v973 = vpack.c.bf16 %v968, %v968
        %vm974 = vcmask 60416
        %975 = vst.msk [vmem:[#allocation4] sm:$0xf] %vm974, %v973
        %977 = vrot.lane.b32.xlu0 %v864, 120
        %v978 = vpop.permute.xlu0 %977
        %v980 = vunpack.c.l.b16 %v865
        %v981 = vpack.c.b16 %v980, %v980
        %982 = vrot.lane.b32.xlu0 %v981, 120
        %v983 = vpop.permute.xlu0 %982
        %v985 = vsel %vm867, %v978, 0
        %v988 = vsel %vm867, %v983, 0
        %990 = vmatprep.subr.bf16.mxu0 0
        %991 = vmatpush1.bf16.xpose.msra.mxu0 %v988
        %992 = vmatprep.subr.bf16.mxu0 0
        %993 = vmatpush1.bf16.xpose.msra.mxu0 0
        %994 = vmatprep.subr.bf16.mxu0 0
        %995 = vmatpush1.bf16.xpose.msra.mxu0 0
        %996 = vmatprep.subr.bf16.mxu0 0
        %997 = vmatpush1.bf16.xpose.msra.mxu0 0
        %998 = vmatprep.subr.bf16.mxu0 0
        %999 = vmatpush1.bf16.xpose.msra.mxu0 0
        %1000 = vmatprep.subr.bf16.mxu0 0
        %1001 = vmatpush1.bf16.xpose.msra.mxu0 0
        %1002 = vmatprep.subr.bf16.mxu0 0
        %1003 = vmatpush1.bf16.xpose.msra.mxu0 0
        %1004 = vmatprep.subr.bf16.mxu0 0
        %1005 = vmatpush1.bf16.xpose.msra.mxu0 0
        %1006 = vmatprep.subr.bf16.mxu0 0
        %1007 = vmatpush1.bf16.xpose.msra.mxu0 0
        %1008 = vmatprep.subr.bf16.mxu0 0
        %1009 = vmatpush1.bf16.xpose.msra.mxu0 0
        %1010 = vmatprep.subr.bf16.mxu0 0
        %1011 = vmatpush1.bf16.xpose.msra.mxu0 0
        %1012 = vmatprep.subr.bf16.mxu0 0
        %1013 = vmatpush1.bf16.xpose.msra.mxu0 0
        %1014 = vmatprep.subr.bf16.mxu0 0
        %1015 = vmatpush1.bf16.xpose.msra.mxu0 0
        %1016 = vmatprep.subr.bf16.mxu0 0
        %1017 = vmatpush1.bf16.xpose.msra.mxu0 0
        %1018 = vmatprep.subr.bf16.mxu0 0
        %1019 = vmatpush1.bf16.xpose.msra.mxu0 0
        %1020 = vmatprep.subr.bf16.mxu0 0
        %1021 = vmatpush1.bf16.xpose.msra.mxu0 0
        %1022 = vmatprep.mubr.bf16.mxu0 0
        %1023 = vmatmul.mubr.bf16.gmra.mrb[0].mxu0 %v985
        %v1024 = vpop.f32.mrb[0].mxu0
        %v1025 = vadd.f32 0.0, %v1024
        %v1026 = vpop.f32.mrb[0].mxu0
        %v1027 = vpop.f32.mrb[0].mxu0
        %v1028 = vpop.f32.mrb[0].mxu0
        %1029 = vdwg.mxu0
        %v1030 = vsel %vm867, %v1025, -inf
        %1031 = vmax.xlane.f32.xlu0 %v1030
        %v1032 = vpop.xlane.xlu0 %1031
        %v1033 = vsub.f32 %v1025, %v1032
        %v1034 = vmul.f32 %v1033, 1.442695
        %v1035 = vpow.pop %v1034
        %v1036 = vsel %vm867, %v1035, 0.0
        %1037 = vadd.xlane.f32.xlu0 %v1036
        %v1038 = vpop.xlane.xlu0 %1037
        %v1039 = vrcp.pop %v1038
        %v1040 = vmul.f32 %v1035, %v1039
        %v1041 = vpack.c.bf16 %v1040, %v1040
        %v1043 = vunpack.c.l.b16 %v866
        %v1044 = vpack.c.b16 %v1043, %v1043
        %1045 = vrot.lane.b32.xlu0 %v1044, 120
        %v1046 = vpop.permute.xlu0 %1045
        %v1048 = vsel %vm867, %v1041, 0
        %v1051 = vsel %vm929, %v1046, 0
        %1053 = vmatprep.subr.bf16.mxu0 0
        %1054 = vmatpush1.bf16.msra.mxu0 %v1051
        %1055 = vmatprep.subr.bf16.mxu0 0
        %1056 = vmatpush1.bf16.msra.mxu0 0
        %1057 = vmatprep.subr.bf16.mxu0 0
        %1058 = vmatpush1.bf16.msra.mxu0 0
        %1059 = vmatprep.subr.bf16.mxu0 0
        %1060 = vmatpush1.bf16.msra.mxu0 0
        %1061 = vmatprep.subr.bf16.mxu0 0
        %1062 = vmatpush1.bf16.msra.mxu0 0
        %1063 = vmatprep.subr.bf16.mxu0 0
        %1064 = vmatpush1.bf16.msra.mxu0 0
        %1065 = vmatprep.subr.bf16.mxu0 0
        %1066 = vmatpush1.bf16.msra.mxu0 0
        %1067 = vmatprep.subr.bf16.mxu0 0
        %1068 = vmatpush1.bf16.msra.mxu0 0
        %1069 = vmatprep.subr.bf16.mxu0 0
        %1070 = vmatpush1.bf16.msra.mxu0 0
        %1071 = vmatprep.subr.bf16.mxu0 0
        %1072 = vmatpush1.bf16.msra.mxu0 0
        %1073 = vmatprep.subr.bf16.mxu0 0
        %1074 = vmatpush1.bf16.msra.mxu0 0
        %1075 = vmatprep.subr.bf16.mxu0 0
        %1076 = vmatpush1.bf16.msra.mxu0 0
        %1077 = vmatprep.subr.bf16.mxu0 0
        %1078 = vmatpush1.bf16.msra.mxu0 0
        %1079 = vmatprep.subr.bf16.mxu0 0
        %1080 = vmatpush1.bf16.msra.mxu0 0
        %1081 = vmatprep.subr.bf16.mxu0 0
        %1082 = vmatpush1.bf16.msra.mxu0 0
        %1083 = vmatprep.subr.bf16.mxu0 0
        %1084 = vmatpush1.bf16.msra.mxu0 0
        %1085 = vmatprep.mubr.bf16.mxu0 0
        %1086 = vmatmul.mubr.bf16.gmra.mrb[0].mxu0 %v1048
        %v1087 = vpop.f32.mrb[0].mxu0
        %v1088 = vadd.f32 0.0, %v1087
        %v1089 = vpop.f32.mrb[0].mxu0
        %v1090 = vpop.f32.mrb[0].mxu0
        %v1091 = vpop.f32.mrb[0].mxu0
        %1092 = vdwg.mxu0
        %v1093 = vpack.c.bf16 %v1088, %v1088
        %v1095 = vunpack.c.l.b16 %v1093
        %v1096 = vpack.c.b16 %v1095, %v1095
        %1097 = vrot.lane.b32.xlu0 %v1096, 8
        %v1098 = vpop.permute.xlu0 %1097
        %vm1100 = vcmask 126016
        %1101 = vst.msk [vmem:[#allocation4] sm:$0xf] %vm1100, %v1098
        %1102 = vrot.lane.b32.xlu0 %v864, 112
        %v1103 = vpop.permute.xlu0 %1102
        %1104 = vrot.lane.b32.xlu0 %v981, 112
        %v1105 = vpop.permute.xlu0 %1104
        %v1107 = vsel %vm867, %v1103, 0
        %v1110 = vsel %vm867, %v1105, 0
        %1112 = vmatprep.subr.bf16.mxu0 0
        %1113 = vmatpush1.bf16.xpose.msra.mxu0 %v1110
        %1114 = vmatprep.subr.bf16.mxu0 0
        %1115 = vmatpush1.bf16.xpose.msra.mxu0 0
        %1116 = vmatprep.subr.bf16.mxu0 0
        %1117 = vmatpush1.bf16.xpose.msra.mxu0 0
        %1118 = vmatprep.subr.bf16.mxu0 0
        %1119 = vmatpush1.bf16.xpose.msra.mxu0 0
        %1120 = vmatprep.subr.bf16.mxu0 0
        %1121 = vmatpush1.bf16.xpose.msra.mxu0 0
        %1122 = vmatprep.subr.bf16.mxu0 0
        %1123 = vmatpush1.bf16.xpose.msra.mxu0 0
        %1124 = vmatprep.subr.bf16.mxu0 0
        %1125 = vmatpush1.bf16.xpose.msra.mxu0 0
        %1126 = vmatprep.subr.bf16.mxu0 0
        %1127 = vmatpush1.bf16.xpose.msra.mxu0 0
        %1128 = vmatprep.subr.bf16.mxu0 0
        %1129 = vmatpush1.bf16.xpose.msra.mxu0 0
        %1130 = vmatprep.subr.bf16.mxu0 0
        %1131 = vmatpush1.bf16.xpose.msra.mxu0 0
        %1132 = vmatprep.subr.bf16.mxu0 0
        %1133 = vmatpush1.bf16.xpose.msra.mxu0 0
        %1134 = vmatprep.subr.bf16.mxu0 0
        %1135 = vmatpush1.bf16.xpose.msra.mxu0 0
        %1136 = vmatprep.subr.bf16.mxu0 0
        %1137 = vmatpush1.bf16.xpose.msra.mxu0 0
        %1138 = vmatprep.subr.bf16.mxu0 0
        %1139 = vmatpush1.bf16.xpose.msra.mxu0 0
        %1140 = vmatprep.subr.bf16.mxu0 0
        %1141 = vmatpush1.bf16.xpose.msra.mxu0 0
        %1142 = vmatprep.subr.bf16.mxu0 0
        %1143 = vmatpush1.bf16.xpose.msra.mxu0 0
        %1144 = vmatprep.mubr.bf16.mxu0 0
        %1145 = vmatmul.mubr.bf16.gmra.mrb[0].mxu0 %v1107
        %v1146 = vpop.f32.mrb[0].mxu0
        %v1147 = vadd.f32 0.0, %v1146
        %v1148 = vpop.f32.mrb[0].mxu0
        %v1149 = vpop.f32.mrb[0].mxu0
        %v1150 = vpop.f32.mrb[0].mxu0
        %1151 = vdwg.mxu0
        %v1152 = vsel %vm867, %v1147, -inf
        %1153 = vmax.xlane.f32.xlu0 %v1152
        %v1154 = vpop.xlane.xlu0 %1153
        %v1155 = vsub.f32 %v1147, %v1154
        %v1156 = vmul.f32 %v1155, 1.442695
        %v1157 = vpow.pop %v1156
        %v1158 = vsel %vm867, %v1157, 0.0
        %1159 = vadd.xlane.f32.xlu0 %v1158
        %v1160 = vpop.xlane.xlu0 %1159
        %v1161 = vrcp.pop %v1160
        %v1162 = vmul.f32 %v1157, %v1161
        %v1163 = vpack.c.bf16 %v1162, %v1162
        %1164 = vrot.lane.b32.xlu0 %v1044, 112
        %v1165 = vpop.permute.xlu0 %1164
        %v1167 = vsel %vm867, %v1163, 0
        %v1170 = vsel %vm929, %v1165, 0
        %1172 = vmatprep.subr.bf16.mxu0 0
        %1173 = vmatpush1.bf16.msra.mxu0 %v1170
        %1174 = vmatprep.subr.bf16.mxu0 0
        %1175 = vmatpush1.bf16.msra.mxu0 0
        %1176 = vmatprep.subr.bf16.mxu0 0
        %1177 = vmatpush1.bf16.msra.mxu0 0
        %1178 = vmatprep.subr.bf16.mxu0 0
        %1179 = vmatpush1.bf16.msra.mxu0 0
        %1180 = vmatprep.subr.bf16.mxu0 0
        %1181 = vmatpush1.bf16.msra.mxu0 0
        %1182 = vmatprep.subr.bf16.mxu0 0
        %1183 = vmatpush1.bf16.msra.mxu0 0
        %1184 = vmatprep.subr.bf16.mxu0 0
        %1185 = vmatpush1.bf16.msra.mxu0 0
        %1186 = vmatprep.subr.bf16.mxu0 0
        %1187 = vmatpush1.bf16.msra.mxu0 0
        %1188 = vmatprep.subr.bf16.mxu0 0
        %1189 = vmatpush1.bf16.msra.mxu0 0
        %1190 = vmatprep.subr.bf16.mxu0 0
        %1191 = vmatpush1.bf16.msra.mxu0 0
        %1192 = vmatprep.subr.bf16.mxu0 0
        %1193 = vmatpush1.bf16.msra.mxu0 0
        %1194 = vmatprep.subr.bf16.mxu0 0
        %1195 = vmatpush1.bf16.msra.mxu0 0
        %1196 = vmatprep.subr.bf16.mxu0 0
        %1197 = vmatpush1.bf16.msra.mxu0 0
        %1198 = vmatprep.subr.bf16.mxu0 0
        %1199 = vmatpush1.bf16.msra.mxu0 0
        %1200 = vmatprep.subr.bf16.mxu0 0
        %1201 = vmatpush1.bf16.msra.mxu0 0
        %1202 = vmatprep.subr.bf16.mxu0 0
        %1203 = vmatpush1.bf16.msra.mxu0 0
        %1204 = vmatprep.mubr.bf16.mxu0 0
        %1205 = vmatmul.mubr.bf16.gmra.mrb[0].mxu0 %v1167
        %v1206 = vpop.f32.mrb[0].mxu0
        %v1207 = vadd.f32 0.0, %v1206
        %v1208 = vpop.f32.mrb[0].mxu0
        %v1209 = vpop.f32.mrb[0].mxu0
        %v1210 = vpop.f32.mrb[0].mxu0
        %1211 = vdwg.mxu0
        %v1212 = vpack.c.bf16 %v1207, %v1207
        %v1214 = vunpack.c.l.b16 %v1212
        %v1215 = vpack.c.b16 %v1214, %v1214
        %1216 = vrot.lane.b32.xlu0 %v1215, 16
        %v1217 = vpop.permute.xlu0 %1216
        %vm1219 = vcmask 191616
        %1220 = vst.msk [vmem:[#allocation4] sm:$0xf] %vm1219, %v1217
        %1221 = vrot.lane.b32.xlu0 %v864, 104
        %v1222 = vpop.permute.xlu0 %1221
        %1223 = vrot.lane.b32.xlu0 %v981, 104
        %v1224 = vpop.permute.xlu0 %1223
        %v1226 = vsel %vm867, %v1222, 0
        %v1229 = vsel %vm867, %v1224, 0
        %1231 = vmatprep.subr.bf16.mxu0 0
        %1232 = vmatpush1.bf16.xpose.msra.mxu0 %v1229
        %1233 = vmatprep.subr.bf16.mxu0 0
        %1234 = vmatpush1.bf16.xpose.msra.mxu0 0
        %1235 = vmatprep.subr.bf16.mxu0 0
        %1236 = vmatpush1.bf16.xpose.msra.mxu0 0
        %1237 = vmatprep.subr.bf16.mxu0 0
        %1238 = vmatpush1.bf16.xpose.msra.mxu0 0
        %1239 = vmatprep.subr.bf16.mxu0 0
        %1240 = vmatpush1.bf16.xpose.msra.mxu0 0
        %1241 = vmatprep.subr.bf16.mxu0 0
        %1242 = vmatpush1.bf16.xpose.msra.mxu0 0
        %1243 = vmatprep.subr.bf16.mxu0 0
        %1244 = vmatpush1.bf16.xpose.msra.mxu0 0
        %1245 = vmatprep.subr.bf16.mxu0 0
        %1246 = vmatpush1.bf16.xpose.msra.mxu0 0
        %1247 = vmatprep.subr.bf16.mxu0 0
        %1248 = vmatpush1.bf16.xpose.msra.mxu0 0
        %1249 = vmatprep.subr.bf16.mxu0 0
        %1250 = vmatpush1.bf16.xpose.msra.mxu0 0
        %1251 = vmatprep.subr.bf16.mxu0 0
        %1252 = vmatpush1.bf16.xpose.msra.mxu0 0
        %1253 = vmatprep.subr.bf16.mxu0 0
        %1254 = vmatpush1.bf16.xpose.msra.mxu0 0
        %1255 = vmatprep.subr.bf16.mxu0 0
        %1256 = vmatpush1.bf16.xpose.msra.mxu0 0
        %1257 = vmatprep.subr.bf16.mxu0 0
        %1258 = vmatpush1.bf16.xpose.msra.mxu0 0
        %1259 = vmatprep.subr.bf16.mxu0 0
        %1260 = vmatpush1.bf16.xpose.msra.mxu0 0
        %1261 = vmatprep.subr.bf16.mxu0 0
        %1262 = vmatpush1.bf16.xpose.msra.mxu0 0
        %1263 = vmatprep.mubr.bf16.mxu0 0
        %1264 = vmatmul.mubr.bf16.gmra.mrb[0].mxu0 %v1226
        %v1265 = vpop.f32.mrb[0].mxu0
        %v1266 = vadd.f32 0.0, %v1265
        %v1267 = vpop.f32.mrb[0].mxu0
        %v1268 = vpop.f32.mrb[0].mxu0
        %v1269 = vpop.f32.mrb[0].mxu0
        %1270 = vdwg.mxu0
        %v1271 = vsel %vm867, %v1266, -inf
        %1272 = vmax.xlane.f32.xlu0 %v1271
        %v1273 = vpop.xlane.xlu0 %1272
        %v1274 = vsub.f32 %v1266, %v1273
        %v1275 = vmul.f32 %v1274, 1.442695
        %v1276 = vpow.pop %v1275
        %v1277 = vsel %vm867, %v1276, 0.0
        %1278 = vadd.xlane.f32.xlu0 %v1277
        %v1279 = vpop.xlane.xlu0 %1278
        %v1280 = vrcp.pop %v1279
        %v1281 = vmul.f32 %v1276, %v1280
        %v1282 = vpack.c.bf16 %v1281, %v1281
        %1283 = vrot.lane.b32.xlu0 %v1044, 104
        %v1284 = vpop.permute.xlu0 %1283
        %v1286 = vsel %vm867, %v1282, 0
        %v1289 = vsel %vm929, %v1284, 0
        %1291 = vmatprep.subr.bf16.mxu0 0
        %1292 = vmatpush1.bf16.msra.mxu0 %v1289
        %1293 = vmatprep.subr.bf16.mxu0 0
        %1294 = vmatpush1.bf16.msra.mxu0 0
        %1295 = vmatprep.subr.bf16.mxu0 0
        %1296 = vmatpush1.bf16.msra.mxu0 0
        %1297 = vmatprep.subr.bf16.mxu0 0
        %1298 = vmatpush1.bf16.msra.mxu0 0
        %1299 = vmatprep.subr.bf16.mxu0 0
        %1300 = vmatpush1.bf16.msra.mxu0 0
        %1301 = vmatprep.subr.bf16.mxu0 0
        %1302 = vmatpush1.bf16.msra.mxu0 0
        %1303 = vmatprep.subr.bf16.mxu0 0
        %1304 = vmatpush1.bf16.msra.mxu0 0
        %1305 = vmatprep.subr.bf16.mxu0 0
        %1306 = vmatpush1.bf16.msra.mxu0 0
        %1307 = vmatprep.subr.bf16.mxu0 0
        %1308 = vmatpush1.bf16.msra.mxu0 0
        %1309 = vmatprep.subr.bf16.mxu0 0
        %1310 = vmatpush1.bf16.msra.mxu0 0
        %1311 = vmatprep.subr.bf16.mxu0 0
        %1312 = vmatpush1.bf16.msra.mxu0 0
        %1313 = vmatprep.subr.bf16.mxu0 0
        %1314 = vmatpush1.bf16.msra.mxu0 0
        %1315 = vmatprep.subr.bf16.mxu0 0
        %1316 = vmatpush1.bf16.msra.mxu0 0
        %1317 = vmatprep.subr.bf16.mxu0 0
        %1318 = vmatpush1.bf16.msra.mxu0 0
        %1319 = vmatprep.subr.bf16.mxu0 0
        %1320 = vmatpush1.bf16.msra.mxu0 0
        %1321 = vmatprep.subr.bf16.mxu0 0
        %1322 = vmatpush1.bf16.msra.mxu0 0
        %1323 = vmatprep.mubr.bf16.mxu0 0
        %1324 = vmatmul.mubr.bf16.gmra.mrb[0].mxu0 %v1286
        %v1325 = vpop.f32.mrb[0].mxu0
        %v1326 = vadd.f32 0.0, %v1325
        %v1327 = vpop.f32.mrb[0].mxu0
        %v1328 = vpop.f32.mrb[0].mxu0
        %v1329 = vpop.f32.mrb[0].mxu0
        %1330 = vdwg.mxu0
        %v1331 = vpack.c.bf16 %v1326, %v1326
        %v1333 = vunpack.c.l.b16 %v1331
        %v1334 = vpack.c.b16 %v1333, %v1333
        %1335 = vrot.lane.b32.xlu0 %v1334, 24
        %v1336 = vpop.permute.xlu0 %1335
        %vm1338 = vcmask 257216
        %1339 = vst.msk [vmem:[#allocation4] sm:$0xf] %vm1338, %v1336
        %v1340 = vld [vmem:[#allocation4] sm:$0xf]
        %v1341 = vld [vmem:[#allocation14] sm:$0xf]
        %v1342 = vld [vmem:[#allocation14 + $0x4] sm:$0xf]
        %v1343 = vld [vmem:[#allocation14 + $0x8] sm:$0xf]
        %v1344 = vld [vmem:[#allocation14 + $0xc] sm:$0xf]
        %v1345 = vld [vmem:[#allocation16] sm:$0x1]
        %v1347 = vlaneseq
        %v1348 = vshrl.u32 %v1347, 7
        %v1349 = vsub.s32 0, %v1348
        %v1350 = vrot.slane %v1345, %v1349
        %v1356 = vunpack.c.l.b16 %v1341
        %v1357 = vunpack.c.l.b16 %v1342
        %v1358 = vunpack.c.l.b16 %v1343
        %v1359 = vunpack.c.l.b16 %v1344
        %v1360 = vpack.c.b16 %v1357, %v1356
        %v1361 = vpack.c.b16 %v1359, %v1358
        %v1365 = vsel %vm820, %v1340, 0
        %1367 = vmatprep.subr.bf16.mxu0 0
        %1368 = vmatpush1.bf16.msra.mxu0 %v1360
        %1369 = vmatprep.subr.bf16.mxu0 0
        %1370 = vmatpush1.bf16.msra.mxu0 %v1361
        %1371 = vmatprep.subr.bf16.mxu0 0
        %1372 = vmatpush1.bf16.msra.mxu0 0
        %1373 = vmatprep.subr.bf16.mxu0 0
        %1374 = vmatpush1.bf16.msra.mxu0 0
        %1375 = vmatprep.subr.bf16.mxu0 0
        %1376 = vmatpush1.bf16.msra.mxu0 0
        %1377 = vmatprep.subr.bf16.mxu0 0
        %1378 = vmatpush1.bf16.msra.mxu0 0
        %1379 = vmatprep.subr.bf16.mxu0 0
        %1380 = vmatpush1.bf16.msra.mxu0 0
        %1381 = vmatprep.subr.bf16.mxu0 0
        %1382 = vmatpush1.bf16.msra.mxu0 0
        %1383 = vmatprep.subr.bf16.mxu0 0
        %1384 = vmatpush1.bf16.msra.mxu0 0
        %1385 = vmatprep.subr.bf16.mxu0 0
        %1386 = vmatpush1.bf16.msra.mxu0 0
        %1387 = vmatprep.subr.bf16.mxu0 0
        %1388 = vmatpush1.bf16.msra.mxu0 0
        %1389 = vmatprep.subr.bf16.mxu0 0
        %1390 = vmatpush1.bf16.msra.mxu0 0
        %1391 = vmatprep.subr.bf16.mxu0 0
        %1392 = vmatpush1.bf16.msra.mxu0 0
        %1393 = vmatprep.subr.bf16.mxu0 0
        %1394 = vmatpush1.bf16.msra.mxu0 0
        %1395 = vmatprep.subr.bf16.mxu0 0
        %1396 = vmatpush1.bf16.msra.mxu0 0
        %1397 = vmatprep.subr.bf16.mxu0 0
        %1398 = vmatpush1.bf16.msra.mxu0 0
        %1399 = vmatprep.mubr.bf16.mxu0 0
        %1400 = vmatmul.mubr.bf16.gmra.mrb[0].mxu0 %v1365
        %v1401 = vpop.f32.mrb[0].mxu0
        %v1402 = vadd.f32 %v1350, %v1401
        %v1403 = vpop.f32.mrb[0].mxu0
        %v1404 = vpop.f32.mrb[0].mxu0
        %v1405 = vpop.f32.mrb[0].mxu0
        %1406 = vdwg.mxu0
        %v1407 = vadd.f32 %v1402, %v795
        %v1408 = vld [vmem:[#allocation23] sm:$0x1]
        %v1409 = vld [vmem:[#allocation25] sm:$0x1]
        %v1410 = vsel %vm820, %v1407, 0.0
        %1411 = vadd.xlane.f32.xlu0 %v1410
        %v1412 = vpop.xlane.xlu0 %1411
        %v1413 = vrcp.pop 32.0
        %v1414 = vmul.f32 %v1412, %v1413
        %v1415 = vsub.f32 %v1407, %v1414
        %v1416 = vmul.f32 %v1415, %v1415
        %v1417 = vsel %vm820, %v1416, 0.0
        %1418 = vadd.xlane.f32.xlu0 %v1417
        %v1419 = vpop.xlane.xlu0 %1418
        %v1420 = vmul.f32 %v1419, %v1413
        %v1421 = vadd.f32 %v1420, 1e-05
        %v1422 = vrsqrt.pop %v1421
        %v1423 = vmul.f32 %v1415, %v1422
        %v1425 = vlaneseq
        %v1426 = vshrl.u32 %v1425, 7
        %v1427 = vsub.s32 0, %v1426
        %v1428 = vrot.slane %v1408, %v1427
        %v1430 = vmul.f32 %v1423, %v1428
        %v1432 = vlaneseq
        %v1433 = vshrl.u32 %v1432, 7
        %v1434 = vsub.s32 0, %v1433
        %v1435 = vrot.slane %v1409, %v1434
        %v1437 = vadd.f32 %v1430, %v1435
        %v1438 = vpack.c.bf16 %v1437, %v1437
        %v1439 = vld [vmem:[#allocation17] sm:$0xf]
        %v1440 = vld [vmem:[#allocation17 + $0x4] sm:$0xf]
        %v1441 = vld [vmem:[#allocation17 + $0x8] sm:$0xf]
        %v1442 = vld [vmem:[#allocation17 + $0xc] sm:$0xf]
        %v1443 = vld [vmem:[#allocation19] sm:$0x1]
        %v1445 = vlaneseq
        %v1446 = vshrl.u32 %v1445, 7
        %v1447 = vsub.s32 0, %v1446
        %v1448 = vrot.slane %v1443, %v1447
        %v1454 = vunpack.c.l.b16 %v1439
        %v1455 = vunpack.c.l.b16 %v1440
        %v1456 = vunpack.c.l.b16 %v1441
        %v1457 = vunpack.c.l.b16 %v1442
        %v1458 = vpack.c.b16 %v1455, %v1454
        %v1459 = vpack.c.b16 %v1457, %v1456
        %v1463 = vsel %vm820, %v1438, 0
        %1465 = vmatprep.subr.bf16.mxu0 0
        %1466 = vmatpush1.bf16.msra.mxu0 %v1458
        %1467 = vmatprep.subr.bf16.mxu0 0
        %1468 = vmatpush1.bf16.msra.mxu0 %v1459
        %1469 = vmatprep.subr.bf16.mxu0 0
        %1470 = vmatpush1.bf16.msra.mxu0 0
        %1471 = vmatprep.subr.bf16.mxu0 0
        %1472 = vmatpush1.bf16.msra.mxu0 0
        %1473 = vmatprep.subr.bf16.mxu0 0
        %1474 = vmatpush1.bf16.msra.mxu0 0
        %1475 = vmatprep.subr.bf16.mxu0 0
        %1476 = vmatpush1.bf16.msra.mxu0 0
        %1477 = vmatprep.subr.bf16.mxu0 0
        %1478 = vmatpush1.bf16.msra.mxu0 0
        %1479 = vmatprep.subr.bf16.mxu0 0
        %1480 = vmatpush1.bf16.msra.mxu0 0
        %1481 = vmatprep.subr.bf16.mxu0 0
        %1482 = vmatpush1.bf16.msra.mxu0 0
        %1483 = vmatprep.subr.bf16.mxu0 0
        %1484 = vmatpush1.bf16.msra.mxu0 0
        %1485 = vmatprep.subr.bf16.mxu0 0
        %1486 = vmatpush1.bf16.msra.mxu0 0
        %1487 = vmatprep.subr.bf16.mxu0 0
        %1488 = vmatpush1.bf16.msra.mxu0 0
        %1489 = vmatprep.subr.bf16.mxu0 0
        %1490 = vmatpush1.bf16.msra.mxu0 0
        %1491 = vmatprep.subr.bf16.mxu0 0
        %1492 = vmatpush1.bf16.msra.mxu0 0
        %1493 = vmatprep.subr.bf16.mxu0 0
        %1494 = vmatpush1.bf16.msra.mxu0 0
        %1495 = vmatprep.subr.bf16.mxu0 0
        %1496 = vmatpush1.bf16.msra.mxu0 0
        %1497 = vmatprep.mubr.bf16.mxu0 0
        %1498 = vmatmul.mubr.bf16.gmra.mrb[0].mxu0 %v1463
        %v1499 = vpop.f32.mrb[0].mxu0
        %v1500 = vadd.f32 %v1448, %v1499
        %v1501 = vpop.f32.mrb[0].mxu0
        %v1502 = vpop.f32.mrb[0].mxu0
        %v1503 = vpop.f32.mrb[0].mxu0
        %1504 = vdwg.mxu0
        %v1505 = vmax.f32 %v1500, 0.0
        %v1506 = vpack.c.bf16 %v1505, %v1505
        %v1507 = vld [vmem:[#allocation20] sm:$0xf]
        %v1508 = vld [vmem:[#allocation20 + $0x4] sm:$0xf]
        %v1509 = vld [vmem:[#allocation20 + $0x8] sm:$0xf]
        %v1510 = vld [vmem:[#allocation20 + $0xc] sm:$0xf]
        %v1511 = vld [vmem:[#allocation20 + $0x10] sm:$0xf]
        %v1512 = vld [vmem:[#allocation20 + $0x14] sm:$0xf]
        %v1513 = vld [vmem:[#allocation20 + $0x18] sm:$0xf]
        %v1514 = vld [vmem:[#allocation20 + $0x1c] sm:$0xf]
        %v1515 = vld [vmem:[#allocation22] sm:$0x1]
        %v1517 = vlaneseq
        %v1518 = vshrl.u32 %v1517, 7
        %v1519 = vsub.s32 0, %v1518
        %v1520 = vrot.slane %v1515, %v1519
        %v1530 = vunpack.c.l.b16 %v1507
        %v1531 = vunpack.c.l.b16 %v1508
        %v1532 = vunpack.c.l.b16 %v1509
        %v1533 = vunpack.c.l.b16 %v1510
        %v1534 = vunpack.c.l.b16 %v1511
        %v1535 = vunpack.c.l.b16 %v1512
        %v1536 = vunpack.c.l.b16 %v1513
        %v1537 = vunpack.c.l.b16 %v1514
        %v1538 = vpack.c.b16 %v1531, %v1530
        %v1539 = vpack.c.b16 %v1533, %v1532
        %v1540 = vpack.c.b16 %v1535, %v1534
        %v1541 = vpack.c.b16 %v1537, %v1536
        %vm1546 = vcmask 523264
        %v1548 = vsel %vm1546, %v1506, 0
        %1550 = vmatprep.subr.bf16.mxu0 0
        %1551 = vmatpush1.bf16.msra.mxu0 %v1538
        %1552 = vmatprep.subr.bf16.mxu0 0
        %1553 = vmatpush1.bf16.msra.mxu0 %v1539
        %1554 = vmatprep.subr.bf16.mxu0 0
        %1555 = vmatpush1.bf16.msra.mxu0 %v1540
        %1556 = vmatprep.subr.bf16.mxu0 0
        %1557 = vmatpush1.bf16.msra.mxu0 %v1541
        %1558 = vmatprep.subr.bf16.mxu0 0
        %1559 = vmatpush1.bf16.msra.mxu0 0
        %1560 = vmatprep.subr.bf16.mxu0 0
        %1561 = vmatpush1.bf16.msra.mxu0 0
        %1562 = vmatprep.subr.bf16.mxu0 0
        %1563 = vmatpush1.bf16.msra.mxu0 0
        %1564 = vmatprep.subr.bf16.mxu0 0
        %1565 = vmatpush1.bf16.msra.mxu0 0
        %1566 = vmatprep.subr.bf16.mxu0 0
        %1567 = vmatpush1.bf16.msra.mxu0 0
        %1568 = vmatprep.subr.bf16.mxu0 0
        %1569 = vmatpush1.bf16.msra.mxu0 0
        %1570 = vmatprep.subr.bf16.mxu0 0
        %1571 = vmatpush1.bf16.msra.mxu0 0
        %1572 = vmatprep.subr.bf16.mxu0 0
        %1573 = vmatpush1.bf16.msra.mxu0 0
        %1574 = vmatprep.subr.bf16.mxu0 0
        %1575 = vmatpush1.bf16.msra.mxu0 0
        %1576 = vmatprep.subr.bf16.mxu0 0
        %1577 = vmatpush1.bf16.msra.mxu0 0
        %1578 = vmatprep.subr.bf16.mxu0 0
        %1579 = vmatpush1.bf16.msra.mxu0 0
        %1580 = vmatprep.subr.bf16.mxu0 0
        %1581 = vmatpush1.bf16.msra.mxu0 0
        %1582 = vmatprep.mubr.bf16.mxu0 0
        %1583 = vmatmul.mubr.bf16.gmra.mrb[0].mxu0 %v1548
        %v1584 = vpop.f32.mrb[0].mxu0
        %v1585 = vadd.f32 %v1520, %v1584
        %v1586 = vpop.f32.mrb[0].mxu0
        %v1587 = vpop.f32.mrb[0].mxu0
        %v1588 = vpop.f32.mrb[0].mxu0
        %1589 = vdwg.mxu0
        %v1590 = vadd.f32 %v1585, %v1437
        %v1591 = vld [vmem:[#allocation26] sm:$0x1]
        %v1592 = vld [vmem:[#allocation28] sm:$0x1]
        %v1593 = vsel %vm820, %v1590, 0.0
        %1594 = vadd.xlane.f32.xlu0 %v1593
        %v1595 = vpop.xlane.xlu0 %1594
        %v1596 = vmul.f32 %v1595, %v1413
        %v1597 = vsub.f32 %v1590, %v1596
        %v1598 = vmul.f32 %v1597, %v1597
        %v1599 = vsel %vm820, %v1598, 0.0
        %1600 = vadd.xlane.f32.xlu0 %v1599
        %v1601 = vpop.xlane.xlu0 %1600
        %v1602 = vmul.f32 %v1601, %v1413
        %v1603 = vadd.f32 %v1602, 1e-05
        %v1604 = vrsqrt.pop %v1603
        %v1605 = vmul.f32 %v1597, %v1604
        %v1607 = vlaneseq
        %v1608 = vshrl.u32 %v1607, 7
        %v1609 = vsub.s32 0, %v1608
        %v1610 = vrot.slane %v1591, %v1609
        %v1612 = vmul.f32 %v1605, %v1610
        %v1614 = vlaneseq
        %v1615 = vshrl.u32 %v1614, 7
        %v1616 = vsub.s32 0, %v1615
        %v1617 = vrot.slane %v1592, %v1616
        %v1619 = vadd.f32 %v1612, %v1617
        %1620 = vst.msk [vmem:[%s708] sm:$0xff] %vm820, %v1619
        %s1621 = sand.u32 %s381, 1
        %s1622 = scalar_lea.sflag [#allocation7], %s1621
        %s1623 = sand.u32 %s381, 1
        %s1624 = smul.addr %s1623, 8
        %s1625 = scalar_lea.vmem [#allocation29], %s1624
        // Predicated region
        $region145: #{tpu_custom_call.1} parent=79 // pred_check
          %p1626 = pneg %p391
        $region146: #{tpu_custom_call.1} parent=79 // pred_check_branch
          %1628 = sbr.rel (%p1626) target = $region148
        $region147: #{tpu_custom_call.1} parent=79 // pred_region
          %s1630 = ssub.s32 128, 128
          %1631 = vsyncadd %s1622, %s1630
          %s1632 = sadd.s32 %s44, %s43
          %s1633 = smul.addr %s1632, 128
          %s1634 = scalar_lea.hbm %s15, %s1633
          %s1636 = sshll.u32 %s1625, 4
          %s1637 = int_to_ptr.vmem [resolvable:$true] %s1636
          %1639 = dma.vmem_to_hbm [thread:$0]  %s1637, 128, %s1634, %s1622
        $region148: #{tpu_custom_call.1} parent=79 // pred_fallthru
          _
      $region80: #{tpu_custom_call.1} parent=5 // pred_fallthru
        _
      %p1640 = scmp.le.s32.totalorder 2, %s34
      // Predicated region
      $region149: #{tpu_custom_call.1} parent=5 // pred_check
        %p1641 = pneg %p1640
      $region150: #{tpu_custom_call.1} parent=5 // pred_check_branch
        %1643 = sbr.rel (%p1641) target = $region152
      $region151: #{tpu_custom_call.1} parent=5 // pred_region
        %s1644 = ssub.s32 %s34, 2
        // Predicated region
        $region153: #{tpu_custom_call.1} parent=151 // pred_check
          %p1645 = pneg %p397
        $region154: #{tpu_custom_call.1} parent=151 // pred_check_branch
          %1647 = sbr.rel (%p1645) target = $region156
        $region155: #{tpu_custom_call.1} parent=151 // pred_region
          %s1648 = sand.u32 %s382, 1
          %s1649 = scalar_lea.sflag [#allocation7], %s1648
          %s1650 = sand.u32 %s382, 1
          %s1651 = smul.addr %s1650, 8
          %s1652 = scalar_lea.vmem [#allocation29], %s1651
          %1653 = dma.done %s1649, 128
        $region156: #{tpu_custom_call.1} parent=151 // pred_fallthru
          _
      $region152: #{tpu_custom_call.1} parent=5 // pred_fallthru
        _
    $region6: #{tpu_custom_call.1} parent=1 // loop_footer
      %s38 = sadd.s32 1, %s34
    $region7: #{tpu_custom_call.1} parent=1 // loop_footer_branch
      %33 = sbr.rel target = $region3
    $region8: #{tpu_custom_call.1} parent=1 // loop_exit
      _
    %1654 = vsyncpa [#allocation6], 1
    %s1655 = scalar_lea.sflag [#allocation6], 1
    %1656 = vsyncpa %s1655, 1
    %1657 = vsyncpa [#allocation9], 1
    %1658 = vsyncpa [#allocation12], 1
    %1659 = vsyncpa [#allocation15], 1
    %1660 = vsyncpa [#allocation18], 1
    %1661 = vsyncpa [#allocation21], 1
    %1662 = vsyncpa [#allocation24], 1
    %1663 = vsyncpa [#allocation27], 1
    %1664 = vsyncpa [#allocation7], 1
    %s1665 = scalar_lea.sflag [#allocation7], 1
    %1666 = vsyncpa %s1665, 1

// kernel: tpu_custom_call.1
$region0: #{tpu_custom_call.1}
  #allocation0 [shape = 'u32[]', space=smem, size = 0x4, offset = 0x4, fixed_abs, tag = 'smem constant byte address 0x4 - core index']
  #allocation1 [shape = 'u32[144,128]{1,0:T(1,128)}', space=vmem, size = 0x12000, scoped, tag = 'internal scratch']
  #allocation2 [shape = 'bf16[8,32]{1,0:T(8,128)(2,1)}', space=vmem, size = 0x800, scoped, tag = 'scratch operand']
  #allocation3 [shape = 'bf16[8,32]{1,0:T(8,128)(2,1)}', space=vmem, size = 0x800, scoped, tag = 'scratch operand']
  #allocation4 [shape = 'bf16[8,32]{1,0:T(8,128)(2,1)}', space=vmem, size = 0x800, scoped, tag = 'scratch operand']
  %s0 = inlined_call_operand.vmem [shape: f32[2,8,32], index: 0, kind: input, shape index: {}]
  %s1 = inlined_call_operand.vmem [shape: bf16[32,32], index: 1, kind: input, shape index: {}]
  %s2 = inlined_call_operand.vmem [shape: f32[1,32], index: 2, kind: input, shape index: {}]
  %s3 = inlined_call_operand.vmem [shape: bf16[32,64], index: 3, kind: input, shape index: {}]
  %s4 = inlined_call_operand.vmem [shape: f32[1,64], index: 4, kind: input, shape index: {}]
  %s5 = inlined_call_operand.hbm [shape: bf16[32,32], index: 5, kind: input, shape index: {}]
  %s6 = inlined_call_operand.vmem [shape: f32[1,32], index: 6, kind: input, shape index: {}]
  %s7 = inlined_call_operand.hbm [shape: bf16[32,64], index: 7, kind: input, shape index: {}]
  %s8 = inlined_call_operand.vmem [shape: f32[1,64], index: 8, kind: input, shape index: {}]
  %s9 = inlined_call_operand.vmem [shape: bf16[64,32], index: 9, kind: input, shape index: {}]
  %s10 = inlined_call_operand.vmem [shape: f32[1,32], index: 10, kind: input, shape index: {}]
  %s11 = inlined_call_operand.vmem [shape: f32[1,32], index: 11, kind: input, shape index: {}]
  %s12 = inlined_call_operand.vmem [shape: f32[1,32], index: 12, kind: input, shape index: {}]
  %s13 = inlined_call_operand.vmem [shape: f32[1,32], index: 13, kind: input, shape index: {}]
  %s14 = inlined_call_operand.vmem [shape: f32[1,32], index: 14, kind: input, shape index: {}]
  %s15 = inlined_call_operand.hbm [shape: f32[2,8,32], index: 15, kind: output, shape index: {}]
  %s16 = sld [smem:[#allocation0]]
  $region105: #{tpu_custom_call.1} parent=0
    _
  %s18 = ssub.s32 1, %s16
  %s19 = scalar_select 0, %s18, %s16
  $region1: #{tpu_custom_call.1} parent=0
    #allocation5 [shape = 'u8[8192]{0}', space=vmem, size = 0x2000, scoped, tag = 'input window, operand 5, single buffered']
    #allocation6 [shape = 's32[2]{0}', space=sflag, size = 0x8, scoped, tag = 'scoped memory for tpu_custom_call.1']
    #allocation7 [shape = 's32[2]{0}', space=sflag, size = 0x8, scoped, tag = 'scoped memory for tpu_custom_call.1']
    #allocation8 [shape = 'u8[8192]{0}', space=vmem, size = 0x2000, scoped, tag = 'input window, operand 7, single buffered']
    #allocation9 [shape = 's32[1]{0}', space=sflag, size = 0x4, scoped, tag = 'scoped memory for tpu_custom_call.1']
    #allocation10 [shape = 'u8[8192]{0}', space=vmem, size = 0x2000, scoped, tag = 'output window, operand 0']
    %20 = vsyncpa [#allocation6], 0
    %21 = vsyncpa [#allocation9], 0
    %22 = vsyncpa [#allocation7], 0
    %s23 = scalar_lea.sflag [#allocation7], 1
    %24 = vsyncpa %s23, 0
    loop: start=0, step=1, limit=4
    $region2: #{tpu_custom_call.1} parent=1 // loop_pre_header
      _
    $region3: #{tpu_custom_call.1} parent=1 // loop_header
      %s26 = sphi 0, %s30
      %p27 = scmp.ge.s32.totalorder %s26, 4
      %s33 = sphi 0, %s45
      %s34 = sphi 0, %s41
      %s35 = sphi 0, %s33
      %s36 = sphi 0, %s34
      %s37 = sphi 0, %s35
      %s38 = sphi 0, %s36
      %s48 = sphi 0, %s50
      %s51 = sphi 0, %s48
      %s52 = sphi 0, %s51
      %s68 = sphi 0, %s52
      %s72 = sphi 0, %s72
      %s74 = sphi 0, %s72
      %s75 = sphi 0, %s74
      %s89 = sphi 0, %s75
      %s93 = sphi 0, %s93
      %s95 = sphi 0, %s93
      %s96 = sphi 0, %s95
      %s110 = sphi 0, %s96
      %s114 = sphi 0, %s114
      %s116 = sphi 0, %s114
      %s117 = sphi 0, %s116
      %s131 = sphi 0, %s117
      %s135 = sphi 0, %s135
      %s137 = sphi 0, %s135
      %s138 = sphi 0, %s137
      %s152 = sphi 0, %s138
      %s156 = sphi 0, %s156
      %s158 = sphi 0, %s156
      %s159 = sphi 0, %s158
      %s173 = sphi 0, %s159
      %s177 = sphi 0, %s177
      %s179 = sphi 0, %s177
      %s180 = sphi 0, %s179
      %s194 = sphi 0, %s180
      %s198 = sphi 0, %s198
      %s200 = sphi 0, %s198
      %s201 = sphi 0, %s200
      %s215 = sphi 0, %s201
      %s219 = sphi 0, %s219
      %s221 = sphi 0, %s219
      %s222 = sphi 0, %s221
      %s236 = sphi 0, %s222
      %s240 = sphi 0, %s240
      %s242 = sphi 0, %s240
      %s243 = sphi 0, %s242
      %s257 = sphi 0, %s243
      %s261 = sphi 0, %s261
      %s263 = sphi 0, %s261
      %s264 = sphi 0, %s263
      %s278 = sphi 0, %s264
      %s282 = sphi 0, %s282
      %s284 = sphi 0, %s282
      %s285 = sphi 0, %s284
      %s299 = sphi 0, %s285
      %s303 = sphi 0, %s303
      %s305 = sphi 0, %s303
      %s306 = sphi 0, %s305
      %s320 = sphi 0, %s306
      %s324 = sphi 0, %s324
      %s326 = sphi 0, %s324
      %s327 = sphi 0, %s326
      %s341 = sphi 0, %s327
      %s345 = sphi 0, %s345
      %s347 = sphi 0, %s345
      %s348 = sphi 0, %s347
      %s362 = sphi 0, %s348
      %s370 = sphi 0, %s372
      %s373 = sphi 0, %s370
      %s374 = sphi 0, %s373
      %s390 = sphi 0, %s374
    $region4: #{tpu_custom_call.1} parent=1 // loop_header_branch
      %29 = sbr.rel (%p27) target = $region8
    $region5: #{tpu_custom_call.1} parent=1 // loop_body
      %s31 = ssub.s32 %s26, 1
      %s32 = ssub.s32 %s26, 2
      %s39 = sadd.s32 1, %s34
      %p40 = scmp.ge.s32.totalorder %s39, 1
      %s41 = scalar_select %p40, 0, %s39
      %s42 = sadd.s32 1, %s33
      %s43 = scalar_select %p40, %s42, %s33
      %p44 = scmp.ge.s32.totalorder %s43, 2
      %s45 = scalar_select %p44, 0, %s43
      %s46 = ssub.s32 %s33, %s45
      %p47 = scmp.eq.s32.totalorder %s46, 0
      %s49 = sadd.s32 %s48, 1
      %s50 = scalar_select %p47, %s48, %s49
      %p53 = pneg %p47
      %p54 = scmp.eq.s32.totalorder %s26, 1
      %p55 = por %p53, %p54
      %p56 = scmp.ne.s32.totalorder %s48, %s51
      %p57 = scmp.eq.s32.totalorder %s26, 0
      %p58 = por %p56, %p57
      %p59 = scmp.ne.s32.totalorder %s48, %s51
      %p60 = scmp.eq.s32.totalorder %s31, 1
      %p61 = por %p59, %p60
      %p62 = scmp.ne.s32.totalorder %s51, %s52
      %p63 = scmp.eq.s32.totalorder %s31, 0
      %p64 = por %p62, %p63
      %p65 = scmp.ne.s32.totalorder %s51, %s52
      %p66 = scmp.eq.s32.totalorder %s32, 1
      %p67 = por %p65, %p66
      %p69 = scmp.ne.s32.totalorder %s52, %s68
      %p70 = scmp.eq.s32.totalorder %s32, 0
      %p71 = por %p69, %p70
      %s73 = sadd.s32 %s72, 1
      %p76 = scmp.eq.s32.totalorder %s26, 1
      %p77 = scmp.ne.s32.totalorder %s72, %s74
      %p78 = scmp.eq.s32.totalorder %s26, 0
      %p79 = por %p77, %p78
      %p80 = scmp.ne.s32.totalorder %s72, %s74
      %p81 = scmp.eq.s32.totalorder %s31, 1
      %p82 = por %p80, %p81
      %p83 = scmp.ne.s32.totalorder %s74, %s75
      %p84 = scmp.eq.s32.totalorder %s31, 0
      %p85 = por %p83, %p84
      %p86 = scmp.ne.s32.totalorder %s74, %s75
      %p87 = scmp.eq.s32.totalorder %s32, 1
      %p88 = por %p86, %p87
      %p90 = scmp.ne.s32.totalorder %s75, %s89
      %p91 = scmp.eq.s32.totalorder %s32, 0
      %p92 = por %p90, %p91
      %s94 = sadd.s32 %s93, 1
      %p97 = scmp.eq.s32.totalorder %s26, 1
      %p98 = scmp.ne.s32.totalorder %s93, %s95
      %p99 = scmp.eq.s32.totalorder %s26, 0
      %p100 = por %p98, %p99
      %p101 = scmp.ne.s32.totalorder %s93, %s95
      %p102 = scmp.eq.s32.totalorder %s31, 1
      %p103 = por %p101, %p102
      %p104 = scmp.ne.s32.totalorder %s95, %s96
      %p105 = scmp.eq.s32.totalorder %s31, 0
      %p106 = por %p104, %p105
      %p107 = scmp.ne.s32.totalorder %s95, %s96
      %p108 = scmp.eq.s32.totalorder %s32, 1
      %p109 = por %p107, %p108
      %p111 = scmp.ne.s32.totalorder %s96, %s110
      %p112 = scmp.eq.s32.totalorder %s32, 0
      %p113 = por %p111, %p112
      %s115 = sadd.s32 %s114, 1
      %p118 = scmp.eq.s32.totalorder %s26, 1
      %p119 = scmp.ne.s32.totalorder %s114, %s116
      %p120 = scmp.eq.s32.totalorder %s26, 0
      %p121 = por %p119, %p120
      %p122 = scmp.ne.s32.totalorder %s114, %s116
      %p123 = scmp.eq.s32.totalorder %s31, 1
      %p124 = por %p122, %p123
      %p125 = scmp.ne.s32.totalorder %s116, %s117
      %p126 = scmp.eq.s32.totalorder %s31, 0
      %p127 = por %p125, %p126
      %p128 = scmp.ne.s32.totalorder %s116, %s117
      %p129 = scmp.eq.s32.totalorder %s32, 1
      %p130 = por %p128, %p129
      %p132 = scmp.ne.s32.totalorder %s117, %s131
      %p133 = scmp.eq.s32.totalorder %s32, 0
      %p134 = por %p132, %p133
      %s136 = sadd.s32 %s135, 1
      %p139 = scmp.eq.s32.totalorder %s26, 1
      %p140 = scmp.ne.s32.totalorder %s135, %s137
      %p141 = scmp.eq.s32.totalorder %s26, 0
      %p142 = por %p140, %p141
      %p143 = scmp.ne.s32.totalorder %s135, %s137
      %p144 = scmp.eq.s32.totalorder %s31, 1
      %p145 = por %p143, %p144
      %p146 = scmp.ne.s32.totalorder %s137, %s138
      %p147 = scmp.eq.s32.totalorder %s31, 0
      %p148 = por %p146, %p147
      %p149 = scmp.ne.s32.totalorder %s137, %s138
      %p150 = scmp.eq.s32.totalorder %s32, 1
      %p151 = por %p149, %p150
      %p153 = scmp.ne.s32.totalorder %s138, %s152
      %p154 = scmp.eq.s32.totalorder %s32, 0
      %p155 = por %p153, %p154
      %s157 = sadd.s32 %s156, 1
      %p160 = scmp.eq.s32.totalorder %s26, 1
      %p161 = scmp.ne.s32.totalorder %s156, %s158
      %p162 = scmp.eq.s32.totalorder %s26, 0
      %p163 = por %p161, %p162
      %p164 = scmp.ne.s32.totalorder %s156, %s158
      %p165 = scmp.eq.s32.totalorder %s31, 1
      %p166 = por %p164, %p165
      %p167 = scmp.ne.s32.totalorder %s158, %s159
      %p168 = scmp.eq.s32.totalorder %s31, 0
      %p169 = por %p167, %p168
      %p170 = scmp.ne.s32.totalorder %s158, %s159
      %p171 = scmp.eq.s32.totalorder %s32, 1
      %p172 = por %p170, %p171
      %p174 = scmp.ne.s32.totalorder %s159, %s173
      %p175 = scmp.eq.s32.totalorder %s32, 0
      %p176 = por %p174, %p175
      %s178 = sadd.s32 %s177, 1
      %p181 = scmp.eq.s32.totalorder %s26, 1
      %p182 = scmp.ne.s32.totalorder %s177, %s179
      %p183 = scmp.eq.s32.totalorder %s26, 0
      %p184 = por %p182, %p183
      %p185 = scmp.ne.s32.totalorder %s177, %s179
      %p186 = scmp.eq.s32.totalorder %s31, 1
      %p187 = por %p185, %p186
      %p188 = scmp.ne.s32.totalorder %s179, %s180
      %p189 = scmp.eq.s32.totalorder %s31, 0
      %p190 = por %p188, %p189
      %p191 = scmp.ne.s32.totalorder %s179, %s180
      %p192 = scmp.eq.s32.totalorder %s32, 1
      %p193 = por %p191, %p192
      %p195 = scmp.ne.s32.totalorder %s180, %s194
      %p196 = scmp.eq.s32.totalorder %s32, 0
      %p197 = por %p195, %p196
      %s199 = sadd.s32 %s198, 1
      %p202 = scmp.eq.s32.totalorder %s26, 1
      %p203 = scmp.ne.s32.totalorder %s198, %s200
      %p204 = scmp.eq.s32.totalorder %s26, 0
      %p205 = por %p203, %p204
      %p206 = scmp.ne.s32.totalorder %s198, %s200
      %p207 = scmp.eq.s32.totalorder %s31, 1
      %p208 = por %p206, %p207
      %p209 = scmp.ne.s32.totalorder %s200, %s201
      %p210 = scmp.eq.s32.totalorder %s31, 0
      %p211 = por %p209, %p210
      %p212 = scmp.ne.s32.totalorder %s200, %s201
      %p213 = scmp.eq.s32.totalorder %s32, 1
      %p214 = por %p212, %p213
      %p216 = scmp.ne.s32.totalorder %s201, %s215
      %p217 = scmp.eq.s32.totalorder %s32, 0
      %p218 = por %p216, %p217
      %s220 = sadd.s32 %s219, 1
      %p223 = scmp.eq.s32.totalorder %s26, 1
      %p224 = scmp.ne.s32.totalorder %s219, %s221
      %p225 = scmp.eq.s32.totalorder %s26, 0
      %p226 = por %p224, %p225
      %p227 = scmp.ne.s32.totalorder %s219, %s221
      %p228 = scmp.eq.s32.totalorder %s31, 1
      %p229 = por %p227, %p228
      %p230 = scmp.ne.s32.totalorder %s221, %s222
      %p231 = scmp.eq.s32.totalorder %s31, 0
      %p232 = por %p230, %p231
      %p233 = scmp.ne.s32.totalorder %s221, %s222
      %p234 = scmp.eq.s32.totalorder %s32, 1
      %p235 = por %p233, %p234
      %p237 = scmp.ne.s32.totalorder %s222, %s236
      %p238 = scmp.eq.s32.totalorder %s32, 0
      %p239 = por %p237, %p238
      %s241 = sadd.s32 %s240, 1
      %p244 = scmp.eq.s32.totalorder %s26, 1
      %p245 = scmp.ne.s32.totalorder %s240, %s242
      %p246 = scmp.eq.s32.totalorder %s26, 0
      %p247 = por %p245, %p246
      %p248 = scmp.ne.s32.totalorder %s240, %s242
      %p249 = scmp.eq.s32.totalorder %s31, 1
      %p250 = por %p248, %p249
      %p251 = scmp.ne.s32.totalorder %s242, %s243
      %p252 = scmp.eq.s32.totalorder %s31, 0
      %p253 = por %p251, %p252
      %p254 = scmp.ne.s32.totalorder %s242, %s243
      %p255 = scmp.eq.s32.totalorder %s32, 1
      %p256 = por %p254, %p255
      %p258 = scmp.ne.s32.totalorder %s243, %s257
      %p259 = scmp.eq.s32.totalorder %s32, 0
      %p260 = por %p258, %p259
      %s262 = sadd.s32 %s261, 1
      %p265 = scmp.eq.s32.totalorder %s26, 1
      %p266 = scmp.ne.s32.totalorder %s261, %s263
      %p267 = scmp.eq.s32.totalorder %s26, 0
      %p268 = por %p266, %p267
      %p269 = scmp.ne.s32.totalorder %s261, %s263
      %p270 = scmp.eq.s32.totalorder %s31, 1
      %p271 = por %p269, %p270
      %p272 = scmp.ne.s32.totalorder %s263, %s264
      %p273 = scmp.eq.s32.totalorder %s31, 0
      %p274 = por %p272, %p273
      %p275 = scmp.ne.s32.totalorder %s263, %s264
      %p276 = scmp.eq.s32.totalorder %s32, 1
      %p277 = por %p275, %p276
      %p279 = scmp.ne.s32.totalorder %s264, %s278
      %p280 = scmp.eq.s32.totalorder %s32, 0
      %p281 = por %p279, %p280
      %s283 = sadd.s32 %s282, 1
      %p286 = scmp.eq.s32.totalorder %s26, 1
      %p287 = scmp.ne.s32.totalorder %s282, %s284
      %p288 = scmp.eq.s32.totalorder %s26, 0
      %p289 = por %p287, %p288
      %p290 = scmp.ne.s32.totalorder %s282, %s284
      %p291 = scmp.eq.s32.totalorder %s31, 1
      %p292 = por %p290, %p291
      %p293 = scmp.ne.s32.totalorder %s284, %s285
      %p294 = scmp.eq.s32.totalorder %s31, 0
      %p295 = por %p293, %p294
      %p296 = scmp.ne.s32.totalorder %s284, %s285
      %p297 = scmp.eq.s32.totalorder %s32, 1
      %p298 = por %p296, %p297
      %p300 = scmp.ne.s32.totalorder %s285, %s299
      %p301 = scmp.eq.s32.totalorder %s32, 0
      %p302 = por %p300, %p301
      %s304 = sadd.s32 %s303, 1
      %p307 = scmp.eq.s32.totalorder %s26, 1
      %p308 = scmp.ne.s32.totalorder %s303, %s305
      %p309 = scmp.eq.s32.totalorder %s26, 0
      %p310 = por %p308, %p309
      %p311 = scmp.ne.s32.totalorder %s303, %s305
      %p312 = scmp.eq.s32.totalorder %s31, 1
      %p313 = por %p311, %p312
      %p314 = scmp.ne.s32.totalorder %s305, %s306
      %p315 = scmp.eq.s32.totalorder %s31, 0
      %p316 = por %p314, %p315
      %p317 = scmp.ne.s32.totalorder %s305, %s306
      %p318 = scmp.eq.s32.totalorder %s32, 1
      %p319 = por %p317, %p318
      %p321 = scmp.ne.s32.totalorder %s306, %s320
      %p322 = scmp.eq.s32.totalorder %s32, 0
      %p323 = por %p321, %p322
      %s325 = sadd.s32 %s324, 1
      %p328 = scmp.eq.s32.totalorder %s26, 1
      %p329 = scmp.ne.s32.totalorder %s324, %s326
      %p330 = scmp.eq.s32.totalorder %s26, 0
      %p331 = por %p329, %p330
      %p332 = scmp.ne.s32.totalorder %s324, %s326
      %p333 = scmp.eq.s32.totalorder %s31, 1
      %p334 = por %p332, %p333
      %p335 = scmp.ne.s32.totalorder %s326, %s327
      %p336 = scmp.eq.s32.totalorder %s31, 0
      %p337 = por %p335, %p336
      %p338 = scmp.ne.s32.totalorder %s326, %s327
      %p339 = scmp.eq.s32.totalorder %s32, 1
      %p340 = por %p338, %p339
      %p342 = scmp.ne.s32.totalorder %s327, %s341
      %p343 = scmp.eq.s32.totalorder %s32, 0
      %p344 = por %p342, %p343
      %s346 = sadd.s32 %s345, 1
      %p349 = scmp.eq.s32.totalorder %s26, 1
      %p350 = scmp.ne.s32.totalorder %s345, %s347
      %p351 = scmp.eq.s32.totalorder %s26, 0
      %p352 = por %p350, %p351
      %p353 = scmp.ne.s32.totalorder %s345, %s347
      %p354 = scmp.eq.s32.totalorder %s31, 1
      %p355 = por %p353, %p354
      %p356 = scmp.ne.s32.totalorder %s347, %s348
      %p357 = scmp.eq.s32.totalorder %s31, 0
      %p358 = por %p356, %p357
      %p359 = scmp.ne.s32.totalorder %s347, %s348
      %p360 = scmp.eq.s32.totalorder %s32, 1
      %p361 = por %p359, %p360
      %p363 = scmp.ne.s32.totalorder %s348, %s362
      %p364 = scmp.eq.s32.totalorder %s32, 0
      %p365 = por %p363, %p364
      %s366 = ssub.s32 %s33, %s45
      %s367 = ssub.s32 %s34, %s41
      %s368 = sor.u32 %s366, %s367
      %p369 = scmp.eq.s32.totalorder %s368, 0
      %s371 = sadd.s32 %s370, 1
      %s372 = scalar_select %p369, %s370, %s371
      %p375 = pneg %p369
      %p376 = scmp.eq.s32.totalorder %s26, 1
      %p377 = por %p375, %p376
      %p378 = scmp.ne.s32.totalorder %s370, %s373
      %p379 = scmp.eq.s32.totalorder %s26, 0
      %p380 = por %p378, %p379
      %p381 = scmp.ne.s32.totalorder %s370, %s373
      %p382 = scmp.eq.s32.totalorder %s31, 1
      %p383 = por %p381, %p382
      %p384 = scmp.ne.s32.totalorder %s373, %s374
      %p385 = scmp.eq.s32.totalorder %s31, 0
      %p386 = por %p384, %p385
      %p387 = scmp.ne.s32.totalorder %s373, %s374
      %p388 = scmp.eq.s32.totalorder %s32, 1
      %p389 = por %p387, %p388
      %p391 = scmp.ne.s32.totalorder %s374, %s390
      %p392 = scmp.eq.s32.totalorder %s32, 0
      %p393 = por %p391, %p392
      %p394 = scmp.le.s32.totalorder 1, %s26
      %p395 = scmp.lt.s32.totalorder %s26, 3
      %p396 = pnand %p394, %p395
      %p397 = pneg %p396
      // Predicated region
      $region9: #{tpu_custom_call.1} parent=5 // pred_check
        _
      $region10: #{tpu_custom_call.1} parent=5 // pred_check_branch
        %399 = sbr.rel (%p396) target = $region12
      $region11: #{tpu_custom_call.1} parent=5 // pred_region
        %s400 = ssub.s32 %s26, 1
        // Predicated region
        $region13: #{tpu_custom_call.1} parent=11 // pred_check
          %p401 = pneg %p85
        $region14: #{tpu_custom_call.1} parent=11 // pred_check_branch
          %403 = sbr.rel (%p401) target = $region16
        $region15: #{tpu_custom_call.1} parent=11 // pred_region
          _
        $region16: #{tpu_custom_call.1} parent=11 // pred_fallthru
          _
        // Predicated region
        $region17: #{tpu_custom_call.1} parent=11 // pred_check
          %p404 = pneg %p106
        $region18: #{tpu_custom_call.1} parent=11 // pred_check_branch
          %406 = sbr.rel (%p404) target = $region20
        $region19: #{tpu_custom_call.1} parent=11 // pred_region
          _
        $region20: #{tpu_custom_call.1} parent=11 // pred_fallthru
          _
        // Predicated region
        $region21: #{tpu_custom_call.1} parent=11 // pred_check
          %p407 = pneg %p127
        $region22: #{tpu_custom_call.1} parent=11 // pred_check_branch
          %409 = sbr.rel (%p407) target = $region24
        $region23: #{tpu_custom_call.1} parent=11 // pred_region
          _
        $region24: #{tpu_custom_call.1} parent=11 // pred_fallthru
          _
        // Predicated region
        $region25: #{tpu_custom_call.1} parent=11 // pred_check
          %p410 = pneg %p148
        $region26: #{tpu_custom_call.1} parent=11 // pred_check_branch
          %412 = sbr.rel (%p410) target = $region28
        $region27: #{tpu_custom_call.1} parent=11 // pred_region
          _
        $region28: #{tpu_custom_call.1} parent=11 // pred_fallthru
          _
        // Predicated region
        $region29: #{tpu_custom_call.1} parent=11 // pred_check
          %p413 = pneg %p169
        $region30: #{tpu_custom_call.1} parent=11 // pred_check_branch
          %415 = sbr.rel (%p413) target = $region32
        $region31: #{tpu_custom_call.1} parent=11 // pred_region
          %s417 = ssub.s32 256, 256
          %418 = vsyncadd [#allocation6], %s417
          %s419 = sshll.u32 [#allocation5], 4
          %s420 = int_to_ptr.vmem [resolvable:$true] %s419
          %425 = dma.hbm_to_vmem [thread:$0]  %s5, 256, %s420, [#allocation6], 64, 64, 4
        $region32: #{tpu_custom_call.1} parent=11 // pred_fallthru
          _
        // Predicated region
        $region33: #{tpu_custom_call.1} parent=11 // pred_check
          %p426 = pneg %p190
        $region34: #{tpu_custom_call.1} parent=11 // pred_check_branch
          %428 = sbr.rel (%p426) target = $region36
        $region35: #{tpu_custom_call.1} parent=11 // pred_region
          _
        $region36: #{tpu_custom_call.1} parent=11 // pred_fallthru
          _
        // Predicated region
        $region37: #{tpu_custom_call.1} parent=11 // pred_check
          %p429 = pneg %p211
        $region38: #{tpu_custom_call.1} parent=11 // pred_check_branch
          %431 = sbr.rel (%p429) target = $region40
        $region39: #{tpu_custom_call.1} parent=11 // pred_region
          %s433 = ssub.s32 256, 256
          %434 = vsyncadd [#allocation9], %s433
          %s435 = sshll.u32 [#allocation8], 4
          %s436 = int_to_ptr.vmem [resolvable:$true] %s435
          %441 = dma.hbm_to_vmem [thread:$0]  %s7, 256, %s436, [#allocation9], 64, 64, 4
        $region40: #{tpu_custom_call.1} parent=11 // pred_fallthru
          _
        // Predicated region
        $region41: #{tpu_custom_call.1} parent=11 // pred_check
          %p442 = pneg %p232
        $region42: #{tpu_custom_call.1} parent=11 // pred_check_branch
          %444 = sbr.rel (%p442) target = $region44
        $region43: #{tpu_custom_call.1} parent=11 // pred_region
          _
        $region44: #{tpu_custom_call.1} parent=11 // pred_fallthru
          _
        // Predicated region
        $region45: #{tpu_custom_call.1} parent=11 // pred_check
          %p445 = pneg %p253
        $region46: #{tpu_custom_call.1} parent=11 // pred_check_branch
          %447 = sbr.rel (%p445) target = $region48
        $region47: #{tpu_custom_call.1} parent=11 // pred_region
          _
        $region48: #{tpu_custom_call.1} parent=11 // pred_fallthru
          _
        // Predicated region
        $region49: #{tpu_custom_call.1} parent=11 // pred_check
          %p448 = pneg %p274
        $region50: #{tpu_custom_call.1} parent=11 // pred_check_branch
          %450 = sbr.rel (%p448) target = $region52
        $region51: #{tpu_custom_call.1} parent=11 // pred_region
          _
        $region52: #{tpu_custom_call.1} parent=11 // pred_fallthru
          _
        // Predicated region
        $region53: #{tpu_custom_call.1} parent=11 // pred_check
          %p451 = pneg %p295
        $region54: #{tpu_custom_call.1} parent=11 // pred_check_branch
          %453 = sbr.rel (%p451) target = $region56
        $region55: #{tpu_custom_call.1} parent=11 // pred_region
          _
        $region56: #{tpu_custom_call.1} parent=11 // pred_fallthru
          _
        // Predicated region
        $region57: #{tpu_custom_call.1} parent=11 // pred_check
          %p454 = pneg %p316
        $region58: #{tpu_custom_call.1} parent=11 // pred_check_branch
          %456 = sbr.rel (%p454) target = $region60
        $region59: #{tpu_custom_call.1} parent=11 // pred_region
          _
        $region60: #{tpu_custom_call.1} parent=11 // pred_fallthru
          _
        // Predicated region
        $region61: #{tpu_custom_call.1} parent=11 // pred_check
          %p457 = pneg %p337
        $region62: #{tpu_custom_call.1} parent=11 // pred_check_branch
          %459 = sbr.rel (%p457) target = $region64
        $region63: #{tpu_custom_call.1} parent=11 // pred_region
          _
        $region64: #{tpu_custom_call.1} parent=11 // pred_fallthru
          _
        // Predicated region
        $region65: #{tpu_custom_call.1} parent=11 // pred_check
          %p460 = pneg %p358
        $region66: #{tpu_custom_call.1} parent=11 // pred_check_branch
          %462 = sbr.rel (%p460) target = $region68
        $region67: #{tpu_custom_call.1} parent=11 // pred_region
          _
        $region68: #{tpu_custom_call.1} parent=11 // pred_fallthru
          _
      $region12: #{tpu_custom_call.1} parent=5 // pred_fallthru
        _
      %p463 = scmp.lt.s32.totalorder %s26, 2
      // Predicated region
      $region69: #{tpu_custom_call.1} parent=5 // pred_check
        %p464 = pneg %p463
      $region70: #{tpu_custom_call.1} parent=5 // pred_check_branch
        %466 = sbr.rel (%p464) target = $region72
      $region71: #{tpu_custom_call.1} parent=5 // pred_region
        // Predicated region
        $region73: #{tpu_custom_call.1} parent=71 // pred_check
          %p467 = pneg %p58
        $region74: #{tpu_custom_call.1} parent=71 // pred_check_branch
          %469 = sbr.rel (%p467) target = $region76
        $region75: #{tpu_custom_call.1} parent=71 // pred_region
          %p470 = scmp.lt.s32.totalorder %s33, 1
          %s471 = scalar_select %p470, %s33, 1
          %s472 = smul.addr %s471, 8
          %s473 = scalar_lea.vmem %s0, %s472
        $region76: #{tpu_custom_call.1} parent=71 // pred_fallthru
          _
      $region72: #{tpu_custom_call.1} parent=5 // pred_fallthru
        _
      %p474 = scmp.le.s32.totalorder 1, %s26
      %p475 = scmp.lt.s32.totalorder %s26, 3
      %p476 = pnand %p474, %p475
      %p477 = pneg %p476
      // Predicated region
      $region77: #{tpu_custom_call.1} parent=5 // pred_check
        _
      $region78: #{tpu_custom_call.1} parent=5 // pred_check_branch
        %479 = sbr.rel (%p476) target = $region80
      $region79: #{tpu_custom_call.1} parent=5 // pred_region
        %s480 = ssub.s32 %s26, 1
        // Predicated region
        $region81: #{tpu_custom_call.1} parent=79 // pred_check
          %p481 = pneg %p169
        $region82: #{tpu_custom_call.1} parent=79 // pred_check_branch
          %483 = sbr.rel (%p481) target = $region84
        $region83: #{tpu_custom_call.1} parent=79 // pred_region
          %484 = dma.done [#allocation6], 256
        $region84: #{tpu_custom_call.1} parent=79 // pred_fallthru
          _
        // Predicated region
        $region85: #{tpu_custom_call.1} parent=79 // pred_check
          %p485 = pneg %p211
        $region86: #{tpu_custom_call.1} parent=79 // pred_check_branch
          %487 = sbr.rel (%p485) target = $region88
        $region87: #{tpu_custom_call.1} parent=79 // pred_region
          %488 = dma.done [#allocation9], 256
        $region88: #{tpu_custom_call.1} parent=79 // pred_fallthru
          _
        %p489 = scmp.lt.s32.totalorder %s35, 1
        %s490 = scalar_select %p489, %s35, 1
        %s491 = smul.addr %s490, 8
        %s492 = scalar_lea.vmem %s0, %s491
        %p493 = pneg %p64
        %p494 = pneg %p61
        %p495 = pneg %p85
        %p496 = pneg %p82
        %p497 = pneg %p106
        %p498 = pneg %p103
        %p499 = pneg %p127
        %p500 = pneg %p124
        %p501 = pneg %p148
        %p502 = pneg %p145
        %p503 = pneg %p169
        %p504 = pneg %p166
        %p505 = pneg %p190
        %p506 = pneg %p187
        %p507 = pneg %p211
        %p508 = pneg %p208
        %p509 = pneg %p232
        %p510 = pneg %p229
        %p511 = pneg %p253
        %p512 = pneg %p250
        %p513 = pneg %p274
        %p514 = pneg %p271
        %p515 = pneg %p295
        %p516 = pneg %p292
        %p517 = pneg %p316
        %p518 = pneg %p313
        %p519 = pneg %p337
        %p520 = pneg %p334
        %p521 = pneg %p358
        %p522 = pneg %p355
        %p523 = pneg %p386
        %p524 = pneg %p383
        %s525 = sand.u32 %s373, 1
        %s526 = scalar_lea.sflag [#allocation7], %s525
        %s527 = sand.u32 %s373, 1
        %s528 = smul.addr %s527, 8
        %s529 = scalar_lea.vmem [#allocation10], %s528
        %p530 = scmp.lt.s32.totalorder %s35, 1
        %s531 = scalar_select %p530, %s35, 1
        %s532 = smul.addr %s531, 8
        %s533 = scalar_lea.vmem %s0, %s532
        %p535 = scmp.eq.s32.totalorder %s36, 0
        // Predicated region
        $region89: #{tpu_custom_call.1} parent=79 // pred_check
          %p536 = pneg %p535
        $region90: #{tpu_custom_call.1} parent=79 // pred_check_branch
          %538 = sbr.rel (%p536) target = $region92
        $region91: #{tpu_custom_call.1} parent=79 // pred_region
          %v539 = vld [vmem:[%s533] sm:$0xff]
          %v540 = vpack.c.bf16 %v539, %v539
          %v541 = vld [vmem:[%s3] sm:$0xf]
          %v542 = vld [vmem:[%s3 + $0x4] sm:$0xf]
          %v543 = vld [vmem:[%s3 + $0x8] sm:$0xf]
          %v544 = vld [vmem:[%s3 + $0xc] sm:$0xf]
          %v545 = vld [vmem:[%s4] sm:$0x1]
          %v547 = vlaneseq
          %v548 = vshrl.u32 %v547, 7
          %v549 = vsub.s32 0, %v548
          %v550 = vrot.slane %v545, %v549
          %v556 = vunpack.c.l.b16 %v541
          %v557 = vunpack.c.l.b16 %v542
          %v558 = vunpack.c.l.b16 %v543
          %v559 = vunpack.c.l.b16 %v544
          %v560 = vpack.c.b16 %v557, %v556
          %v561 = vpack.c.b16 %v559, %v558
          %vm564 = vcmask 261120
          %v566 = vsel %vm564, %v540, 0
          %568 = vmatprep.subr.bf16.mxu0 0
          %569 = vmatpush1.bf16.msra.mxu0 %v560
          %570 = vmatprep.subr.bf16.mxu0 0
          %571 = vmatpush1.bf16.msra.mxu0 %v561
          %572 = vmatprep.subr.bf16.mxu0 0
          %573 = vmatpush1.bf16.msra.mxu0 0
          %574 = vmatprep.subr.bf16.mxu0 0
          %575 = vmatpush1.bf16.msra.mxu0 0
          %576 = vmatprep.subr.bf16.mxu0 0
          %577 = vmatpush1.bf16.msra.mxu0 0
          %578 = vmatprep.subr.bf16.mxu0 0
          %579 = vmatpush1.bf16.msra.mxu0 0
          %580 = vmatprep.subr.bf16.mxu0 0
          %581 = vmatpush1.bf16.msra.mxu0 0
          %582 = vmatprep.subr.bf16.mxu0 0
          %583 = vmatpush1.bf16.msra.mxu0 0
          %584 = vmatprep.subr.bf16.mxu0 0
          %585 = vmatpush1.bf16.msra.mxu0 0
          %586 = vmatprep.subr.bf16.mxu0 0
          %587 = vmatpush1.bf16.msra.mxu0 0
          %588 = vmatprep.subr.bf16.mxu0 0
          %589 = vmatpush1.bf16.msra.mxu0 0
          %590 = vmatprep.subr.bf16.mxu0 0
          %591 = vmatpush1.bf16.msra.mxu0 0
          %592 = vmatprep.subr.bf16.mxu0 0
          %593 = vmatpush1.bf16.msra.mxu0 0
          %594 = vmatprep.subr.bf16.mxu0 0
          %595 = vmatpush1.bf16.msra.mxu0 0
          %596 = vmatprep.subr.bf16.mxu0 0
          %597 = vmatpush1.bf16.msra.mxu0 0
          %598 = vmatprep.subr.bf16.mxu0 0
          %599 = vmatpush1.bf16.msra.mxu0 0
          %600 = vmatprep.mubr.bf16.mxu0 0
          %601 = vmatmul.mubr.bf16.gmra.mrb[0].mxu0 %v566
          %v602 = vpop.f32.mrb[0].mxu0
          %v603 = vadd.f32 %v550, %v602
          %v604 = vpop.f32.mrb[0].mxu0
          %v605 = vpop.f32.mrb[0].mxu0
          %v606 = vpop.f32.mrb[0].mxu0
          %607 = vdwg.mxu0
          %v608 = vpack.c.bf16 %v603, %v603
          %vm609 = vcmask 257024
          %610 = vst.msk [vmem:[#allocation2] sm:$0xf] %vm609, %v608
          %v612 = vunpack.c.l.b16 %v608
          %v613 = vpack.c.b16 %v612, %v612
          %614 = vrot.lane.b32.xlu0 %v613, 96
          %v615 = vpop.permute.xlu0 %614
          %617 = vst.msk [vmem:[#allocation3] sm:$0xf] %vm609, %v615
        $region92: #{tpu_custom_call.1} parent=79 // pred_fallthru
          _
        %s618 = smul.u32 %s36, 8
        %s619 = scalar_lea.vmem %s533, %s618
        %v620 = vld [vmem:[%s619] sm:$0xff]
        %v621 = vpack.c.bf16 %v620, %v620
        %v622 = vld [vmem:[%s1] sm:$0xf]
        %v623 = vld [vmem:[%s1 + $0x4] sm:$0xf]
        %v624 = vld [vmem:[%s1 + $0x8] sm:$0xf]
        %v625 = vld [vmem:[%s1 + $0xc] sm:$0xf]
        %v626 = vld [vmem:[%s2] sm:$0x1]
        %v628 = vlaneseq
        %v629 = vshrl.u32 %v628, 7
        %v630 = vsub.s32 0, %v629
        %v631 = vrot.slane %v626, %v630
        %v637 = vunpack.c.l.b16 %v622
        %v638 = vunpack.c.l.b16 %v623
        %v639 = vunpack.c.l.b16 %v624
        %v640 = vunpack.c.l.b16 %v625
        %v641 = vpack.c.b16 %v638, %v637
        %v642 = vpack.c.b16 %v640, %v639
        %vm645 = vcmask 261120
        %v647 = vsel %vm645, %v621, 0
        %649 = vmatprep.subr.bf16.mxu0 0
        %650 = vmatpush1.bf16.msra.mxu0 %v641
        %651 = vmatprep.subr.bf16.mxu0 0
        %652 = vmatpush1.bf16.msra.mxu0 %v642
        %653 = vmatprep.subr.bf16.mxu0 0
        %654 = vmatpush1.bf16.msra.mxu0 0
        %655 = vmatprep.subr.bf16.mxu0 0
        %656 = vmatpush1.bf16.msra.mxu0 0
        %657 = vmatprep.subr.bf16.mxu0 0
        %658 = vmatpush1.bf16.msra.mxu0 0
        %659 = vmatprep.subr.bf16.mxu0 0
        %660 = vmatpush1.bf16.msra.mxu0 0
        %661 = vmatprep.subr.bf16.mxu0 0
        %662 = vmatpush1.bf16.msra.mxu0 0
        %663 = vmatprep.subr.bf16.mxu0 0
        %664 = vmatpush1.bf16.msra.mxu0 0
        %665 = vmatprep.subr.bf16.mxu0 0
        %666 = vmatpush1.bf16.msra.mxu0 0
        %667 = vmatprep.subr.bf16.mxu0 0
        %668 = vmatpush1.bf16.msra.mxu0 0
        %669 = vmatprep.subr.bf16.mxu0 0
        %670 = vmatpush1.bf16.msra.mxu0 0
        %671 = vmatprep.subr.bf16.mxu0 0
        %672 = vmatpush1.bf16.msra.mxu0 0
        %673 = vmatprep.subr.bf16.mxu0 0
        %674 = vmatpush1.bf16.msra.mxu0 0
        %675 = vmatprep.subr.bf16.mxu0 0
        %676 = vmatpush1.bf16.msra.mxu0 0
        %677 = vmatprep.subr.bf16.mxu0 0
        %678 = vmatpush1.bf16.msra.mxu0 0
        %679 = vmatprep.subr.bf16.mxu0 0
        %680 = vmatpush1.bf16.msra.mxu0 0
        %681 = vmatprep.mubr.bf16.mxu0 0
        %682 = vmatmul.mubr.bf16.gmra.mrb[0].mxu0 %v647
        %v683 = vpop.f32.mrb[0].mxu0
        %v684 = vadd.f32 %v631, %v683
        %v685 = vpop.f32.mrb[0].mxu0
        %v686 = vpop.f32.mrb[0].mxu0
        %v687 = vpop.f32.mrb[0].mxu0
        %688 = vdwg.mxu0
        %v689 = vpack.c.bf16 %v684, %v684
        %v690 = vld [vmem:[#allocation2] sm:$0xf]
        %v691 = vld [vmem:[#allocation3] sm:$0xf]
        %vm692 = vcmask 64512
        %v694 = vsel %vm692, %v689, 0
        %v697 = vsel %vm692, %v690, 0
        %699 = vmatprep.subr.bf16.mxu0 0
        %700 = vmatpush1.bf16.xpose.msra.mxu0 %v697
        %701 = vmatprep.subr.bf16.mxu0 0
        %702 = vmatpush1.bf16.xpose.msra.mxu0 0
        %703 = vmatprep.subr.bf16.mxu0 0
        %704 = vmatpush1.bf16.xpose.msra.mxu0 0
        %705 = vmatprep.subr.bf16.mxu0 0
        %706 = vmatpush1.bf16.xpose.msra.mxu0 0
        %707 = vmatprep.subr.bf16.mxu0 0
        %708 = vmatpush1.bf16.xpose.msra.mxu0 0
        %709 = vmatprep.subr.bf16.mxu0 0
        %710 = vmatpush1.bf16.xpose.msra.mxu0 0
        %711 = vmatprep.subr.bf16.mxu0 0
        %712 = vmatpush1.bf16.xpose.msra.mxu0 0
        %713 = vmatprep.subr.bf16.mxu0 0
        %714 = vmatpush1.bf16.xpose.msra.mxu0 0
        %715 = vmatprep.subr.bf16.mxu0 0
        %716 = vmatpush1.bf16.xpose.msra.mxu0 0
        %717 = vmatprep.subr.bf16.mxu0 0
        %718 = vmatpush1.bf16.xpose.msra.mxu0 0
        %719 = vmatprep.subr.bf16.mxu0 0
        %720 = vmatpush1.bf16.xpose.msra.mxu0 0
        %721 = vmatprep.subr.bf16.mxu0 0
        %722 = vmatpush1.bf16.xpose.msra.mxu0 0
        %723 = vmatprep.subr.bf16.mxu0 0
        %724 = vmatpush1.bf16.xpose.msra.mxu0 0
        %725 = vmatprep.subr.bf16.mxu0 0
        %726 = vmatpush1.bf16.xpose.msra.mxu0 0
        %727 = vmatprep.subr.bf16.mxu0 0
        %728 = vmatpush1.bf16.xpose.msra.mxu0 0
        %729 = vmatprep.subr.bf16.mxu0 0
        %730 = vmatpush1.bf16.xpose.msra.mxu0 0
        %731 = vmatprep.mubr.bf16.mxu0 0
        %732 = vmatmul.mubr.bf16.gmra.mrb[0].mxu0 %v694
        %v733 = vpop.f32.mrb[0].mxu0
        %v734 = vadd.f32 0.0, %v733
        %v735 = vpop.f32.mrb[0].mxu0
        %v736 = vpop.f32.mrb[0].mxu0
        %v737 = vpop.f32.mrb[0].mxu0
        %738 = vdwg.mxu0
        %v739 = vsel %vm692, %v734, -inf
        %740 = vmax.xlane.f32.xlu0 %v739
        %v741 = vpop.xlane.xlu0 %740
        %v742 = vsub.f32 %v734, %v741
        %v743 = vmul.f32 %v742, 1.442695
        %v744 = vpow.pop %v743
        %v745 = vsel %vm692, %v744, 0.0
        %746 = vadd.xlane.f32.xlu0 %v745
        %v747 = vpop.xlane.xlu0 %746
        %v748 = vrcp.pop %v747
        %v749 = vmul.f32 %v744, %v748
        %v750 = vpack.c.bf16 %v749, %v749
        %v752 = vsel %vm692, %v750, 0
        %vm754 = vcmask 1043456
        %v756 = vsel %vm754, %v691, 0
        %758 = vmatprep.subr.bf16.mxu0 0
        %759 = vmatpush1.bf16.msra.mxu0 %v756
        %760 = vmatprep.subr.bf16.mxu0 0
        %761 = vmatpush1.bf16.msra.mxu0 0
        %762 = vmatprep.subr.bf16.mxu0 0
        %763 = vmatpush1.bf16.msra.mxu0 0
        %764 = vmatprep.subr.bf16.mxu0 0
        %765 = vmatpush1.bf16.msra.mxu0 0
        %766 = vmatprep.subr.bf16.mxu0 0
        %767 = vmatpush1.bf16.msra.mxu0 0
        %768 = vmatprep.subr.bf16.mxu0 0
        %769 = vmatpush1.bf16.msra.mxu0 0
        %770 = vmatprep.subr.bf16.mxu0 0
        %771 = vmatpush1.bf16.msra.mxu0 0
        %772 = vmatprep.subr.bf16.mxu0 0
        %773 = vmatpush1.bf16.msra.mxu0 0
        %774 = vmatprep.subr.bf16.mxu0 0
        %775 = vmatpush1.bf16.msra.mxu0 0
        %776 = vmatprep.subr.bf16.mxu0 0
        %777 = vmatpush1.bf16.msra.mxu0 0
        %778 = vmatprep.subr.bf16.mxu0 0
        %779 = vmatpush1.bf16.msra.mxu0 0
        %780 = vmatprep.subr.bf16.mxu0 0
        %781 = vmatpush1.bf16.msra.mxu0 0
        %782 = vmatprep.subr.bf16.mxu0 0
        %783 = vmatpush1.bf16.msra.mxu0 0
        %784 = vmatprep.subr.bf16.mxu0 0
        %785 = vmatpush1.bf16.msra.mxu0 0
        %786 = vmatprep.subr.bf16.mxu0 0
        %787 = vmatpush1.bf16.msra.mxu0 0
        %788 = vmatprep.subr.bf16.mxu0 0
        %789 = vmatpush1.bf16.msra.mxu0 0
        %790 = vmatprep.mubr.bf16.mxu0 0
        %791 = vmatmul.mubr.bf16.gmra.mrb[0].mxu0 %v752
        %v792 = vpop.f32.mrb[0].mxu0
        %v793 = vadd.f32 0.0, %v792
        %v794 = vpop.f32.mrb[0].mxu0
        %v795 = vpop.f32.mrb[0].mxu0
        %v796 = vpop.f32.mrb[0].mxu0
        %797 = vdwg.mxu0
        %v798 = vpack.c.bf16 %v793, %v793
        %vm799 = vcmask 60416
        %800 = vst.msk [vmem:[#allocation4] sm:$0xf] %vm799, %v798
        %802 = vrot.lane.b32.xlu0 %v689, 120
        %v803 = vpop.permute.xlu0 %802
        %v805 = vunpack.c.l.b16 %v690
        %v806 = vpack.c.b16 %v805, %v805
        %807 = vrot.lane.b32.xlu0 %v806, 120
        %v808 = vpop.permute.xlu0 %807
        %v810 = vsel %vm692, %v803, 0
        %v813 = vsel %vm692, %v808, 0
        %815 = vmatprep.subr.bf16.mxu0 0
        %816 = vmatpush1.bf16.xpose.msra.mxu0 %v813
        %817 = vmatprep.subr.bf16.mxu0 0
        %818 = vmatpush1.bf16.xpose.msra.mxu0 0
        %819 = vmatprep.subr.bf16.mxu0 0
        %820 = vmatpush1.bf16.xpose.msra.mxu0 0
        %821 = vmatprep.subr.bf16.mxu0 0
        %822 = vmatpush1.bf16.xpose.msra.mxu0 0
        %823 = vmatprep.subr.bf16.mxu0 0
        %824 = vmatpush1.bf16.xpose.msra.mxu0 0
        %825 = vmatprep.subr.bf16.mxu0 0
        %826 = vmatpush1.bf16.xpose.msra.mxu0 0
        %827 = vmatprep.subr.bf16.mxu0 0
        %828 = vmatpush1.bf16.xpose.msra.mxu0 0
        %829 = vmatprep.subr.bf16.mxu0 0
        %830 = vmatpush1.bf16.xpose.msra.mxu0 0
        %831 = vmatprep.subr.bf16.mxu0 0
        %832 = vmatpush1.bf16.xpose.msra.mxu0 0
        %833 = vmatprep.subr.bf16.mxu0 0
        %834 = vmatpush1.bf16.xpose.msra.mxu0 0
        %835 = vmatprep.subr.bf16.mxu0 0
        %836 = vmatpush1.bf16.xpose.msra.mxu0 0
        %837 = vmatprep.subr.bf16.mxu0 0
        %838 = vmatpush1.bf16.xpose.msra.mxu0 0
        %839 = vmatprep.subr.bf16.mxu0 0
        %840 = vmatpush1.bf16.xpose.msra.mxu0 0
        %841 = vmatprep.subr.bf16.mxu0 0
        %842 = vmatpush1.bf16.xpose.msra.mxu0 0
        %843 = vmatprep.subr.bf16.mxu0 0
        %844 = vmatpush1.bf16.xpose.msra.mxu0 0
        %845 = vmatprep.subr.bf16.mxu0 0
        %846 = vmatpush1.bf16.xpose.msra.mxu0 0
        %847 = vmatprep.mubr.bf16.mxu0 0
        %848 = vmatmul.mubr.bf16.gmra.mrb[0].mxu0 %v810
        %v849 = vpop.f32.mrb[0].mxu0
        %v850 = vadd.f32 0.0, %v849
        %v851 = vpop.f32.mrb[0].mxu0
        %v852 = vpop.f32.mrb[0].mxu0
        %v853 = vpop.f32.mrb[0].mxu0
        %854 = vdwg.mxu0
        %v855 = vsel %vm692, %v850, -inf
        %856 = vmax.xlane.f32.xlu0 %v855
        %v857 = vpop.xlane.xlu0 %856
        %v858 = vsub.f32 %v850, %v857
        %v859 = vmul.f32 %v858, 1.442695
        %v860 = vpow.pop %v859
        %v861 = vsel %vm692, %v860, 0.0
        %862 = vadd.xlane.f32.xlu0 %v861
        %v863 = vpop.xlane.xlu0 %862
        %v864 = vrcp.pop %v863
        %v865 = vmul.f32 %v860, %v864
        %v866 = vpack.c.bf16 %v865, %v865
        %v868 = vunpack.c.l.b16 %v691
        %v869 = vpack.c.b16 %v868, %v868
        %870 = vrot.lane.b32.xlu0 %v869, 120
        %v871 = vpop.permute.xlu0 %870
        %v873 = vsel %vm692, %v866, 0
        %v876 = vsel %vm754, %v871, 0
        %878 = vmatprep.subr.bf16.mxu0 0
        %879 = vmatpush1.bf16.msra.mxu0 %v876
        %880 = vmatprep.subr.bf16.mxu0 0
        %881 = vmatpush1.bf16.msra.mxu0 0
        %882 = vmatprep.subr.bf16.mxu0 0
        %883 = vmatpush1.bf16.msra.mxu0 0
        %884 = vmatprep.subr.bf16.mxu0 0
        %885 = vmatpush1.bf16.msra.mxu0 0
        %886 = vmatprep.subr.bf16.mxu0 0
        %887 = vmatpush1.bf16.msra.mxu0 0
        %888 = vmatprep.subr.bf16.mxu0 0
        %889 = vmatpush1.bf16.msra.mxu0 0
        %890 = vmatprep.subr.bf16.mxu0 0
        %891 = vmatpush1.bf16.msra.mxu0 0
        %892 = vmatprep.subr.bf16.mxu0 0
        %893 = vmatpush1.bf16.msra.mxu0 0
        %894 = vmatprep.subr.bf16.mxu0 0
        %895 = vmatpush1.bf16.msra.mxu0 0
        %896 = vmatprep.subr.bf16.mxu0 0
        %897 = vmatpush1.bf16.msra.mxu0 0
        %898 = vmatprep.subr.bf16.mxu0 0
        %899 = vmatpush1.bf16.msra.mxu0 0
        %900 = vmatprep.subr.bf16.mxu0 0
        %901 = vmatpush1.bf16.msra.mxu0 0
        %902 = vmatprep.subr.bf16.mxu0 0
        %903 = vmatpush1.bf16.msra.mxu0 0
        %904 = vmatprep.subr.bf16.mxu0 0
        %905 = vmatpush1.bf16.msra.mxu0 0
        %906 = vmatprep.subr.bf16.mxu0 0
        %907 = vmatpush1.bf16.msra.mxu0 0
        %908 = vmatprep.subr.bf16.mxu0 0
        %909 = vmatpush1.bf16.msra.mxu0 0
        %910 = vmatprep.mubr.bf16.mxu0 0
        %911 = vmatmul.mubr.bf16.gmra.mrb[0].mxu0 %v873
        %v912 = vpop.f32.mrb[0].mxu0
        %v913 = vadd.f32 0.0, %v912
        %v914 = vpop.f32.mrb[0].mxu0
        %v915 = vpop.f32.mrb[0].mxu0
        %v916 = vpop.f32.mrb[0].mxu0
        %917 = vdwg.mxu0
        %v918 = vpack.c.bf16 %v913, %v913
        %v920 = vunpack.c.l.b16 %v918
        %v921 = vpack.c.b16 %v920, %v920
        %922 = vrot.lane.b32.xlu0 %v921, 8
        %v923 = vpop.permute.xlu0 %922
        %vm925 = vcmask 126016
        %926 = vst.msk [vmem:[#allocation4] sm:$0xf] %vm925, %v923
        %927 = vrot.lane.b32.xlu0 %v689, 112
        %v928 = vpop.permute.xlu0 %927
        %929 = vrot.lane.b32.xlu0 %v806, 112
        %v930 = vpop.permute.xlu0 %929
        %v932 = vsel %vm692, %v928, 0
        %v935 = vsel %vm692, %v930, 0
        %937 = vmatprep.subr.bf16.mxu0 0
        %938 = vmatpush1.bf16.xpose.msra.mxu0 %v935
        %939 = vmatprep.subr.bf16.mxu0 0
        %940 = vmatpush1.bf16.xpose.msra.mxu0 0
        %941 = vmatprep.subr.bf16.mxu0 0
        %942 = vmatpush1.bf16.xpose.msra.mxu0 0
        %943 = vmatprep.subr.bf16.mxu0 0
        %944 = vmatpush1.bf16.xpose.msra.mxu0 0
        %945 = vmatprep.subr.bf16.mxu0 0
        %946 = vmatpush1.bf16.xpose.msra.mxu0 0
        %947 = vmatprep.subr.bf16.mxu0 0
        %948 = vmatpush1.bf16.xpose.msra.mxu0 0
        %949 = vmatprep.subr.bf16.mxu0 0
        %950 = vmatpush1.bf16.xpose.msra.mxu0 0
        %951 = vmatprep.subr.bf16.mxu0 0
        %952 = vmatpush1.bf16.xpose.msra.mxu0 0
        %953 = vmatprep.subr.bf16.mxu0 0
        %954 = vmatpush1.bf16.xpose.msra.mxu0 0
        %955 = vmatprep.subr.bf16.mxu0 0
        %956 = vmatpush1.bf16.xpose.msra.mxu0 0
        %957 = vmatprep.subr.bf16.mxu0 0
        %958 = vmatpush1.bf16.xpose.msra.mxu0 0
        %959 = vmatprep.subr.bf16.mxu0 0
        %960 = vmatpush1.bf16.xpose.msra.mxu0 0
        %961 = vmatprep.subr.bf16.mxu0 0
        %962 = vmatpush1.bf16.xpose.msra.mxu0 0
        %963 = vmatprep.subr.bf16.mxu0 0
        %964 = vmatpush1.bf16.xpose.msra.mxu0 0
        %965 = vmatprep.subr.bf16.mxu0 0
        %966 = vmatpush1.bf16.xpose.msra.mxu0 0
        %967 = vmatprep.subr.bf16.mxu0 0
        %968 = vmatpush1.bf16.xpose.msra.mxu0 0
        %969 = vmatprep.mubr.bf16.mxu0 0
        %970 = vmatmul.mubr.bf16.gmra.mrb[0].mxu0 %v932
        %v971 = vpop.f32.mrb[0].mxu0
        %v972 = vadd.f32 0.0, %v971
        %v973 = vpop.f32.mrb[0].mxu0
        %v974 = vpop.f32.mrb[0].mxu0
        %v975 = vpop.f32.mrb[0].mxu0
        %976 = vdwg.mxu0
        %v977 = vsel %vm692, %v972, -inf
        %978 = vmax.xlane.f32.xlu0 %v977
        %v979 = vpop.xlane.xlu0 %978
        %v980 = vsub.f32 %v972, %v979
        %v981 = vmul.f32 %v980, 1.442695
        %v982 = vpow.pop %v981
        %v983 = vsel %vm692, %v982, 0.0
        %984 = vadd.xlane.f32.xlu0 %v983
        %v985 = vpop.xlane.xlu0 %984
        %v986 = vrcp.pop %v985
        %v987 = vmul.f32 %v982, %v986
        %v988 = vpack.c.bf16 %v987, %v987
        %989 = vrot.lane.b32.xlu0 %v869, 112
        %v990 = vpop.permute.xlu0 %989
        %v992 = vsel %vm692, %v988, 0
        %v995 = vsel %vm754, %v990, 0
        %997 = vmatprep.subr.bf16.mxu0 0
        %998 = vmatpush1.bf16.msra.mxu0 %v995
        %999 = vmatprep.subr.bf16.mxu0 0
        %1000 = vmatpush1.bf16.msra.mxu0 0
        %1001 = vmatprep.subr.bf16.mxu0 0
        %1002 = vmatpush1.bf16.msra.mxu0 0
        %1003 = vmatprep.subr.bf16.mxu0 0
        %1004 = vmatpush1.bf16.msra.mxu0 0
        %1005 = vmatprep.subr.bf16.mxu0 0
        %1006 = vmatpush1.bf16.msra.mxu0 0
        %1007 = vmatprep.subr.bf16.mxu0 0
        %1008 = vmatpush1.bf16.msra.mxu0 0
        %1009 = vmatprep.subr.bf16.mxu0 0
        %1010 = vmatpush1.bf16.msra.mxu0 0
        %1011 = vmatprep.subr.bf16.mxu0 0
        %1012 = vmatpush1.bf16.msra.mxu0 0
        %1013 = vmatprep.subr.bf16.mxu0 0
        %1014 = vmatpush1.bf16.msra.mxu0 0
        %1015 = vmatprep.subr.bf16.mxu0 0
        %1016 = vmatpush1.bf16.msra.mxu0 0
        %1017 = vmatprep.subr.bf16.mxu0 0
        %1018 = vmatpush1.bf16.msra.mxu0 0
        %1019 = vmatprep.subr.bf16.mxu0 0
        %1020 = vmatpush1.bf16.msra.mxu0 0
        %1021 = vmatprep.subr.bf16.mxu0 0
        %1022 = vmatpush1.bf16.msra.mxu0 0
        %1023 = vmatprep.subr.bf16.mxu0 0
        %1024 = vmatpush1.bf16.msra.mxu0 0
        %1025 = vmatprep.subr.bf16.mxu0 0
        %1026 = vmatpush1.bf16.msra.mxu0 0
        %1027 = vmatprep.subr.bf16.mxu0 0
        %1028 = vmatpush1.bf16.msra.mxu0 0
        %1029 = vmatprep.mubr.bf16.mxu0 0
        %1030 = vmatmul.mubr.bf16.gmra.mrb[0].mxu0 %v992
        %v1031 = vpop.f32.mrb[0].mxu0
        %v1032 = vadd.f32 0.0, %v1031
        %v1033 = vpop.f32.mrb[0].mxu0
        %v1034 = vpop.f32.mrb[0].mxu0
        %v1035 = vpop.f32.mrb[0].mxu0
        %1036 = vdwg.mxu0
        %v1037 = vpack.c.bf16 %v1032, %v1032
        %v1039 = vunpack.c.l.b16 %v1037
        %v1040 = vpack.c.b16 %v1039, %v1039
        %1041 = vrot.lane.b32.xlu0 %v1040, 16
        %v1042 = vpop.permute.xlu0 %1041
        %vm1044 = vcmask 191616
        %1045 = vst.msk [vmem:[#allocation4] sm:$0xf] %vm1044, %v1042
        %1046 = vrot.lane.b32.xlu0 %v689, 104
        %v1047 = vpop.permute.xlu0 %1046
        %1048 = vrot.lane.b32.xlu0 %v806, 104
        %v1049 = vpop.permute.xlu0 %1048
        %v1051 = vsel %vm692, %v1047, 0
        %v1054 = vsel %vm692, %v1049, 0
        %1056 = vmatprep.subr.bf16.mxu0 0
        %1057 = vmatpush1.bf16.xpose.msra.mxu0 %v1054
        %1058 = vmatprep.subr.bf16.mxu0 0
        %1059 = vmatpush1.bf16.xpose.msra.mxu0 0
        %1060 = vmatprep.subr.bf16.mxu0 0
        %1061 = vmatpush1.bf16.xpose.msra.mxu0 0
        %1062 = vmatprep.subr.bf16.mxu0 0
        %1063 = vmatpush1.bf16.xpose.msra.mxu0 0
        %1064 = vmatprep.subr.bf16.mxu0 0
        %1065 = vmatpush1.bf16.xpose.msra.mxu0 0
        %1066 = vmatprep.subr.bf16.mxu0 0
        %1067 = vmatpush1.bf16.xpose.msra.mxu0 0
        %1068 = vmatprep.subr.bf16.mxu0 0
        %1069 = vmatpush1.bf16.xpose.msra.mxu0 0
        %1070 = vmatprep.subr.bf16.mxu0 0
        %1071 = vmatpush1.bf16.xpose.msra.mxu0 0
        %1072 = vmatprep.subr.bf16.mxu0 0
        %1073 = vmatpush1.bf16.xpose.msra.mxu0 0
        %1074 = vmatprep.subr.bf16.mxu0 0
        %1075 = vmatpush1.bf16.xpose.msra.mxu0 0
        %1076 = vmatprep.subr.bf16.mxu0 0
        %1077 = vmatpush1.bf16.xpose.msra.mxu0 0
        %1078 = vmatprep.subr.bf16.mxu0 0
        %1079 = vmatpush1.bf16.xpose.msra.mxu0 0
        %1080 = vmatprep.subr.bf16.mxu0 0
        %1081 = vmatpush1.bf16.xpose.msra.mxu0 0
        %1082 = vmatprep.subr.bf16.mxu0 0
        %1083 = vmatpush1.bf16.xpose.msra.mxu0 0
        %1084 = vmatprep.subr.bf16.mxu0 0
        %1085 = vmatpush1.bf16.xpose.msra.mxu0 0
        %1086 = vmatprep.subr.bf16.mxu0 0
        %1087 = vmatpush1.bf16.xpose.msra.mxu0 0
        %1088 = vmatprep.mubr.bf16.mxu0 0
        %1089 = vmatmul.mubr.bf16.gmra.mrb[0].mxu0 %v1051
        %v1090 = vpop.f32.mrb[0].mxu0
        %v1091 = vadd.f32 0.0, %v1090
        %v1092 = vpop.f32.mrb[0].mxu0
        %v1093 = vpop.f32.mrb[0].mxu0
        %v1094 = vpop.f32.mrb[0].mxu0
        %1095 = vdwg.mxu0
        %v1096 = vsel %vm692, %v1091, -inf
        %1097 = vmax.xlane.f32.xlu0 %v1096
        %v1098 = vpop.xlane.xlu0 %1097
        %v1099 = vsub.f32 %v1091, %v1098
        %v1100 = vmul.f32 %v1099, 1.442695
        %v1101 = vpow.pop %v1100
        %v1102 = vsel %vm692, %v1101, 0.0
        %1103 = vadd.xlane.f32.xlu0 %v1102
        %v1104 = vpop.xlane.xlu0 %1103
        %v1105 = vrcp.pop %v1104
        %v1106 = vmul.f32 %v1101, %v1105
        %v1107 = vpack.c.bf16 %v1106, %v1106
        %1108 = vrot.lane.b32.xlu0 %v869, 104
        %v1109 = vpop.permute.xlu0 %1108
        %v1111 = vsel %vm692, %v1107, 0
        %v1114 = vsel %vm754, %v1109, 0
        %1116 = vmatprep.subr.bf16.mxu0 0
        %1117 = vmatpush1.bf16.msra.mxu0 %v1114
        %1118 = vmatprep.subr.bf16.mxu0 0
        %1119 = vmatpush1.bf16.msra.mxu0 0
        %1120 = vmatprep.subr.bf16.mxu0 0
        %1121 = vmatpush1.bf16.msra.mxu0 0
        %1122 = vmatprep.subr.bf16.mxu0 0
        %1123 = vmatpush1.bf16.msra.mxu0 0
        %1124 = vmatprep.subr.bf16.mxu0 0
        %1125 = vmatpush1.bf16.msra.mxu0 0
        %1126 = vmatprep.subr.bf16.mxu0 0
        %1127 = vmatpush1.bf16.msra.mxu0 0
        %1128 = vmatprep.subr.bf16.mxu0 0
        %1129 = vmatpush1.bf16.msra.mxu0 0
        %1130 = vmatprep.subr.bf16.mxu0 0
        %1131 = vmatpush1.bf16.msra.mxu0 0
        %1132 = vmatprep.subr.bf16.mxu0 0
        %1133 = vmatpush1.bf16.msra.mxu0 0
        %1134 = vmatprep.subr.bf16.mxu0 0
        %1135 = vmatpush1.bf16.msra.mxu0 0
        %1136 = vmatprep.subr.bf16.mxu0 0
        %1137 = vmatpush1.bf16.msra.mxu0 0
        %1138 = vmatprep.subr.bf16.mxu0 0
        %1139 = vmatpush1.bf16.msra.mxu0 0
        %1140 = vmatprep.subr.bf16.mxu0 0
        %1141 = vmatpush1.bf16.msra.mxu0 0
        %1142 = vmatprep.subr.bf16.mxu0 0
        %1143 = vmatpush1.bf16.msra.mxu0 0
        %1144 = vmatprep.subr.bf16.mxu0 0
        %1145 = vmatpush1.bf16.msra.mxu0 0
        %1146 = vmatprep.subr.bf16.mxu0 0
        %1147 = vmatpush1.bf16.msra.mxu0 0
        %1148 = vmatprep.mubr.bf16.mxu0 0
        %1149 = vmatmul.mubr.bf16.gmra.mrb[0].mxu0 %v1111
        %v1150 = vpop.f32.mrb[0].mxu0
        %v1151 = vadd.f32 0.0, %v1150
        %v1152 = vpop.f32.mrb[0].mxu0
        %v1153 = vpop.f32.mrb[0].mxu0
        %v1154 = vpop.f32.mrb[0].mxu0
        %1155 = vdwg.mxu0
        %v1156 = vpack.c.bf16 %v1151, %v1151
        %v1158 = vunpack.c.l.b16 %v1156
        %v1159 = vpack.c.b16 %v1158, %v1158
        %1160 = vrot.lane.b32.xlu0 %v1159, 24
        %v1161 = vpop.permute.xlu0 %1160
        %vm1163 = vcmask 257216
        %1164 = vst.msk [vmem:[#allocation4] sm:$0xf] %vm1163, %v1161
        %v1165 = vld [vmem:[#allocation4] sm:$0xf]
        %v1166 = vld [vmem:[#allocation5] sm:$0xf]
        %v1167 = vld [vmem:[#allocation5 + $0x4] sm:$0xf]
        %v1168 = vld [vmem:[#allocation5 + $0x8] sm:$0xf]
        %v1169 = vld [vmem:[#allocation5 + $0xc] sm:$0xf]
        %v1170 = vld [vmem:[%s6] sm:$0x1]
        %v1172 = vlaneseq
        %v1173 = vshrl.u32 %v1172, 7
        %v1174 = vsub.s32 0, %v1173
        %v1175 = vrot.slane %v1170, %v1174
        %v1181 = vunpack.c.l.b16 %v1166
        %v1182 = vunpack.c.l.b16 %v1167
        %v1183 = vunpack.c.l.b16 %v1168
        %v1184 = vunpack.c.l.b16 %v1169
        %v1185 = vpack.c.b16 %v1182, %v1181
        %v1186 = vpack.c.b16 %v1184, %v1183
        %v1190 = vsel %vm645, %v1165, 0
        %1192 = vmatprep.subr.bf16.mxu0 0
        %1193 = vmatpush1.bf16.msra.mxu0 %v1185
        %1194 = vmatprep.subr.bf16.mxu0 0
        %1195 = vmatpush1.bf16.msra.mxu0 %v1186
        %1196 = vmatprep.subr.bf16.mxu0 0
        %1197 = vmatpush1.bf16.msra.mxu0 0
        %1198 = vmatprep.subr.bf16.mxu0 0
        %1199 = vmatpush1.bf16.msra.mxu0 0
        %1200 = vmatprep.subr.bf16.mxu0 0
        %1201 = vmatpush1.bf16.msra.mxu0 0
        %1202 = vmatprep.subr.bf16.mxu0 0
        %1203 = vmatpush1.bf16.msra.mxu0 0
        %1204 = vmatprep.subr.bf16.mxu0 0
        %1205 = vmatpush1.bf16.msra.mxu0 0
        %1206 = vmatprep.subr.bf16.mxu0 0
        %1207 = vmatpush1.bf16.msra.mxu0 0
        %1208 = vmatprep.subr.bf16.mxu0 0
        %1209 = vmatpush1.bf16.msra.mxu0 0
        %1210 = vmatprep.subr.bf16.mxu0 0
        %1211 = vmatpush1.bf16.msra.mxu0 0
        %1212 = vmatprep.subr.bf16.mxu0 0
        %1213 = vmatpush1.bf16.msra.mxu0 0
        %1214 = vmatprep.subr.bf16.mxu0 0
        %1215 = vmatpush1.bf16.msra.mxu0 0
        %1216 = vmatprep.subr.bf16.mxu0 0
        %1217 = vmatpush1.bf16.msra.mxu0 0
        %1218 = vmatprep.subr.bf16.mxu0 0
        %1219 = vmatpush1.bf16.msra.mxu0 0
        %1220 = vmatprep.subr.bf16.mxu0 0
        %1221 = vmatpush1.bf16.msra.mxu0 0
        %1222 = vmatprep.subr.bf16.mxu0 0
        %1223 = vmatpush1.bf16.msra.mxu0 0
        %1224 = vmatprep.mubr.bf16.mxu0 0
        %1225 = vmatmul.mubr.bf16.gmra.mrb[0].mxu0 %v1190
        %v1226 = vpop.f32.mrb[0].mxu0
        %v1227 = vadd.f32 %v1175, %v1226
        %v1228 = vpop.f32.mrb[0].mxu0
        %v1229 = vpop.f32.mrb[0].mxu0
        %v1230 = vpop.f32.mrb[0].mxu0
        %1231 = vdwg.mxu0
        %v1232 = vadd.f32 %v1227, %v620
        %v1233 = vld [vmem:[%s11] sm:$0x1]
        %v1234 = vld [vmem:[%s12] sm:$0x1]
        %v1235 = vsel %vm645, %v1232, 0.0
        %1236 = vadd.xlane.f32.xlu0 %v1235
        %v1237 = vpop.xlane.xlu0 %1236
        %v1238 = vrcp.pop 32.0
        %v1239 = vmul.f32 %v1237, %v1238
        %v1240 = vsub.f32 %v1232, %v1239
        %v1241 = vmul.f32 %v1240, %v1240
        %v1242 = vsel %vm645, %v1241, 0.0
        %1243 = vadd.xlane.f32.xlu0 %v1242
        %v1244 = vpop.xlane.xlu0 %1243
        %v1245 = vmul.f32 %v1244, %v1238
        %v1246 = vadd.f32 %v1245, 1e-05
        %v1247 = vrsqrt.pop %v1246
        %v1248 = vmul.f32 %v1240, %v1247
        %v1250 = vlaneseq
        %v1251 = vshrl.u32 %v1250, 7
        %v1252 = vsub.s32 0, %v1251
        %v1253 = vrot.slane %v1233, %v1252
        %v1255 = vmul.f32 %v1248, %v1253
        %v1257 = vlaneseq
        %v1258 = vshrl.u32 %v1257, 7
        %v1259 = vsub.s32 0, %v1258
        %v1260 = vrot.slane %v1234, %v1259
        %v1262 = vadd.f32 %v1255, %v1260
        %v1263 = vpack.c.bf16 %v1262, %v1262
        %v1264 = vld [vmem:[#allocation8] sm:$0xf]
        %v1265 = vld [vmem:[#allocation8 + $0x4] sm:$0xf]
        %v1266 = vld [vmem:[#allocation8 + $0x8] sm:$0xf]
        %v1267 = vld [vmem:[#allocation8 + $0xc] sm:$0xf]
        %v1268 = vld [vmem:[%s8] sm:$0x1]
        %v1270 = vlaneseq
        %v1271 = vshrl.u32 %v1270, 7
        %v1272 = vsub.s32 0, %v1271
        %v1273 = vrot.slane %v1268, %v1272
        %v1279 = vunpack.c.l.b16 %v1264
        %v1280 = vunpack.c.l.b16 %v1265
        %v1281 = vunpack.c.l.b16 %v1266
        %v1282 = vunpack.c.l.b16 %v1267
        %v1283 = vpack.c.b16 %v1280, %v1279
        %v1284 = vpack.c.b16 %v1282, %v1281
        %v1288 = vsel %vm645, %v1263, 0
        %1290 = vmatprep.subr.bf16.mxu0 0
        %1291 = vmatpush1.bf16.msra.mxu0 %v1283
        %1292 = vmatprep.subr.bf16.mxu0 0
        %1293 = vmatpush1.bf16.msra.mxu0 %v1284
        %1294 = vmatprep.subr.bf16.mxu0 0
        %1295 = vmatpush1.bf16.msra.mxu0 0
        %1296 = vmatprep.subr.bf16.mxu0 0
        %1297 = vmatpush1.bf16.msra.mxu0 0
        %1298 = vmatprep.subr.bf16.mxu0 0
        %1299 = vmatpush1.bf16.msra.mxu0 0
        %1300 = vmatprep.subr.bf16.mxu0 0
        %1301 = vmatpush1.bf16.msra.mxu0 0
        %1302 = vmatprep.subr.bf16.mxu0 0
        %1303 = vmatpush1.bf16.msra.mxu0 0
        %1304 = vmatprep.subr.bf16.mxu0 0
        %1305 = vmatpush1.bf16.msra.mxu0 0
        %1306 = vmatprep.subr.bf16.mxu0 0
        %1307 = vmatpush1.bf16.msra.mxu0 0
        %1308 = vmatprep.subr.bf16.mxu0 0
        %1309 = vmatpush1.bf16.msra.mxu0 0
        %1310 = vmatprep.subr.bf16.mxu0 0
        %1311 = vmatpush1.bf16.msra.mxu0 0
        %1312 = vmatprep.subr.bf16.mxu0 0
        %1313 = vmatpush1.bf16.msra.mxu0 0
        %1314 = vmatprep.subr.bf16.mxu0 0
        %1315 = vmatpush1.bf16.msra.mxu0 0
        %1316 = vmatprep.subr.bf16.mxu0 0
        %1317 = vmatpush1.bf16.msra.mxu0 0
        %1318 = vmatprep.subr.bf16.mxu0 0
        %1319 = vmatpush1.bf16.msra.mxu0 0
        %1320 = vmatprep.subr.bf16.mxu0 0
        %1321 = vmatpush1.bf16.msra.mxu0 0
        %1322 = vmatprep.mubr.bf16.mxu0 0
        %1323 = vmatmul.mubr.bf16.gmra.mrb[0].mxu0 %v1288
        %v1324 = vpop.f32.mrb[0].mxu0
        %v1325 = vadd.f32 %v1273, %v1324
        %v1326 = vpop.f32.mrb[0].mxu0
        %v1327 = vpop.f32.mrb[0].mxu0
        %v1328 = vpop.f32.mrb[0].mxu0
        %1329 = vdwg.mxu0
        %v1330 = vmax.f32 %v1325, 0.0
        %v1331 = vpack.c.bf16 %v1330, %v1330
        %v1332 = vld [vmem:[%s9] sm:$0xf]
        %v1333 = vld [vmem:[%s9 + $0x4] sm:$0xf]
        %v1334 = vld [vmem:[%s9 + $0x8] sm:$0xf]
        %v1335 = vld [vmem:[%s9 + $0xc] sm:$0xf]
        %v1336 = vld [vmem:[%s9 + $0x10] sm:$0xf]
        %v1337 = vld [vmem:[%s9 + $0x14] sm:$0xf]
        %v1338 = vld [vmem:[%s9 + $0x18] sm:$0xf]
        %v1339 = vld [vmem:[%s9 + $0x1c] sm:$0xf]
        %v1340 = vld [vmem:[%s10] sm:$0x1]
        %v1342 = vlaneseq
        %v1343 = vshrl.u32 %v1342, 7
        %v1344 = vsub.s32 0, %v1343
        %v1345 = vrot.slane %v1340, %v1344
        %v1355 = vunpack.c.l.b16 %v1332
        %v1356 = vunpack.c.l.b16 %v1333
        %v1357 = vunpack.c.l.b16 %v1334
        %v1358 = vunpack.c.l.b16 %v1335
        %v1359 = vunpack.c.l.b16 %v1336
        %v1360 = vunpack.c.l.b16 %v1337
        %v1361 = vunpack.c.l.b16 %v1338
        %v1362 = vunpack.c.l.b16 %v1339
        %v1363 = vpack.c.b16 %v1356, %v1355
        %v1364 = vpack.c.b16 %v1358, %v1357
        %v1365 = vpack.c.b16 %v1360, %v1359
        %v1366 = vpack.c.b16 %v1362, %v1361
        %vm1371 = vcmask 523264
        %v1373 = vsel %vm1371, %v1331, 0
        %1375 = vmatprep.subr.bf16.mxu0 0
        %1376 = vmatpush1.bf16.msra.mxu0 %v1363
        %1377 = vmatprep.subr.bf16.mxu0 0
        %1378 = vmatpush1.bf16.msra.mxu0 %v1364
        %1379 = vmatprep.subr.bf16.mxu0 0
        %1380 = vmatpush1.bf16.msra.mxu0 %v1365
        %1381 = vmatprep.subr.bf16.mxu0 0
        %1382 = vmatpush1.bf16.msra.mxu0 %v1366
        %1383 = vmatprep.subr.bf16.mxu0 0
        %1384 = vmatpush1.bf16.msra.mxu0 0
        %1385 = vmatprep.subr.bf16.mxu0 0
        %1386 = vmatpush1.bf16.msra.mxu0 0
        %1387 = vmatprep.subr.bf16.mxu0 0
        %1388 = vmatpush1.bf16.msra.mxu0 0
        %1389 = vmatprep.subr.bf16.mxu0 0
        %1390 = vmatpush1.bf16.msra.mxu0 0
        %1391 = vmatprep.subr.bf16.mxu0 0
        %1392 = vmatpush1.bf16.msra.mxu0 0
        %1393 = vmatprep.subr.bf16.mxu0 0
        %1394 = vmatpush1.bf16.msra.mxu0 0
        %1395 = vmatprep.subr.bf16.mxu0 0
        %1396 = vmatpush1.bf16.msra.mxu0 0
        %1397 = vmatprep.subr.bf16.mxu0 0
        %1398 = vmatpush1.bf16.msra.mxu0 0
        %1399 = vmatprep.subr.bf16.mxu0 0
        %1400 = vmatpush1.bf16.msra.mxu0 0
        %1401 = vmatprep.subr.bf16.mxu0 0
        %1402 = vmatpush1.bf16.msra.mxu0 0
        %1403 = vmatprep.subr.bf16.mxu0 0
        %1404 = vmatpush1.bf16.msra.mxu0 0
        %1405 = vmatprep.subr.bf16.mxu0 0
        %1406 = vmatpush1.bf16.msra.mxu0 0
        %1407 = vmatprep.mubr.bf16.mxu0 0
        %1408 = vmatmul.mubr.bf16.gmra.mrb[0].mxu0 %v1373
        %v1409 = vpop.f32.mrb[0].mxu0
        %v1410 = vadd.f32 %v1345, %v1409
        %v1411 = vpop.f32.mrb[0].mxu0
        %v1412 = vpop.f32.mrb[0].mxu0
        %v1413 = vpop.f32.mrb[0].mxu0
        %1414 = vdwg.mxu0
        %v1415 = vadd.f32 %v1410, %v1262
        %v1416 = vld [vmem:[%s13] sm:$0x1]
        %v1417 = vld [vmem:[%s14] sm:$0x1]
        %v1418 = vsel %vm645, %v1415, 0.0
        %1419 = vadd.xlane.f32.xlu0 %v1418
        %v1420 = vpop.xlane.xlu0 %1419
        %v1421 = vmul.f32 %v1420, %v1238
        %v1422 = vsub.f32 %v1415, %v1421
        %v1423 = vmul.f32 %v1422, %v1422
        %v1424 = vsel %vm645, %v1423, 0.0
        %1425 = vadd.xlane.f32.xlu0 %v1424
        %v1426 = vpop.xlane.xlu0 %1425
        %v1427 = vmul.f32 %v1426, %v1238
        %v1428 = vadd.f32 %v1427, 1e-05
        %v1429 = vrsqrt.pop %v1428
        %v1430 = vmul.f32 %v1422, %v1429
        %v1432 = vlaneseq
        %v1433 = vshrl.u32 %v1432, 7
        %v1434 = vsub.s32 0, %v1433
        %v1435 = vrot.slane %v1416, %v1434
        %v1437 = vmul.f32 %v1430, %v1435
        %v1439 = vlaneseq
        %v1440 = vshrl.u32 %v1439, 7
        %v1441 = vsub.s32 0, %v1440
        %v1442 = vrot.slane %v1417, %v1441
        %v1444 = vadd.f32 %v1437, %v1442
        %1445 = vst.msk [vmem:[%s529] sm:$0xff] %vm645, %v1444
        %s1446 = sand.u32 %s373, 1
        %s1447 = scalar_lea.sflag [#allocation7], %s1446
        %s1448 = sand.u32 %s373, 1
        %s1449 = smul.addr %s1448, 8
        %s1450 = scalar_lea.vmem [#allocation10], %s1449
        // Predicated region
        $region93: #{tpu_custom_call.1} parent=79 // pred_check
          %p1451 = pneg %p383
        $region94: #{tpu_custom_call.1} parent=79 // pred_check_branch
          %1453 = sbr.rel (%p1451) target = $region96
        $region95: #{tpu_custom_call.1} parent=79 // pred_region
          %s1455 = ssub.s32 128, 128
          %1456 = vsyncadd %s1447, %s1455
          %s1457 = sadd.s32 %s36, %s35
          %s1458 = smul.addr %s1457, 128
          %s1459 = scalar_lea.hbm %s15, %s1458
          %s1461 = sshll.u32 %s1450, 4
          %s1462 = int_to_ptr.vmem [resolvable:$true] %s1461
          %1464 = dma.vmem_to_hbm [thread:$0]  %s1462, 128, %s1459, %s1447
        $region96: #{tpu_custom_call.1} parent=79 // pred_fallthru
          _
      $region80: #{tpu_custom_call.1} parent=5 // pred_fallthru
        _
      %p1465 = scmp.le.s32.totalorder 2, %s26
      // Predicated region
      $region97: #{tpu_custom_call.1} parent=5 // pred_check
        %p1466 = pneg %p1465
      $region98: #{tpu_custom_call.1} parent=5 // pred_check_branch
        %1468 = sbr.rel (%p1466) target = $region100
      $region99: #{tpu_custom_call.1} parent=5 // pred_region
        %s1469 = ssub.s32 %s26, 2
        // Predicated region
        $region101: #{tpu_custom_call.1} parent=99 // pred_check
          %p1470 = pneg %p389
        $region102: #{tpu_custom_call.1} parent=99 // pred_check_branch
          %1472 = sbr.rel (%p1470) target = $region104
        $region103: #{tpu_custom_call.1} parent=99 // pred_region
          %s1473 = sand.u32 %s374, 1
          %s1474 = scalar_lea.sflag [#allocation7], %s1473
          %s1475 = sand.u32 %s374, 1
          %s1476 = smul.addr %s1475, 8
          %s1477 = scalar_lea.vmem [#allocation10], %s1476
          %1478 = dma.done %s1474, 128
        $region104: #{tpu_custom_call.1} parent=99 // pred_fallthru
          _
      $region100: #{tpu_custom_call.1} parent=5 // pred_fallthru
        _
    $region6: #{tpu_custom_call.1} parent=1 // loop_footer
      %s30 = sadd.s32 1, %s26
    $region7: #{tpu_custom_call.1} parent=1 // loop_footer_branch
      %25 = sbr.rel target = $region3
    $region8: #{tpu_custom_call.1} parent=1 // loop_exit
      _
    %1479 = vsyncpa [#allocation6], 1
    %s1480 = scalar_lea.sflag [#allocation6], 1
    %1481 = vsyncpa %s1480, 1
    %1482 = vsyncpa [#allocation9], 1
    %1483 = vsyncpa [#allocation7], 1
    %s1484 = scalar_lea.sflag [#allocation7], 1
    %1485 = vsyncpa %s1484, 1

</llo_original>
